<compile_context>
chip_gen: v6e
topology: v6e:2x2x1
jax: 0.10.0
libtpu: 0.0.40
codegen_flags: <defaults>
</compile_context>

<pallas_src>
import jax
import jax.numpy as jnp
from jax import lax
from jax.experimental import pallas as pl
from jax.experimental.pallas import tpu as pltpu

BATCH = 2
H_IN = W_IN = 100            # Linear(18432, 4) => 2 * 96 * 96 => 100x100 input
C_IN, C1, C2, N_OUT = 3, 20, 2, 4
KS = 3
H1 = H_IN - (KS - 1)         # 98 : conv1 output spatial size
H2 = H1 - (KS - 1)           # 96 : conv2 output spatial size
K1 = C_IN * KS * KS          # 27
K2 = C1 * KS * KS            # 180


# ---------------------------------------------------------------------------
# Fused kernel: one grid step == one image of the batch.
# ---------------------------------------------------------------------------
def _fused_cnn_kernel(x_ref, w1_ref, b1_ref, w2_ref, b2_ref, w3_ref, b3_ref,
                      o_ref, act1_ref):
    # ---- conv1 + ReLU : (3,100,100) -> VMEM scratch (20,98,98) --------------
    xv = x_ref[0]                                            # (3, 100, 100)
    windows1 = []                                            # 27 shifted views, hoisted
    for ci in range(C_IN):
        for di in range(KS):
            for dj in range(KS):
                windows1.append(xv[ci, di:di + H1, dj:dj + H1])   # (98, 98)

    def conv1_body(co, carry):
        acc = jnp.zeros((H1, H1), jnp.float32)
        for k in range(K1):
            acc = acc + w1_ref[co * K1 + k] * windows1[k]    # scalar splat MAC
        act1_ref[co] = jnp.maximum(acc + b1_ref[co], 0.0)
        return carry

    lax.fori_loop(0, C1, conv1_body, 0)

    # ---- conv2 + ReLU : (20,98,98) -> (2,96,96), kept in registers ----------
    def conv2_body(ci, carry):
        a0, a1 = carry
        plane = act1_ref[ci]                                 # (98, 98)
        for di in range(KS):
            for dj in range(KS):
                win = plane[di:di + H2, dj:dj + H2]          # (96, 96)
                kidx = ci * KS * KS + di * KS + dj
                a0 = a0 + w2_ref[kidx] * win
                a1 = a1 + w2_ref[K2 + kidx] * win
        return a0, a1

    zeros = jnp.zeros((H2, H2), jnp.float32)
    a0, a1 = lax.fori_loop(0, C1, conv2_body, (zeros, zeros))
    act2_0 = jnp.maximum(a0 + b2_ref[0], 0.0)
    act2_1 = jnp.maximum(a1 + b2_ref[1], 0.0)

    # ---- Linear(18432, 4) epilogue: VPU multiplies + XLU reductions ---------
    cols = []
    for o in range(N_OUT):
        p = act2_0 * w3_ref[o, 0] + act2_1 * w3_ref[o, 1]    # (96, 96)
        s = jnp.sum(p, axis=1, keepdims=True)                # (96, 1)
        s = jnp.sum(s, axis=0, keepdims=True)                # (1, 1)
        cols.append(s)
    logits = jnp.concatenate(cols, axis=1) + b3_ref[...]     # (1, 4)
    o_ref[...] = logits.reshape(1, 1, N_OUT)


# ---------------------------------------------------------------------------
# JAX glue: pure reshapes for weight prep + the single pallas_call.
# ---------------------------------------------------------------------------
def cnn_model_forward(x_nchw, params):
    # conv weights flattened to 1-D SMEM tables indexed [co*K + ci*9 + kh*3 + kw];
    # w3 reshaped to (4, 2, 96, 96) matches PyTorch's NCHW view(B, -1) order.
    w1 = params["w1"].reshape(-1)                    # (540,)
    w2 = params["w2"].reshape(-1)                    # (360,)
    w3 = params["w3"].reshape(N_OUT, C2, H2, H2)     # (4, 2, 96, 96)
    b3 = params["b3"].reshape(1, N_OUT)              # (1, 4)

    smem = pl.BlockSpec(memory_space=pltpu.MemorySpace.SMEM)
    out = pl.pallas_call(
        _fused_cnn_kernel,
        out_shape=jax.ShapeDtypeStruct((BATCH, 1, N_OUT), jnp.float32),
        grid_spec=pltpu.PrefetchScalarGridSpec(
            num_scalar_prefetch=0,
            grid=(BATCH,),
            in_specs=[
                pl.BlockSpec((1, C_IN, H_IN, W_IN), lambda b: (b, 0, 0, 0)),  # x
                smem,                                                         # w1
                smem,                                                         # b1
                smem,                                                         # w2
                smem,                                                         # b2
                pl.BlockSpec((N_OUT, C2, H2, H2), lambda b: (0, 0, 0, 0)),    # w3
                pl.BlockSpec((1, N_OUT), lambda b: (0, 0)),                   # b3
            ],
            out_specs=pl.BlockSpec((1, 1, N_OUT), lambda b: (b, 0, 0)),
            scratch_shapes=[pltpu.VMEM((C1, H1, H1), jnp.float32)],           # conv1 act
        ),
        compiler_params=pltpu.CompilerParams(
            dimension_semantics=("parallel",)),
    )(x_nchw, w1, params["b1"], w2, params["b2"], w3, b3)
    return out.reshape(BATCH, N_OUT)


# ---------------------------------------------------------------------------
# Pure-JAX reference (for correctness) and deterministic parameter init.
# ---------------------------------------------------------------------------
def _reference_forward(x, params):
    dn = ("NCHW", "OIHW", "NCHW")
    hp = jax.lax.Precision.HIGHEST
    y = jax.lax.conv_general_dilated(x, params["w1"], (1, 1), "VALID",
                                     dimension_numbers=dn, precision=hp)
    y = jnp.maximum(y + params["b1"][None, :, None, None], 0.0)
    y = jax.lax.conv_general_dilated(y, params["w2"], (1, 1), "VALID",
                                     dimension_numbers=dn, precision=hp)
    y = jnp.maximum(y + params["b2"][None, :, None, None], 0.0)
    y = y.reshape(BATCH, -1)
    return jnp.dot(y, params["w3"].T, precision=hp) + params["b3"]


def init_params(key):
    k1, k2, k3, k4, k5, k6 = jax.random.split(key, 6)
    return {
        "w1": jax.random.normal(k1, (C1, C_IN, KS, KS), jnp.float32) * 0.1,
        "b1": jax.random.normal(k2, (C1,), jnp.float32) * 0.1,
        "w2": jax.random.normal(k3, (C2, C1, KS, KS), jnp.float32) * 0.1,
        "b2": jax.random.normal(k4, (C2,), jnp.float32) * 0.1,
        "w3": jax.random.normal(k5, (N_OUT, C2 * H2 * H2), jnp.float32) * 0.01,
        "b3": jax.random.normal(k6, (N_OUT,), jnp.float32) * 0.01,
    }


if __name__ == "__main__":
    key = jax.random.PRNGKey(0)
    kx, kp = jax.random.split(key)
    x = jax.random.normal(kx, (BATCH, C_IN, H_IN, W_IN), jnp.float32)  # NCHW
    params = init_params(kp)

    out = jax.jit(cnn_model_forward)(x, params)
    out = jax.block_until_ready(out)
    assert out.shape == (BATCH, N_OUT), out.shape
    assert bool(jnp.all(jnp.isfinite(out)))

    ref = jax.block_until_ready(jax.jit(_reference_forward)(x, params))
    assert bool(jnp.allclose(out, ref, rtol=2e-2, atol=2e-2)), (
        float(jnp.max(jnp.abs(out - ref))))
    print("KERNEL_OK")
</pallas_src>

<mosaic_0001>
module attributes {stable_mosaic.version = 11 : i64} {
  func.func @_fused_cnn_kernel(%arg0: i32, %arg1: memref<1x3x100x100xf32, #tpu.memory_space<vmem>>, %arg2: memref<540xf32, #tpu.memory_space<smem>>, %arg3: memref<20xf32, #tpu.memory_space<smem>>, %arg4: memref<360xf32, #tpu.memory_space<smem>>, %arg5: memref<2xf32, #tpu.memory_space<smem>>, %arg6: memref<4x2x96x96xf32, #tpu.memory_space<vmem>>, %arg7: memref<1x4xf32, #tpu.memory_space<vmem>>, %arg8: memref<1x1x4xf32, #tpu.memory_space<vmem>>, %arg9: memref<20x98x98xf32, #tpu.memory_space<vmem>>) attributes {dimension_semantics = [#tpu.dimension_semantics<parallel>], iteration_bounds = array<i64: 2>, scalar_prefetch = 0 : i64, scratch_operands = 1 : i64, tpu.core_type = #tpu.core_type<tc>, window_params = [{transform_indices = @transform_0, window_bounds = array<i64: 1, 3, 100, 100>}, {transform_indices = @transform_1, window_bounds = array<i64: 540>}, {transform_indices = @transform_2, window_bounds = array<i64: 20>}, {transform_indices = @transform_3, window_bounds = array<i64: 360>}, {transform_indices = @transform_4, window_bounds = array<i64: 2>}, {pipeline_mode = #tpu.pipeline_mode<synchronous>, transform_indices = @transform_5, window_bounds = array<i64: 4, 2, 96, 96>}, {pipeline_mode = #tpu.pipeline_mode<synchronous>, transform_indices = @transform_6, window_bounds = array<i64: 1, 4>}, {transform_indices = @transform_7, window_bounds = array<i64: 1, 1, 4>}]} {
    %c0 = arith.constant 0 : index
    %c0_0 = arith.constant 0 : index
    %c0_1 = arith.constant 0 : index
    %c0_2 = arith.constant 0 : index
    %0 = vector.load %arg1[%c0, %c0_0, %c0_1, %c0_2] : memref<1x3x100x100xf32, #tpu.memory_space<vmem>>, vector<1x3x100x100xf32>
    %1 = vector.shape_cast %0 : vector<1x3x100x100xf32> to vector<3x100x100xf32>
    %2 = vector.extract_strided_slice %1 {offsets = [0, 0, 0], sizes = [1, 98, 98], strides = [1, 1, 1]} : vector<3x100x100xf32> to vector<1x98x98xf32>
    %3 = vector.shape_cast %2 : vector<1x98x98xf32> to vector<98x98xf32>
    %4 = vector.extract_strided_slice %1 {offsets = [0, 0, 1], sizes = [1, 98, 98], strides = [1, 1, 1]} : vector<3x100x100xf32> to vector<1x98x98xf32>
    %5 = vector.shape_cast %4 : vector<1x98x98xf32> to vector<98x98xf32>
    %6 = vector.extract_strided_slice %1 {offsets = [0, 0, 2], sizes = [1, 98, 98], strides = [1, 1, 1]} : vector<3x100x100xf32> to vector<1x98x98xf32>
    %7 = vector.shape_cast %6 : vector<1x98x98xf32> to vector<98x98xf32>
    %8 = vector.extract_strided_slice %1 {offsets = [0, 1, 0], sizes = [1, 98, 98], strides = [1, 1, 1]} : vector<3x100x100xf32> to vector<1x98x98xf32>
    %9 = vector.shape_cast %8 : vector<1x98x98xf32> to vector<98x98xf32>
    %10 = vector.extract_strided_slice %1 {offsets = [0, 1, 1], sizes = [1, 98, 98], strides = [1, 1, 1]} : vector<3x100x100xf32> to vector<1x98x98xf32>
    %11 = vector.shape_cast %10 : vector<1x98x98xf32> to vector<98x98xf32>
    %12 = vector.extract_strided_slice %1 {offsets = [0, 1, 2], sizes = [1, 98, 98], strides = [1, 1, 1]} : vector<3x100x100xf32> to vector<1x98x98xf32>
    %13 = vector.shape_cast %12 : vector<1x98x98xf32> to vector<98x98xf32>
    %14 = vector.extract_strided_slice %1 {offsets = [0, 2, 0], sizes = [1, 98, 98], strides = [1, 1, 1]} : vector<3x100x100xf32> to vector<1x98x98xf32>
    %15 = vector.shape_cast %14 : vector<1x98x98xf32> to vector<98x98xf32>
    %16 = vector.extract_strided_slice %1 {offsets = [0, 2, 1], sizes = [1, 98, 98], strides = [1, 1, 1]} : vector<3x100x100xf32> to vector<1x98x98xf32>
    %17 = vector.shape_cast %16 : vector<1x98x98xf32> to vector<98x98xf32>
    %18 = vector.extract_strided_slice %1 {offsets = [0, 2, 2], sizes = [1, 98, 98], strides = [1, 1, 1]} : vector<3x100x100xf32> to vector<1x98x98xf32>
    %19 = vector.shape_cast %18 : vector<1x98x98xf32> to vector<98x98xf32>
    %20 = vector.extract_strided_slice %1 {offsets = [1, 0, 0], sizes = [1, 98, 98], strides = [1, 1, 1]} : vector<3x100x100xf32> to vector<1x98x98xf32>
    %21 = vector.shape_cast %20 : vector<1x98x98xf32> to vector<98x98xf32>
    %22 = vector.extract_strided_slice %1 {offsets = [1, 0, 1], sizes = [1, 98, 98], strides = [1, 1, 1]} : vector<3x100x100xf32> to vector<1x98x98xf32>
    %23 = vector.shape_cast %22 : vector<1x98x98xf32> to vector<98x98xf32>
    %24 = vector.extract_strided_slice %1 {offsets = [1, 0, 2], sizes = [1, 98, 98], strides = [1, 1, 1]} : vector<3x100x100xf32> to vector<1x98x98xf32>
    %25 = vector.shape_cast %24 : vector<1x98x98xf32> to vector<98x98xf32>
    %26 = vector.extract_strided_slice %1 {offsets = [1, 1, 0], sizes = [1, 98, 98], strides = [1, 1, 1]} : vector<3x100x100xf32> to vector<1x98x98xf32>
    %27 = vector.shape_cast %26 : vector<1x98x98xf32> to vector<98x98xf32>
    %28 = vector.extract_strided_slice %1 {offsets = [1, 1, 1], sizes = [1, 98, 98], strides = [1, 1, 1]} : vector<3x100x100xf32> to vector<1x98x98xf32>
    %29 = vector.shape_cast %28 : vector<1x98x98xf32> to vector<98x98xf32>
    %30 = vector.extract_strided_slice %1 {offsets = [1, 1, 2], sizes = [1, 98, 98], strides = [1, 1, 1]} : vector<3x100x100xf32> to vector<1x98x98xf32>
    %31 = vector.shape_cast %30 : vector<1x98x98xf32> to vector<98x98xf32>
    %32 = vector.extract_strided_slice %1 {offsets = [1, 2, 0], sizes = [1, 98, 98], strides = [1, 1, 1]} : vector<3x100x100xf32> to vector<1x98x98xf32>
    %33 = vector.shape_cast %32 : vector<1x98x98xf32> to vector<98x98xf32>
    %34 = vector.extract_strided_slice %1 {offsets = [1, 2, 1], sizes = [1, 98, 98], strides = [1, 1, 1]} : vector<3x100x100xf32> to vector<1x98x98xf32>
    %35 = vector.shape_cast %34 : vector<1x98x98xf32> to vector<98x98xf32>
    %36 = vector.extract_strided_slice %1 {offsets = [1, 2, 2], sizes = [1, 98, 98], strides = [1, 1, 1]} : vector<3x100x100xf32> to vector<1x98x98xf32>
    %37 = vector.shape_cast %36 : vector<1x98x98xf32> to vector<98x98xf32>
    %38 = vector.extract_strided_slice %1 {offsets = [2, 0, 0], sizes = [1, 98, 98], strides = [1, 1, 1]} : vector<3x100x100xf32> to vector<1x98x98xf32>
    %39 = vector.shape_cast %38 : vector<1x98x98xf32> to vector<98x98xf32>
    %40 = vector.extract_strided_slice %1 {offsets = [2, 0, 1], sizes = [1, 98, 98], strides = [1, 1, 1]} : vector<3x100x100xf32> to vector<1x98x98xf32>
    %41 = vector.shape_cast %40 : vector<1x98x98xf32> to vector<98x98xf32>
    %42 = vector.extract_strided_slice %1 {offsets = [2, 0, 2], sizes = [1, 98, 98], strides = [1, 1, 1]} : vector<3x100x100xf32> to vector<1x98x98xf32>
    %43 = vector.shape_cast %42 : vector<1x98x98xf32> to vector<98x98xf32>
    %44 = vector.extract_strided_slice %1 {offsets = [2, 1, 0], sizes = [1, 98, 98], strides = [1, 1, 1]} : vector<3x100x100xf32> to vector<1x98x98xf32>
    %45 = vector.shape_cast %44 : vector<1x98x98xf32> to vector<98x98xf32>
    %46 = vector.extract_strided_slice %1 {offsets = [2, 1, 1], sizes = [1, 98, 98], strides = [1, 1, 1]} : vector<3x100x100xf32> to vector<1x98x98xf32>
    %47 = vector.shape_cast %46 : vector<1x98x98xf32> to vector<98x98xf32>
    %48 = vector.extract_strided_slice %1 {offsets = [2, 1, 2], sizes = [1, 98, 98], strides = [1, 1, 1]} : vector<3x100x100xf32> to vector<1x98x98xf32>
    %49 = vector.shape_cast %48 : vector<1x98x98xf32> to vector<98x98xf32>
    %50 = vector.extract_strided_slice %1 {offsets = [2, 2, 0], sizes = [1, 98, 98], strides = [1, 1, 1]} : vector<3x100x100xf32> to vector<1x98x98xf32>
    %51 = vector.shape_cast %50 : vector<1x98x98xf32> to vector<98x98xf32>
    %52 = vector.extract_strided_slice %1 {offsets = [2, 2, 1], sizes = [1, 98, 98], strides = [1, 1, 1]} : vector<3x100x100xf32> to vector<1x98x98xf32>
    %53 = vector.shape_cast %52 : vector<1x98x98xf32> to vector<98x98xf32>
    %54 = vector.extract_strided_slice %1 {offsets = [2, 2, 2], sizes = [1, 98, 98], strides = [1, 1, 1]} : vector<3x100x100xf32> to vector<1x98x98xf32>
    %55 = vector.shape_cast %54 : vector<1x98x98xf32> to vector<98x98xf32>
    %c0_i32 = arith.constant 0 : i32
    %c20_i32 = arith.constant 20 : i32
    %56 = arith.addi %c0_i32, %c20_i32 : i32
    %c1_i32 = arith.constant 1 : i32
    scf.for %arg10 = %c0_i32 to %56 step %c1_i32  : i32 {
      %cst_54 = arith.constant 0.000000e+00 : f32
      %119 = vector.broadcast %cst_54 : f32 to vector<98x98xf32>
      %c27_i32 = arith.constant 27 : i32
      %120 = arith.muli %arg10, %c27_i32 : i32
      %c0_i32_55 = arith.constant 0 : i32
      %121 = arith.addi %120, %c0_i32_55 : i32
      %122 = arith.index_cast %121 : i32 to index
      %123 = memref.load %arg2[%122] : memref<540xf32, #tpu.memory_space<smem>>
      %124 = vector.broadcast %123 : f32 to vector<98x98xf32>
      %125 = arith.mulf %124, %3 : vector<98x98xf32>
      %126 = arith.addf %119, %125 : vector<98x98xf32>
      %c27_i32_56 = arith.constant 27 : i32
      %127 = arith.muli %arg10, %c27_i32_56 : i32
      %c1_i32_57 = arith.constant 1 : i32
      %128 = arith.addi %127, %c1_i32_57 : i32
      %129 = arith.index_cast %128 : i32 to index
      %130 = memref.load %arg2[%129] : memref<540xf32, #tpu.memory_space<smem>>
      %131 = vector.broadcast %130 : f32 to vector<98x98xf32>
      %132 = arith.mulf %131, %5 : vector<98x98xf32>
      %133 = arith.addf %126, %132 : vector<98x98xf32>
      %c27_i32_58 = arith.constant 27 : i32
      %134 = arith.muli %arg10, %c27_i32_58 : i32
      %c2_i32 = arith.constant 2 : i32
      %135 = arith.addi %134, %c2_i32 : i32
      %136 = arith.index_cast %135 : i32 to index
      %137 = memref.load %arg2[%136] : memref<540xf32, #tpu.memory_space<smem>>
      %138 = vector.broadcast %137 : f32 to vector<98x98xf32>
      %139 = arith.mulf %138, %7 : vector<98x98xf32>
      %140 = arith.addf %133, %139 : vector<98x98xf32>
      %c27_i32_59 = arith.constant 27 : i32
      %141 = arith.muli %arg10, %c27_i32_59 : i32
      %c3_i32 = arith.constant 3 : i32
      %142 = arith.addi %141, %c3_i32 : i32
      %143 = arith.index_cast %142 : i32 to index
      %144 = memref.load %arg2[%143] : memref<540xf32, #tpu.memory_space<smem>>
      %145 = vector.broadcast %144 : f32 to vector<98x98xf32>
      %146 = arith.mulf %145, %9 : vector<98x98xf32>
      %147 = arith.addf %140, %146 : vector<98x98xf32>
      %c27_i32_60 = arith.constant 27 : i32
      %148 = arith.muli %arg10, %c27_i32_60 : i32
      %c4_i32 = arith.constant 4 : i32
      %149 = arith.addi %148, %c4_i32 : i32
      %150 = arith.index_cast %149 : i32 to index
      %151 = memref.load %arg2[%150] : memref<540xf32, #tpu.memory_space<smem>>
      %152 = vector.broadcast %151 : f32 to vector<98x98xf32>
      %153 = arith.mulf %152, %11 : vector<98x98xf32>
      %154 = arith.addf %147, %153 : vector<98x98xf32>
      %c27_i32_61 = arith.constant 27 : i32
      %155 = arith.muli %arg10, %c27_i32_61 : i32
      %c5_i32 = arith.constant 5 : i32
      %156 = arith.addi %155, %c5_i32 : i32
      %157 = arith.index_cast %156 : i32 to index
      %158 = memref.load %arg2[%157] : memref<540xf32, #tpu.memory_space<smem>>
      %159 = vector.broadcast %158 : f32 to vector<98x98xf32>
      %160 = arith.mulf %159, %13 : vector<98x98xf32>
      %161 = arith.addf %154, %160 : vector<98x98xf32>
      %c27_i32_62 = arith.constant 27 : i32
      %162 = arith.muli %arg10, %c27_i32_62 : i32
      %c6_i32 = arith.constant 6 : i32
      %163 = arith.addi %162, %c6_i32 : i32
      %164 = arith.index_cast %163 : i32 to index
      %165 = memref.load %arg2[%164] : memref<540xf32, #tpu.memory_space<smem>>
      %166 = vector.broadcast %165 : f32 to vector<98x98xf32>
      %167 = arith.mulf %166, %15 : vector<98x98xf32>
      %168 = arith.addf %161, %167 : vector<98x98xf32>
      %c27_i32_63 = arith.constant 27 : i32
      %169 = arith.muli %arg10, %c27_i32_63 : i32
      %c7_i32 = arith.constant 7 : i32
      %170 = arith.addi %169, %c7_i32 : i32
      %171 = arith.index_cast %170 : i32 to index
      %172 = memref.load %arg2[%171] : memref<540xf32, #tpu.memory_space<smem>>
      %173 = vector.broadcast %172 : f32 to vector<98x98xf32>
      %174 = arith.mulf %173, %17 : vector<98x98xf32>
      %175 = arith.addf %168, %174 : vector<98x98xf32>
      %c27_i32_64 = arith.constant 27 : i32
      %176 = arith.muli %arg10, %c27_i32_64 : i32
      %c8_i32 = arith.constant 8 : i32
      %177 = arith.addi %176, %c8_i32 : i32
      %178 = arith.index_cast %177 : i32 to index
      %179 = memref.load %arg2[%178] : memref<540xf32, #tpu.memory_space<smem>>
      %180 = vector.broadcast %179 : f32 to vector<98x98xf32>
      %181 = arith.mulf %180, %19 : vector<98x98xf32>
      %182 = arith.addf %175, %181 : vector<98x98xf32>
      %c27_i32_65 = arith.constant 27 : i32
      %183 = arith.muli %arg10, %c27_i32_65 : i32
      %c9_i32 = arith.constant 9 : i32
      %184 = arith.addi %183, %c9_i32 : i32
      %185 = arith.index_cast %184 : i32 to index
      %186 = memref.load %arg2[%185] : memref<540xf32, #tpu.memory_space<smem>>
      %187 = vector.broadcast %186 : f32 to vector<98x98xf32>
      %188 = arith.mulf %187, %21 : vector<98x98xf32>
      %189 = arith.addf %182, %188 : vector<98x98xf32>
      %c27_i32_66 = arith.constant 27 : i32
      %190 = arith.muli %arg10, %c27_i32_66 : i32
      %c10_i32 = arith.constant 10 : i32
      %191 = arith.addi %190, %c10_i32 : i32
      %192 = arith.index_cast %191 : i32 to index
      %193 = memref.load %arg2[%192] : memref<540xf32, #tpu.memory_space<smem>>
      %194 = vector.broadcast %193 : f32 to vector<98x98xf32>
      %195 = arith.mulf %194, %23 : vector<98x98xf32>
      %196 = arith.addf %189, %195 : vector<98x98xf32>
      %c27_i32_67 = arith.constant 27 : i32
      %197 = arith.muli %arg10, %c27_i32_67 : i32
      %c11_i32 = arith.constant 11 : i32
      %198 = arith.addi %197, %c11_i32 : i32
      %199 = arith.index_cast %198 : i32 to index
      %200 = memref.load %arg2[%199] : memref<540xf32, #tpu.memory_space<smem>>
      %201 = vector.broadcast %200 : f32 to vector<98x98xf32>
      %202 = arith.mulf %201, %25 : vector<98x98xf32>
      %203 = arith.addf %196, %202 : vector<98x98xf32>
      %c27_i32_68 = arith.constant 27 : i32
      %204 = arith.muli %arg10, %c27_i32_68 : i32
      %c12_i32 = arith.constant 12 : i32
      %205 = arith.addi %204, %c12_i32 : i32
      %206 = arith.index_cast %205 : i32 to index
      %207 = memref.load %arg2[%206] : memref<540xf32, #tpu.memory_space<smem>>
      %208 = vector.broadcast %207 : f32 to vector<98x98xf32>
      %209 = arith.mulf %208, %27 : vector<98x98xf32>
      %210 = arith.addf %203, %209 : vector<98x98xf32>
      %c27_i32_69 = arith.constant 27 : i32
      %211 = arith.muli %arg10, %c27_i32_69 : i32
      %c13_i32 = arith.constant 13 : i32
      %212 = arith.addi %211, %c13_i32 : i32
      %213 = arith.index_cast %212 : i32 to index
      %214 = memref.load %arg2[%213] : memref<540xf32, #tpu.memory_space<smem>>
      %215 = vector.broadcast %214 : f32 to vector<98x98xf32>
      %216 = arith.mulf %215, %29 : vector<98x98xf32>
      %217 = arith.addf %210, %216 : vector<98x98xf32>
      %c27_i32_70 = arith.constant 27 : i32
      %218 = arith.muli %arg10, %c27_i32_70 : i32
      %c14_i32 = arith.constant 14 : i32
      %219 = arith.addi %218, %c14_i32 : i32
      %220 = arith.index_cast %219 : i32 to index
      %221 = memref.load %arg2[%220] : memref<540xf32, #tpu.memory_space<smem>>
      %222 = vector.broadcast %221 : f32 to vector<98x98xf32>
      %223 = arith.mulf %222, %31 : vector<98x98xf32>
      %224 = arith.addf %217, %223 : vector<98x98xf32>
      %c27_i32_71 = arith.constant 27 : i32
      %225 = arith.muli %arg10, %c27_i32_71 : i32
      %c15_i32 = arith.constant 15 : i32
      %226 = arith.addi %225, %c15_i32 : i32
      %227 = arith.index_cast %226 : i32 to index
      %228 = memref.load %arg2[%227] : memref<540xf32, #tpu.memory_space<smem>>
      %229 = vector.broadcast %228 : f32 to vector<98x98xf32>
      %230 = arith.mulf %229, %33 : vector<98x98xf32>
      %231 = arith.addf %224, %230 : vector<98x98xf32>
      %c27_i32_72 = arith.constant 27 : i32
      %232 = arith.muli %arg10, %c27_i32_72 : i32
      %c16_i32 = arith.constant 16 : i32
      %233 = arith.addi %232, %c16_i32 : i32
      %234 = arith.index_cast %233 : i32 to index
      %235 = memref.load %arg2[%234] : memref<540xf32, #tpu.memory_space<smem>>
      %236 = vector.broadcast %235 : f32 to vector<98x98xf32>
      %237 = arith.mulf %236, %35 : vector<98x98xf32>
      %238 = arith.addf %231, %237 : vector<98x98xf32>
      %c27_i32_73 = arith.constant 27 : i32
      %239 = arith.muli %arg10, %c27_i32_73 : i32
      %c17_i32 = arith.constant 17 : i32
      %240 = arith.addi %239, %c17_i32 : i32
      %241 = arith.index_cast %240 : i32 to index
      %242 = memref.load %arg2[%241] : memref<540xf32, #tpu.memory_space<smem>>
      %243 = vector.broadcast %242 : f32 to vector<98x98xf32>
      %244 = arith.mulf %243, %37 : vector<98x98xf32>
      %245 = arith.addf %238, %244 : vector<98x98xf32>
      %c27_i32_74 = arith.constant 27 : i32
      %246 = arith.muli %arg10, %c27_i32_74 : i32
      %c18_i32 = arith.constant 18 : i32
      %247 = arith.addi %246, %c18_i32 : i32
      %248 = arith.index_cast %247 : i32 to index
      %249 = memref.load %arg2[%248] : memref<540xf32, #tpu.memory_space<smem>>
      %250 = vector.broadcast %249 : f32 to vector<98x98xf32>
      %251 = arith.mulf %250, %39 : vector<98x98xf32>
      %252 = arith.addf %245, %251 : vector<98x98xf32>
      %c27_i32_75 = arith.constant 27 : i32
      %253 = arith.muli %arg10, %c27_i32_75 : i32
      %c19_i32 = arith.constant 19 : i32
      %254 = arith.addi %253, %c19_i32 : i32
      %255 = arith.index_cast %254 : i32 to index
      %256 = memref.load %arg2[%255] : memref<540xf32, #tpu.memory_space<smem>>
      %257 = vector.broadcast %256 : f32 to vector<98x98xf32>
      %258 = arith.mulf %257, %41 : vector<98x98xf32>
      %259 = arith.addf %252, %258 : vector<98x98xf32>
      %c27_i32_76 = arith.constant 27 : i32
      %260 = arith.muli %arg10, %c27_i32_76 : i32
      %c20_i32_77 = arith.constant 20 : i32
      %261 = arith.addi %260, %c20_i32_77 : i32
      %262 = arith.index_cast %261 : i32 to index
      %263 = memref.load %arg2[%262] : memref<540xf32, #tpu.memory_space<smem>>
      %264 = vector.broadcast %263 : f32 to vector<98x98xf32>
      %265 = arith.mulf %264, %43 : vector<98x98xf32>
      %266 = arith.addf %259, %265 : vector<98x98xf32>
      %c27_i32_78 = arith.constant 27 : i32
      %267 = arith.muli %arg10, %c27_i32_78 : i32
      %c21_i32 = arith.constant 21 : i32
      %268 = arith.addi %267, %c21_i32 : i32
      %269 = arith.index_cast %268 : i32 to index
      %270 = memref.load %arg2[%269] : memref<540xf32, #tpu.memory_space<smem>>
      %271 = vector.broadcast %270 : f32 to vector<98x98xf32>
      %272 = arith.mulf %271, %45 : vector<98x98xf32>
      %273 = arith.addf %266, %272 : vector<98x98xf32>
      %c27_i32_79 = arith.constant 27 : i32
      %274 = arith.muli %arg10, %c27_i32_79 : i32
      %c22_i32 = arith.constant 22 : i32
      %275 = arith.addi %274, %c22_i32 : i32
      %276 = arith.index_cast %275 : i32 to index
      %277 = memref.load %arg2[%276] : memref<540xf32, #tpu.memory_space<smem>>
      %278 = vector.broadcast %277 : f32 to vector<98x98xf32>
      %279 = arith.mulf %278, %47 : vector<98x98xf32>
      %280 = arith.addf %273, %279 : vector<98x98xf32>
      %c27_i32_80 = arith.constant 27 : i32
      %281 = arith.muli %arg10, %c27_i32_80 : i32
      %c23_i32 = arith.constant 23 : i32
      %282 = arith.addi %281, %c23_i32 : i32
      %283 = arith.index_cast %282 : i32 to index
      %284 = memref.load %arg2[%283] : memref<540xf32, #tpu.memory_space<smem>>
      %285 = vector.broadcast %284 : f32 to vector<98x98xf32>
      %286 = arith.mulf %285, %49 : vector<98x98xf32>
      %287 = arith.addf %280, %286 : vector<98x98xf32>
      %c27_i32_81 = arith.constant 27 : i32
      %288 = arith.muli %arg10, %c27_i32_81 : i32
      %c24_i32 = arith.constant 24 : i32
      %289 = arith.addi %288, %c24_i32 : i32
      %290 = arith.index_cast %289 : i32 to index
      %291 = memref.load %arg2[%290] : memref<540xf32, #tpu.memory_space<smem>>
      %292 = vector.broadcast %291 : f32 to vector<98x98xf32>
      %293 = arith.mulf %292, %51 : vector<98x98xf32>
      %294 = arith.addf %287, %293 : vector<98x98xf32>
      %c27_i32_82 = arith.constant 27 : i32
      %295 = arith.muli %arg10, %c27_i32_82 : i32
      %c25_i32 = arith.constant 25 : i32
      %296 = arith.addi %295, %c25_i32 : i32
      %297 = arith.index_cast %296 : i32 to index
      %298 = memref.load %arg2[%297] : memref<540xf32, #tpu.memory_space<smem>>
      %299 = vector.broadcast %298 : f32 to vector<98x98xf32>
      %300 = arith.mulf %299, %53 : vector<98x98xf32>
      %301 = arith.addf %294, %300 : vector<98x98xf32>
      %c27_i32_83 = arith.constant 27 : i32
      %302 = arith.muli %arg10, %c27_i32_83 : i32
      %c26_i32 = arith.constant 26 : i32
      %303 = arith.addi %302, %c26_i32 : i32
      %304 = arith.index_cast %303 : i32 to index
      %305 = memref.load %arg2[%304] : memref<540xf32, #tpu.memory_space<smem>>
      %306 = vector.broadcast %305 : f32 to vector<98x98xf32>
      %307 = arith.mulf %306, %55 : vector<98x98xf32>
      %308 = arith.addf %301, %307 : vector<98x98xf32>
      %309 = arith.index_cast %arg10 : i32 to index
      %310 = memref.load %arg3[%309] : memref<20xf32, #tpu.memory_space<smem>>
      %311 = vector.broadcast %310 : f32 to vector<98x98xf32>
      %312 = arith.addf %308, %311 : vector<98x98xf32>
      %cst_84 = arith.constant 0.000000e+00 : f32
      %313 = vector.broadcast %cst_84 : f32 to vector<98x98xf32>
      %314 = arith.maximumf %312, %313 : vector<98x98xf32>
      %315 = arith.index_cast %arg10 : i32 to index
      %c0_85 = arith.constant 0 : index
      %c0_86 = arith.constant 0 : index
      %316 = vector.load %arg9[%315, %c0_85, %c0_86] : memref<20x98x98xf32, #tpu.memory_space<vmem>>, vector<1x98x98xf32>
      %317 = vector.shape_cast %316 : vector<1x98x98xf32> to vector<98x98xf32>
      %318 = vector.shape_cast %314 : vector<98x98xf32> to vector<1x98x98xf32>
      tpu.vector_store %arg9[%315, %c0_85, %c0_86], %318 {strides = array<i32>} : memref<20x98x98xf32, #tpu.memory_space<vmem>>, vector<1x98x98xf32>,
    }
    %c20_i32_3 = arith.constant 20 : i32
    %cst = arith.constant 0.000000e+00 : f32
    %57 = vector.broadcast %cst : f32 to vector<96x96xf32>
    %c0_i32_4 = arith.constant 0 : i32
    %c20_i32_5 = arith.constant 20 : i32
    %58 = arith.addi %c0_i32_4, %c20_i32_5 : i32
    %c1_i32_6 = arith.constant 1 : i32
    %59:2 = scf.for %arg10 = %c0_i32_4 to %58 step %c1_i32_6 iter_args(%arg11 = %57, %arg12 = %57) -> (vector<96x96xf32>, vector<96x96xf32>)  : i32 {
      %119 = arith.index_cast %arg10 : i32 to index
      %c0_54 = arith.constant 0 : index
      %c0_55 = arith.constant 0 : index
      %120 = vector.load %arg9[%119, %c0_54, %c0_55] : memref<20x98x98xf32, #tpu.memory_space<vmem>>, vector<1x98x98xf32>
      %121 = vector.shape_cast %120 : vector<1x98x98xf32> to vector<98x98xf32>
      %122 = vector.extract_strided_slice %121 {offsets = [0, 0], sizes = [96, 96], strides = [1, 1]} : vector<98x98xf32> to vector<96x96xf32>
      %c3_i32 = arith.constant 3 : i32
      %123 = arith.muli %arg10, %c3_i32 : i32
      %c3_i32_56 = arith.constant 3 : i32
      %124 = arith.muli %123, %c3_i32_56 : i32
      %c0_i32_57 = arith.constant 0 : i32
      %125 = arith.addi %124, %c0_i32_57 : i32
      %c0_i32_58 = arith.constant 0 : i32
      %126 = arith.addi %125, %c0_i32_58 : i32
      %127 = arith.index_cast %126 : i32 to index
      %128 = memref.load %arg4[%127] : memref<360xf32, #tpu.memory_space<smem>>
      %129 = vector.broadcast %128 : f32 to vector<96x96xf32>
      %130 = arith.mulf %129, %122 : vector<96x96xf32>
      %131 = arith.addf %arg11, %130 : vector<96x96xf32>
      %c180_i32 = arith.constant 180 : i32
      %132 = arith.addi %c180_i32, %126 : i32
      %133 = arith.index_cast %132 : i32 to index
      %134 = memref.load %arg4[%133] : memref<360xf32, #tpu.memory_space<smem>>
      %135 = vector.broadcast %134 : f32 to vector<96x96xf32>
      %136 = arith.mulf %135, %122 : vector<96x96xf32>
      %137 = arith.addf %arg12, %136 : vector<96x96xf32>
      %138 = vector.extract_strided_slice %121 {offsets = [0, 1], sizes = [96, 96], strides = [1, 1]} : vector<98x98xf32> to vector<96x96xf32>
      %c3_i32_59 = arith.constant 3 : i32
      %139 = arith.muli %arg10, %c3_i32_59 : i32
      %c3_i32_60 = arith.constant 3 : i32
      %140 = arith.muli %139, %c3_i32_60 : i32
      %c0_i32_61 = arith.constant 0 : i32
      %141 = arith.addi %140, %c0_i32_61 : i32
      %c1_i32_62 = arith.constant 1 : i32
      %142 = arith.addi %141, %c1_i32_62 : i32
      %143 = arith.index_cast %142 : i32 to index
      %144 = memref.load %arg4[%143] : memref<360xf32, #tpu.memory_space<smem>>
      %145 = vector.broadcast %144 : f32 to vector<96x96xf32>
      %146 = arith.mulf %145, %138 : vector<96x96xf32>
      %147 = arith.addf %131, %146 : vector<96x96xf32>
      %c180_i32_63 = arith.constant 180 : i32
      %148 = arith.addi %c180_i32_63, %142 : i32
      %149 = arith.index_cast %148 : i32 to index
      %150 = memref.load %arg4[%149] : memref<360xf32, #tpu.memory_space<smem>>
      %151 = vector.broadcast %150 : f32 to vector<96x96xf32>
      %152 = arith.mulf %151, %138 : vector<96x96xf32>
      %153 = arith.addf %137, %152 : vector<96x96xf32>
      %154 = vector.extract_strided_slice %121 {offsets = [0, 2], sizes = [96, 96], strides = [1, 1]} : vector<98x98xf32> to vector<96x96xf32>
      %c3_i32_64 = arith.constant 3 : i32
      %155 = arith.muli %arg10, %c3_i32_64 : i32
      %c3_i32_65 = arith.constant 3 : i32
      %156 = arith.muli %155, %c3_i32_65 : i32
      %c0_i32_66 = arith.constant 0 : i32
      %157 = arith.addi %156, %c0_i32_66 : i32
      %c2_i32 = arith.constant 2 : i32
      %158 = arith.addi %157, %c2_i32 : i32
      %159 = arith.index_cast %158 : i32 to index
      %160 = memref.load %arg4[%159] : memref<360xf32, #tpu.memory_space<smem>>
      %161 = vector.broadcast %160 : f32 to vector<96x96xf32>
      %162 = arith.mulf %161, %154 : vector<96x96xf32>
      %163 = arith.addf %147, %162 : vector<96x96xf32>
      %c180_i32_67 = arith.constant 180 : i32
      %164 = arith.addi %c180_i32_67, %158 : i32
      %165 = arith.index_cast %164 : i32 to index
      %166 = memref.load %arg4[%165] : memref<360xf32, #tpu.memory_space<smem>>
      %167 = vector.broadcast %166 : f32 to vector<96x96xf32>
      %168 = arith.mulf %167, %154 : vector<96x96xf32>
      %169 = arith.addf %153, %168 : vector<96x96xf32>
      %170 = vector.extract_strided_slice %121 {offsets = [1, 0], sizes = [96, 96], strides = [1, 1]} : vector<98x98xf32> to vector<96x96xf32>
      %c3_i32_68 = arith.constant 3 : i32
      %171 = arith.muli %arg10, %c3_i32_68 : i32
      %c3_i32_69 = arith.constant 3 : i32
      %172 = arith.muli %171, %c3_i32_69 : i32
      %c3_i32_70 = arith.constant 3 : i32
      %173 = arith.addi %172, %c3_i32_70 : i32
      %c0_i32_71 = arith.constant 0 : i32
      %174 = arith.addi %173, %c0_i32_71 : i32
      %175 = arith.index_cast %174 : i32 to index
      %176 = memref.load %arg4[%175] : memref<360xf32, #tpu.memory_space<smem>>
      %177 = vector.broadcast %176 : f32 to vector<96x96xf32>
      %178 = arith.mulf %177, %170 : vector<96x96xf32>
      %179 = arith.addf %163, %178 : vector<96x96xf32>
      %c180_i32_72 = arith.constant 180 : i32
      %180 = arith.addi %c180_i32_72, %174 : i32
      %181 = arith.index_cast %180 : i32 to index
      %182 = memref.load %arg4[%181] : memref<360xf32, #tpu.memory_space<smem>>
      %183 = vector.broadcast %182 : f32 to vector<96x96xf32>
      %184 = arith.mulf %183, %170 : vector<96x96xf32>
      %185 = arith.addf %169, %184 : vector<96x96xf32>
      %186 = vector.extract_strided_slice %121 {offsets = [1, 1], sizes = [96, 96], strides = [1, 1]} : vector<98x98xf32> to vector<96x96xf32>
      %c3_i32_73 = arith.constant 3 : i32
      %187 = arith.muli %arg10, %c3_i32_73 : i32
      %c3_i32_74 = arith.constant 3 : i32
      %188 = arith.muli %187, %c3_i32_74 : i32
      %c3_i32_75 = arith.constant 3 : i32
      %189 = arith.addi %188, %c3_i32_75 : i32
      %c1_i32_76 = arith.constant 1 : i32
      %190 = arith.addi %189, %c1_i32_76 : i32
      %191 = arith.index_cast %190 : i32 to index
      %192 = memref.load %arg4[%191] : memref<360xf32, #tpu.memory_space<smem>>
      %193 = vector.broadcast %192 : f32 to vector<96x96xf32>
      %194 = arith.mulf %193, %186 : vector<96x96xf32>
      %195 = arith.addf %179, %194 : vector<96x96xf32>
      %c180_i32_77 = arith.constant 180 : i32
      %196 = arith.addi %c180_i32_77, %190 : i32
      %197 = arith.index_cast %196 : i32 to index
      %198 = memref.load %arg4[%197] : memref<360xf32, #tpu.memory_space<smem>>
      %199 = vector.broadcast %198 : f32 to vector<96x96xf32>
      %200 = arith.mulf %199, %186 : vector<96x96xf32>
      %201 = arith.addf %185, %200 : vector<96x96xf32>
      %202 = vector.extract_strided_slice %121 {offsets = [1, 2], sizes = [96, 96], strides = [1, 1]} : vector<98x98xf32> to vector<96x96xf32>
      %c3_i32_78 = arith.constant 3 : i32
      %203 = arith.muli %arg10, %c3_i32_78 : i32
      %c3_i32_79 = arith.constant 3 : i32
      %204 = arith.muli %203, %c3_i32_79 : i32
      %c3_i32_80 = arith.constant 3 : i32
      %205 = arith.addi %204, %c3_i32_80 : i32
      %c2_i32_81 = arith.constant 2 : i32
      %206 = arith.addi %205, %c2_i32_81 : i32
      %207 = arith.index_cast %206 : i32 to index
      %208 = memref.load %arg4[%207] : memref<360xf32, #tpu.memory_space<smem>>
      %209 = vector.broadcast %208 : f32 to vector<96x96xf32>
      %210 = arith.mulf %209, %202 : vector<96x96xf32>
      %211 = arith.addf %195, %210 : vector<96x96xf32>
      %c180_i32_82 = arith.constant 180 : i32
      %212 = arith.addi %c180_i32_82, %206 : i32
      %213 = arith.index_cast %212 : i32 to index
      %214 = memref.load %arg4[%213] : memref<360xf32, #tpu.memory_space<smem>>
      %215 = vector.broadcast %214 : f32 to vector<96x96xf32>
      %216 = arith.mulf %215, %202 : vector<96x96xf32>
      %217 = arith.addf %201, %216 : vector<96x96xf32>
      %218 = vector.extract_strided_slice %121 {offsets = [2, 0], sizes = [96, 96], strides = [1, 1]} : vector<98x98xf32> to vector<96x96xf32>
      %c3_i32_83 = arith.constant 3 : i32
      %219 = arith.muli %arg10, %c3_i32_83 : i32
      %c3_i32_84 = arith.constant 3 : i32
      %220 = arith.muli %219, %c3_i32_84 : i32
      %c6_i32 = arith.constant 6 : i32
      %221 = arith.addi %220, %c6_i32 : i32
      %c0_i32_85 = arith.constant 0 : i32
      %222 = arith.addi %221, %c0_i32_85 : i32
      %223 = arith.index_cast %222 : i32 to index
      %224 = memref.load %arg4[%223] : memref<360xf32, #tpu.memory_space<smem>>
      %225 = vector.broadcast %224 : f32 to vector<96x96xf32>
      %226 = arith.mulf %225, %218 : vector<96x96xf32>
      %227 = arith.addf %211, %226 : vector<96x96xf32>
      %c180_i32_86 = arith.constant 180 : i32
      %228 = arith.addi %c180_i32_86, %222 : i32
      %229 = arith.index_cast %228 : i32 to index
      %230 = memref.load %arg4[%229] : memref<360xf32, #tpu.memory_space<smem>>
      %231 = vector.broadcast %230 : f32 to vector<96x96xf32>
      %232 = arith.mulf %231, %218 : vector<96x96xf32>
      %233 = arith.addf %217, %232 : vector<96x96xf32>
      %234 = vector.extract_strided_slice %121 {offsets = [2, 1], sizes = [96, 96], strides = [1, 1]} : vector<98x98xf32> to vector<96x96xf32>
      %c3_i32_87 = arith.constant 3 : i32
      %235 = arith.muli %arg10, %c3_i32_87 : i32
      %c3_i32_88 = arith.constant 3 : i32
      %236 = arith.muli %235, %c3_i32_88 : i32
      %c6_i32_89 = arith.constant 6 : i32
      %237 = arith.addi %236, %c6_i32_89 : i32
      %c1_i32_90 = arith.constant 1 : i32
      %238 = arith.addi %237, %c1_i32_90 : i32
      %239 = arith.index_cast %238 : i32 to index
      %240 = memref.load %arg4[%239] : memref<360xf32, #tpu.memory_space<smem>>
      %241 = vector.broadcast %240 : f32 to vector<96x96xf32>
      %242 = arith.mulf %241, %234 : vector<96x96xf32>
      %243 = arith.addf %227, %242 : vector<96x96xf32>
      %c180_i32_91 = arith.constant 180 : i32
      %244 = arith.addi %c180_i32_91, %238 : i32
      %245 = arith.index_cast %244 : i32 to index
      %246 = memref.load %arg4[%245] : memref<360xf32, #tpu.memory_space<smem>>
      %247 = vector.broadcast %246 : f32 to vector<96x96xf32>
      %248 = arith.mulf %247, %234 : vector<96x96xf32>
      %249 = arith.addf %233, %248 : vector<96x96xf32>
      %250 = vector.extract_strided_slice %121 {offsets = [2, 2], sizes = [96, 96], strides = [1, 1]} : vector<98x98xf32> to vector<96x96xf32>
      %c3_i32_92 = arith.constant 3 : i32
      %251 = arith.muli %arg10, %c3_i32_92 : i32
      %c3_i32_93 = arith.constant 3 : i32
      %252 = arith.muli %251, %c3_i32_93 : i32
      %c6_i32_94 = arith.constant 6 : i32
      %253 = arith.addi %252, %c6_i32_94 : i32
      %c2_i32_95 = arith.constant 2 : i32
      %254 = arith.addi %253, %c2_i32_95 : i32
      %255 = arith.index_cast %254 : i32 to index
      %256 = memref.load %arg4[%255] : memref<360xf32, #tpu.memory_space<smem>>
      %257 = vector.broadcast %256 : f32 to vector<96x96xf32>
      %258 = arith.mulf %257, %250 : vector<96x96xf32>
      %259 = arith.addf %243, %258 : vector<96x96xf32>
      %c180_i32_96 = arith.constant 180 : i32
      %260 = arith.addi %c180_i32_96, %254 : i32
      %261 = arith.index_cast %260 : i32 to index
      %262 = memref.load %arg4[%261] : memref<360xf32, #tpu.memory_space<smem>>
      %263 = vector.broadcast %262 : f32 to vector<96x96xf32>
      %264 = arith.mulf %263, %250 : vector<96x96xf32>
      %265 = arith.addf %249, %264 : vector<96x96xf32>
      scf.yield %259, %265 : vector<96x96xf32>, vector<96x96xf32>
    }
    %c20_i32_7 = arith.constant 20 : i32
    %c0_8 = arith.constant 0 : index
    %60 = memref.load %arg5[%c0_8] : memref<2xf32, #tpu.memory_space<smem>>
    %61 = vector.broadcast %60 : f32 to vector<96x96xf32>
    %62 = arith.addf %59#0, %61 : vector<96x96xf32>
    %cst_9 = arith.constant 0.000000e+00 : f32
    %63 = vector.broadcast %cst_9 : f32 to vector<96x96xf32>
    %64 = arith.maximumf %62, %63 : vector<96x96xf32>
    %c1 = arith.constant 1 : index
    %65 = memref.load %arg5[%c1] : memref<2xf32, #tpu.memory_space<smem>>
    %66 = vector.broadcast %65 : f32 to vector<96x96xf32>
    %67 = arith.addf %59#1, %66 : vector<96x96xf32>
    %cst_10 = arith.constant 0.000000e+00 : f32
    %68 = vector.broadcast %cst_10 : f32 to vector<96x96xf32>
    %69 = arith.maximumf %67, %68 : vector<96x96xf32>
    %c0_11 = arith.constant 0 : index
    %c0_12 = arith.constant 0 : index
    %c0_13 = arith.constant 0 : index
    %c0_14 = arith.constant 0 : index
    %70 = vector.load %arg6[%c0_11, %c0_12, %c0_13, %c0_14] : memref<4x2x96x96xf32, #tpu.memory_space<vmem>>, vector<1x1x96x96xf32>
    %71 = vector.shape_cast %70 : vector<1x1x96x96xf32> to vector<96x96xf32>
    %72 = arith.mulf %64, %71 : vector<96x96xf32>
    %c0_15 = arith.constant 0 : index
    %c1_16 = arith.constant 1 : index
    %c0_17 = arith.constant 0 : index
    %c0_18 = arith.constant 0 : index
    %73 = vector.load %arg6[%c0_15, %c1_16, %c0_17, %c0_18] : memref<4x2x96x96xf32, #tpu.memory_space<vmem>>, vector<1x1x96x96xf32>
    %74 = vector.shape_cast %73 : vector<1x1x96x96xf32> to vector<96x96xf32>
    %75 = arith.mulf %69, %74 : vector<96x96xf32>
    %76 = arith.addf %72, %75 : vector<96x96xf32>
    %cst_19 = arith.constant dense<0.000000e+00> : vector<96xf32>
    %77 = vector.multi_reduction <add>, %76, %cst_19 [1] : vector<96x96xf32> to vector<96xf32>
    %78 = vector.shape_cast %77 : vector<96xf32> to vector<96x1xf32>
    %cst_20 = arith.constant dense<0.000000e+00> : vector<1xf32>
    %79 = vector.multi_reduction <add>, %78, %cst_20 [0] : vector<96x1xf32> to vector<1xf32>
    %80 = vector.shape_cast %79 : vector<1xf32> to vector<1x1xf32>
    %c1_21 = arith.constant 1 : index
    %c0_22 = arith.constant 0 : index
    %c0_23 = arith.constant 0 : index
    %c0_24 = arith.constant 0 : index
    %81 = vector.load %arg6[%c1_21, %c0_22, %c0_23, %c0_24] : memref<4x2x96x96xf32, #tpu.memory_space<vmem>>, vector<1x1x96x96xf32>
    %82 = vector.shape_cast %81 : vector<1x1x96x96xf32> to vector<96x96xf32>
    %83 = arith.mulf %64, %82 : vector<96x96xf32>
    %c1_25 = arith.constant 1 : index
    %c1_26 = arith.constant 1 : index
    %c0_27 = arith.constant 0 : index
    %c0_28 = arith.constant 0 : index
    %84 = vector.load %arg6[%c1_25, %c1_26, %c0_27, %c0_28] : memref<4x2x96x96xf32, #tpu.memory_space<vmem>>, vector<1x1x96x96xf32>
    %85 = vector.shape_cast %84 : vector<1x1x96x96xf32> to vector<96x96xf32>
    %86 = arith.mulf %69, %85 : vector<96x96xf32>
    %87 = arith.addf %83, %86 : vector<96x96xf32>
    %cst_29 = arith.constant dense<0.000000e+00> : vector<96xf32>
    %88 = vector.multi_reduction <add>, %87, %cst_29 [1] : vector<96x96xf32> to vector<96xf32>
    %89 = vector.shape_cast %88 : vector<96xf32> to vector<96x1xf32>
    %cst_30 = arith.constant dense<0.000000e+00> : vector<1xf32>
    %90 = vector.multi_reduction <add>, %89, %cst_30 [0] : vector<96x1xf32> to vector<1xf32>
    %91 = vector.shape_cast %90 : vector<1xf32> to vector<1x1xf32>
    %c2 = arith.constant 2 : index
    %c0_31 = arith.constant 0 : index
    %c0_32 = arith.constant 0 : index
    %c0_33 = arith.constant 0 : index
    %92 = vector.load %arg6[%c2, %c0_31, %c0_32, %c0_33] : memref<4x2x96x96xf32, #tpu.memory_space<vmem>>, vector<1x1x96x96xf32>
    %93 = vector.shape_cast %92 : vector<1x1x96x96xf32> to vector<96x96xf32>
    %94 = arith.mulf %64, %93 : vector<96x96xf32>
    %c2_34 = arith.constant 2 : index
    %c1_35 = arith.constant 1 : index
    %c0_36 = arith.constant 0 : index
    %c0_37 = arith.constant 0 : index
    %95 = vector.load %arg6[%c2_34, %c1_35, %c0_36, %c0_37] : memref<4x2x96x96xf32, #tpu.memory_space<vmem>>, vector<1x1x96x96xf32>
    %96 = vector.shape_cast %95 : vector<1x1x96x96xf32> to vector<96x96xf32>
    %97 = arith.mulf %69, %96 : vector<96x96xf32>
    %98 = arith.addf %94, %97 : vector<96x96xf32>
    %cst_38 = arith.constant dense<0.000000e+00> : vector<96xf32>
    %99 = vector.multi_reduction <add>, %98, %cst_38 [1] : vector<96x96xf32> to vector<96xf32>
    %100 = vector.shape_cast %99 : vector<96xf32> to vector<96x1xf32>
    %cst_39 = arith.constant dense<0.000000e+00> : vector<1xf32>
    %101 = vector.multi_reduction <add>, %100, %cst_39 [0] : vector<96x1xf32> to vector<1xf32>
    %102 = vector.shape_cast %101 : vector<1xf32> to vector<1x1xf32>
    %c3 = arith.constant 3 : index
    %c0_40 = arith.constant 0 : index
    %c0_41 = arith.constant 0 : index
    %c0_42 = arith.constant 0 : index
    %103 = vector.load %arg6[%c3, %c0_40, %c0_41, %c0_42] : memref<4x2x96x96xf32, #tpu.memory_space<vmem>>, vector<1x1x96x96xf32>
    %104 = vector.shape_cast %103 : vector<1x1x96x96xf32> to vector<96x96xf32>
    %105 = arith.mulf %64, %104 : vector<96x96xf32>
    %c3_43 = arith.constant 3 : index
    %c1_44 = arith.constant 1 : index
    %c0_45 = arith.constant 0 : index
    %c0_46 = arith.constant 0 : index
    %106 = vector.load %arg6[%c3_43, %c1_44, %c0_45, %c0_46] : memref<4x2x96x96xf32, #tpu.memory_space<vmem>>, vector<1x1x96x96xf32>
    %107 = vector.shape_cast %106 : vector<1x1x96x96xf32> to vector<96x96xf32>
    %108 = arith.mulf %69, %107 : vector<96x96xf32>
    %109 = arith.addf %105, %108 : vector<96x96xf32>
    %cst_47 = arith.constant dense<0.000000e+00> : vector<96xf32>
    %110 = vector.multi_reduction <add>, %109, %cst_47 [1] : vector<96x96xf32> to vector<96xf32>
    %111 = vector.shape_cast %110 : vector<96xf32> to vector<96x1xf32>
    %cst_48 = arith.constant dense<0.000000e+00> : vector<1xf32>
    %112 = vector.multi_reduction <add>, %111, %cst_48 [0] : vector<96x1xf32> to vector<1xf32>
    %113 = vector.shape_cast %112 : vector<1xf32> to vector<1x1xf32>
    %114 = tpu.concatenate %80, %91, %102, %113 in 1 : vector<1x1xf32>, vector<1x1xf32>, vector<1x1xf32>, vector<1x1xf32> -> vector<1x4xf32>
    %c0_49 = arith.constant 0 : index
    %c0_50 = arith.constant 0 : index
    %115 = vector.load %arg7[%c0_49, %c0_50] : memref<1x4xf32, #tpu.memory_space<vmem>>, vector<1x4xf32>
    %116 = arith.addf %114, %115 : vector<1x4xf32>
    %117 = vector.shape_cast %116 : vector<1x4xf32> to vector<1x1x4xf32>
    %c0_51 = arith.constant 0 : index
    %c0_52 = arith.constant 0 : index
    %c0_53 = arith.constant 0 : index
    %118 = vector.load %arg8[%c0_51, %c0_52, %c0_53] : memref<1x1x4xf32, #tpu.memory_space<vmem>>, vector<1x1x4xf32>
    tpu.vector_store %arg8[%c0_51, %c0_52, %c0_53], %117 {strides = array<i32>} : memref<1x1x4xf32, #tpu.memory_space<vmem>>, vector<1x1x4xf32>,
    return
  }
  func.func @transform_0(%arg0: i32) -> (i32, i32, i32, i32) {
    %c0_i32 = arith.constant 0 : i32
    %c0_i32_0 = arith.constant 0 : i32
    %c0_i32_1 = arith.constant 0 : i32
    %c0_i32_2 = arith.constant 0 : i32
    return %arg0, %c0_i32, %c0_i32_0, %c0_i32_1 : i32, i32, i32, i32
  }
  func.func @transform_1(%arg0: i32) -> i32 {
    %c0_i32 = arith.constant 0 : i32
    %c0_i32_0 = arith.constant 0 : i32
    return %c0_i32 : i32
  }
  func.func @transform_2(%arg0: i32) -> i32 {
    %c0_i32 = arith.constant 0 : i32
    %c0_i32_0 = arith.constant 0 : i32
    return %c0_i32 : i32
  }
  func.func @transform_3(%arg0: i32) -> i32 {
    %c0_i32 = arith.constant 0 : i32
    %c0_i32_0 = arith.constant 0 : i32
    return %c0_i32 : i32
  }
  func.func @transform_4(%arg0: i32) -> i32 {
    %c0_i32 = arith.constant 0 : i32
    %c0_i32_0 = arith.constant 0 : i32
    return %c0_i32 : i32
  }
  func.func @transform_5(%arg0: i32) -> (i32, i32, i32, i32) {
    %c0_i32 = arith.constant 0 : i32
    %c0_i32_0 = arith.constant 0 : i32
    %c0_i32_1 = arith.constant 0 : i32
    %c0_i32_2 = arith.constant 0 : i32
    %c0_i32_3 = arith.constant 0 : i32
    return %c0_i32, %c0_i32_0, %c0_i32_1, %c0_i32_2 : i32, i32, i32, i32
  }
  func.func @transform_6(%arg0: i32) -> (i32, i32) {
    %c0_i32 = arith.constant 0 : i32
    %c0_i32_0 = arith.constant 0 : i32
    %c0_i32_1 = arith.constant 0 : i32
    return %c0_i32, %c0_i32_0 : i32, i32
  }
  func.func @transform_7(%arg0: i32) -> (i32, i32, i32) {
    %c0_i32 = arith.constant 0 : i32
    %c0_i32_0 = arith.constant 0 : i32
    %c0_i32_1 = arith.constant 0 : i32
    return %arg0, %c0_i32, %c0_i32_0 : i32, i32, i32
  }
}

</mosaic_0001>

<llo_original>
// kernel: cnn_model_forward.1
$region0: #{cnn_model_forward.1}
  #allocation0 [shape = 'u32[]', space=smem, size = 0x4, offset = 0x4, fixed_abs, tag = 'smem constant byte address 0x4 - core index']
  #allocation1 [shape = 'u32[144,128]{1,0:T(1,128)}', space=vmem, size = 0x12000, scoped, tag = 'internal scratch']
  #allocation2 [shape = 'f32[20,98,98]{2,1,0:T(8,128)}', space=vmem, size = 0x104000, scoped, tag = 'scratch operand']
  %s0 = inlined_call_operand.vmem [shape: f32[2,3,100,100], index: 0, kind: input, shape index: {}]
  %s1 = inlined_call_operand.vmem [shape: f32[540], index: 1, kind: input, shape index: {}]
  %s2 = inlined_call_operand.vmem [shape: f32[20], index: 2, kind: input, shape index: {}]
  %s3 = inlined_call_operand.vmem [shape: f32[360], index: 3, kind: input, shape index: {}]
  %s4 = inlined_call_operand.vmem [shape: f32[2], index: 4, kind: input, shape index: {}]
  %s5 = inlined_call_operand.vmem [shape: f32[4,2,96,96], index: 5, kind: input, shape index: {}]
  %s6 = inlined_call_operand.vmem [shape: f32[1,4], index: 6, kind: input, shape index: {}]
  %s7 = inlined_call_operand.hbm [shape: f32[2,1,4], index: 7, kind: output, shape index: {}]
  %s8 = sld [smem:[#allocation0]]
  $region91: #{cnn_model_forward.1} parent=0
    _
  %s10 = ssub.s32 1, %s8
  %s11 = scalar_select 0, %s10, %s8
  $region1: #{cnn_model_forward.1} parent=0
    #allocation3 [shape = 'u8[2560]{0}', space=smem, size = 0xa00, scoped, tag = 'input window, operand 1, single buffered']
    #allocation4 [shape = 's32[2]{0}', space=sflag, size = 0x8, scoped, tag = 'scoped memory for cnn_model_forward.1']
    #allocation5 [shape = 's32[2]{0}', space=sflag, size = 0x8, scoped, tag = 'scoped memory for cnn_model_forward.1']
    #allocation6 [shape = 'u8[512]{0}', space=smem, size = 0x200, scoped, tag = 'input window, operand 2, single buffered']
    #allocation7 [shape = 's32[1]{0}', space=sflag, size = 0x4, scoped, tag = 'scoped memory for cnn_model_forward.1']
    #allocation8 [shape = 'u8[1536]{0}', space=smem, size = 0x600, scoped, tag = 'input window, operand 3, single buffered']
    #allocation9 [shape = 'u8[512]{0}', space=smem, size = 0x200, scoped, tag = 'input window, operand 4, single buffered']
    #allocation10 [shape = 's32[1]{0}', space=sflag, size = 0x4, scoped, tag = 'scoped memory for cnn_model_forward.1']
    #allocation11 [shape = 'u8[1024]{0}', space=vmem, size = 0x400, scoped, tag = 'output window, operand 0']
    %12 = vsyncpa [#allocation5], 0
    %13 = vsyncpa [#allocation7], 0
    %14 = vsyncpa [#allocation10], 0
    %15 = vsyncpa [#allocation4], 0
    %s16 = scalar_lea.sflag [#allocation4], 1
    %17 = vsyncpa %s16, 0
    loop: start=0, step=1, limit=4
    $region2: #{cnn_model_forward.1} parent=1 // loop_pre_header
      _
    $region3: #{cnn_model_forward.1} parent=1 // loop_header
      %s19 = sphi 0, %s23
      %p20 = scmp.ge.s32.totalorder %s19, 4
      %s29 = sphi 0, %s31
      %s32 = sphi 0, %s29
      %s33 = sphi 0, %s32
      %s49 = sphi 0, %s33
      %s53 = sphi 0, %s53
      %s55 = sphi 0, %s53
      %s56 = sphi 0, %s55
      %s70 = sphi 0, %s56
      %s74 = sphi 0, %s74
      %s76 = sphi 0, %s74
      %s77 = sphi 0, %s76
      %s91 = sphi 0, %s77
      %s95 = sphi 0, %s95
      %s97 = sphi 0, %s95
      %s98 = sphi 0, %s97
      %s112 = sphi 0, %s98
      %s116 = sphi 0, %s116
      %s118 = sphi 0, %s116
      %s119 = sphi 0, %s118
      %s133 = sphi 0, %s119
      %s137 = sphi 0, %s137
      %s139 = sphi 0, %s137
      %s140 = sphi 0, %s139
      %s154 = sphi 0, %s140
      %s158 = sphi 0, %s158
      %s160 = sphi 0, %s158
      %s161 = sphi 0, %s160
      %s175 = sphi 0, %s161
      %s181 = sphi 0, %s183
      %s184 = sphi 0, %s181
      %s185 = sphi 0, %s184
      %s201 = sphi 0, %s185
    $region4: #{cnn_model_forward.1} parent=1 // loop_header_branch
      %22 = sbr.rel (%p20) target = $region8
    $region5: #{cnn_model_forward.1} parent=1 // loop_body
      %s24 = ssub.s32 %s19, 1
      %s25 = ssub.s32 %s19, 2
      %s26 = sadd.s32 %s19, 1
      %s27 = ssub.s32 %s19, %s26
      %p28 = scmp.eq.s32.totalorder %s27, 0
      %s30 = sadd.s32 %s29, 1
      %s31 = scalar_select %p28, %s29, %s30
      %p34 = pneg %p28
      %p35 = scmp.eq.s32.totalorder %s19, 1
      %p36 = por %p34, %p35
      %p37 = scmp.ne.s32.totalorder %s29, %s32
      %p38 = scmp.eq.s32.totalorder %s19, 0
      %p39 = por %p37, %p38
      %p40 = scmp.ne.s32.totalorder %s29, %s32
      %p41 = scmp.eq.s32.totalorder %s24, 1
      %p42 = por %p40, %p41
      %p43 = scmp.ne.s32.totalorder %s32, %s33
      %p44 = scmp.eq.s32.totalorder %s24, 0
      %p45 = por %p43, %p44
      %p46 = scmp.ne.s32.totalorder %s32, %s33
      %p47 = scmp.eq.s32.totalorder %s25, 1
      %p48 = por %p46, %p47
      %p50 = scmp.ne.s32.totalorder %s33, %s49
      %p51 = scmp.eq.s32.totalorder %s25, 0
      %p52 = por %p50, %p51
      %s54 = sadd.s32 %s53, 1
      %p57 = scmp.eq.s32.totalorder %s19, 1
      %p58 = scmp.ne.s32.totalorder %s53, %s55
      %p59 = scmp.eq.s32.totalorder %s19, 0
      %p60 = por %p58, %p59
      %p61 = scmp.ne.s32.totalorder %s53, %s55
      %p62 = scmp.eq.s32.totalorder %s24, 1
      %p63 = por %p61, %p62
      %p64 = scmp.ne.s32.totalorder %s55, %s56
      %p65 = scmp.eq.s32.totalorder %s24, 0
      %p66 = por %p64, %p65
      %p67 = scmp.ne.s32.totalorder %s55, %s56
      %p68 = scmp.eq.s32.totalorder %s25, 1
      %p69 = por %p67, %p68
      %p71 = scmp.ne.s32.totalorder %s56, %s70
      %p72 = scmp.eq.s32.totalorder %s25, 0
      %p73 = por %p71, %p72
      %s75 = sadd.s32 %s74, 1
      %p78 = scmp.eq.s32.totalorder %s19, 1
      %p79 = scmp.ne.s32.totalorder %s74, %s76
      %p80 = scmp.eq.s32.totalorder %s19, 0
      %p81 = por %p79, %p80
      %p82 = scmp.ne.s32.totalorder %s74, %s76
      %p83 = scmp.eq.s32.totalorder %s24, 1
      %p84 = por %p82, %p83
      %p85 = scmp.ne.s32.totalorder %s76, %s77
      %p86 = scmp.eq.s32.totalorder %s24, 0
      %p87 = por %p85, %p86
      %p88 = scmp.ne.s32.totalorder %s76, %s77
      %p89 = scmp.eq.s32.totalorder %s25, 1
      %p90 = por %p88, %p89
      %p92 = scmp.ne.s32.totalorder %s77, %s91
      %p93 = scmp.eq.s32.totalorder %s25, 0
      %p94 = por %p92, %p93
      %s96 = sadd.s32 %s95, 1
      %p99 = scmp.eq.s32.totalorder %s19, 1
      %p100 = scmp.ne.s32.totalorder %s95, %s97
      %p101 = scmp.eq.s32.totalorder %s19, 0
      %p102 = por %p100, %p101
      %p103 = scmp.ne.s32.totalorder %s95, %s97
      %p104 = scmp.eq.s32.totalorder %s24, 1
      %p105 = por %p103, %p104
      %p106 = scmp.ne.s32.totalorder %s97, %s98
      %p107 = scmp.eq.s32.totalorder %s24, 0
      %p108 = por %p106, %p107
      %p109 = scmp.ne.s32.totalorder %s97, %s98
      %p110 = scmp.eq.s32.totalorder %s25, 1
      %p111 = por %p109, %p110
      %p113 = scmp.ne.s32.totalorder %s98, %s112
      %p114 = scmp.eq.s32.totalorder %s25, 0
      %p115 = por %p113, %p114
      %s117 = sadd.s32 %s116, 1
      %p120 = scmp.eq.s32.totalorder %s19, 1
      %p121 = scmp.ne.s32.totalorder %s116, %s118
      %p122 = scmp.eq.s32.totalorder %s19, 0
      %p123 = por %p121, %p122
      %p124 = scmp.ne.s32.totalorder %s116, %s118
      %p125 = scmp.eq.s32.totalorder %s24, 1
      %p126 = por %p124, %p125
      %p127 = scmp.ne.s32.totalorder %s118, %s119
      %p128 = scmp.eq.s32.totalorder %s24, 0
      %p129 = por %p127, %p128
      %p130 = scmp.ne.s32.totalorder %s118, %s119
      %p131 = scmp.eq.s32.totalorder %s25, 1
      %p132 = por %p130, %p131
      %p134 = scmp.ne.s32.totalorder %s119, %s133
      %p135 = scmp.eq.s32.totalorder %s25, 0
      %p136 = por %p134, %p135
      %s138 = sadd.s32 %s137, 1
      %p141 = scmp.eq.s32.totalorder %s19, 1
      %p142 = scmp.ne.s32.totalorder %s137, %s139
      %p143 = scmp.eq.s32.totalorder %s19, 0
      %p144 = por %p142, %p143
      %p145 = scmp.ne.s32.totalorder %s137, %s139
      %p146 = scmp.eq.s32.totalorder %s24, 1
      %p147 = por %p145, %p146
      %p148 = scmp.ne.s32.totalorder %s139, %s140
      %p149 = scmp.eq.s32.totalorder %s24, 0
      %p150 = por %p148, %p149
      %p151 = scmp.ne.s32.totalorder %s139, %s140
      %p152 = scmp.eq.s32.totalorder %s25, 1
      %p153 = por %p151, %p152
      %p155 = scmp.ne.s32.totalorder %s140, %s154
      %p156 = scmp.eq.s32.totalorder %s25, 0
      %p157 = por %p155, %p156
      %s159 = sadd.s32 %s158, 1
      %p162 = scmp.eq.s32.totalorder %s19, 1
      %p163 = scmp.ne.s32.totalorder %s158, %s160
      %p164 = scmp.eq.s32.totalorder %s19, 0
      %p165 = por %p163, %p164
      %p166 = scmp.ne.s32.totalorder %s158, %s160
      %p167 = scmp.eq.s32.totalorder %s24, 1
      %p168 = por %p166, %p167
      %p169 = scmp.ne.s32.totalorder %s160, %s161
      %p170 = scmp.eq.s32.totalorder %s24, 0
      %p171 = por %p169, %p170
      %p172 = scmp.ne.s32.totalorder %s160, %s161
      %p173 = scmp.eq.s32.totalorder %s25, 1
      %p174 = por %p172, %p173
      %p176 = scmp.ne.s32.totalorder %s161, %s175
      %p177 = scmp.eq.s32.totalorder %s25, 0
      %p178 = por %p176, %p177
      %s179 = ssub.s32 %s19, %s26
      %p180 = scmp.eq.s32.totalorder %s179, 0
      %s182 = sadd.s32 %s181, 1
      %s183 = scalar_select %p180, %s181, %s182
      %p186 = pneg %p180
      %p187 = scmp.eq.s32.totalorder %s19, 1
      %p188 = por %p186, %p187
      %p189 = scmp.ne.s32.totalorder %s181, %s184
      %p190 = scmp.eq.s32.totalorder %s19, 0
      %p191 = por %p189, %p190
      %p192 = scmp.ne.s32.totalorder %s181, %s184
      %p193 = scmp.eq.s32.totalorder %s24, 1
      %p194 = por %p192, %p193
      %p195 = scmp.ne.s32.totalorder %s184, %s185
      %p196 = scmp.eq.s32.totalorder %s24, 0
      %p197 = por %p195, %p196
      %p198 = scmp.ne.s32.totalorder %s184, %s185
      %p199 = scmp.eq.s32.totalorder %s25, 1
      %p200 = por %p198, %p199
      %p202 = scmp.ne.s32.totalorder %s185, %s201
      %p203 = scmp.eq.s32.totalorder %s25, 0
      %p204 = por %p202, %p203
      %p205 = scmp.le.s32.totalorder 1, %s19
      %p206 = scmp.lt.s32.totalorder %s19, 3
      %p207 = pnand %p205, %p206
      %p208 = pneg %p207
      // Predicated region
      $region9: #{cnn_model_forward.1} parent=5 // pred_check
        _
      $region10: #{cnn_model_forward.1} parent=5 // pred_check_branch
        %210 = sbr.rel (%p207) target = $region12
      $region11: #{cnn_model_forward.1} parent=5 // pred_region
        %s211 = ssub.s32 %s19, 1
        // Predicated region
        $region13: #{cnn_model_forward.1} parent=11 // pred_check
          %p212 = pneg %p66
        $region14: #{cnn_model_forward.1} parent=11 // pred_check_branch
          %214 = sbr.rel (%p212) target = $region16
        $region15: #{cnn_model_forward.1} parent=11 // pred_region
          %s216 = ssub.s32 80, 80
          %217 = vsyncadd [#allocation5], %s216
          %s219 = sshll.u32 %s1, 4
          %s220 = int_to_ptr.vmem [resolvable:$true] %s219
          %222 = dma.vmem_to_smem %s220, 80, [#allocation3], [#allocation5]
        $region16: #{cnn_model_forward.1} parent=11 // pred_fallthru
          _
        // Predicated region
        $region17: #{cnn_model_forward.1} parent=11 // pred_check
          %p223 = pneg %p87
        $region18: #{cnn_model_forward.1} parent=11 // pred_check_branch
          %225 = sbr.rel (%p223) target = $region20
        $region19: #{cnn_model_forward.1} parent=11 // pred_region
          %s227 = ssub.s32 16, 16
          %228 = vsyncadd [#allocation7], %s227
          %s230 = sshll.u32 %s2, 4
          %s231 = int_to_ptr.vmem [resolvable:$true] %s230
          %233 = dma.vmem_to_smem %s231, 16, [#allocation6], [#allocation7]
        $region20: #{cnn_model_forward.1} parent=11 // pred_fallthru
          _
        // Predicated region
        $region21: #{cnn_model_forward.1} parent=11 // pred_check
          %p234 = pneg %p108
        $region22: #{cnn_model_forward.1} parent=11 // pred_check_branch
          %236 = sbr.rel (%p234) target = $region24
        $region23: #{cnn_model_forward.1} parent=11 // pred_region
          %s238 = ssub.s32 48, 48
          %239 = vsyncadd [#allocation7], %s238
          %s241 = sshll.u32 %s3, 4
          %s242 = int_to_ptr.vmem [resolvable:$true] %s241
          %244 = dma.vmem_to_smem %s242, 48, [#allocation8], [#allocation7]
        $region24: #{cnn_model_forward.1} parent=11 // pred_fallthru
          _
        // Predicated region
        $region25: #{cnn_model_forward.1} parent=11 // pred_check
          %p245 = pneg %p129
        $region26: #{cnn_model_forward.1} parent=11 // pred_check_branch
          %247 = sbr.rel (%p245) target = $region28
        $region27: #{cnn_model_forward.1} parent=11 // pred_region
          %s249 = ssub.s32 16, 16
          %250 = vsyncadd [#allocation10], %s249
          %s252 = sshll.u32 %s4, 4
          %s253 = int_to_ptr.vmem [resolvable:$true] %s252
          %255 = dma.vmem_to_smem %s253, 16, [#allocation9], [#allocation10]
        $region28: #{cnn_model_forward.1} parent=11 // pred_fallthru
          _
        // Predicated region
        $region29: #{cnn_model_forward.1} parent=11 // pred_check
          %p256 = pneg %p150
        $region30: #{cnn_model_forward.1} parent=11 // pred_check_branch
          %258 = sbr.rel (%p256) target = $region32
        $region31: #{cnn_model_forward.1} parent=11 // pred_region
          _
        $region32: #{cnn_model_forward.1} parent=11 // pred_fallthru
          _
        // Predicated region
        $region33: #{cnn_model_forward.1} parent=11 // pred_check
          %p259 = pneg %p171
        $region34: #{cnn_model_forward.1} parent=11 // pred_check_branch
          %261 = sbr.rel (%p259) target = $region36
        $region35: #{cnn_model_forward.1} parent=11 // pred_region
          _
        $region36: #{cnn_model_forward.1} parent=11 // pred_fallthru
          _
      $region12: #{cnn_model_forward.1} parent=5 // pred_fallthru
        _
      %p262 = scmp.lt.s32.totalorder %s19, 2
      // Predicated region
      $region37: #{cnn_model_forward.1} parent=5 // pred_check
        %p263 = pneg %p262
      $region38: #{cnn_model_forward.1} parent=5 // pred_check_branch
        %265 = sbr.rel (%p263) target = $region40
      $region39: #{cnn_model_forward.1} parent=5 // pred_region
        // Predicated region
        $region41: #{cnn_model_forward.1} parent=39 // pred_check
          %p266 = pneg %p39
        $region42: #{cnn_model_forward.1} parent=39 // pred_check_branch
          %268 = sbr.rel (%p266) target = $region44
        $region43: #{cnn_model_forward.1} parent=39 // pred_region
          %p269 = scmp.lt.s32.totalorder %s19, 1
          %s270 = scalar_select %p269, %s19, 1
          %s271 = smul.addr %s270, 39
          %s272 = smul.addr %s271, 8
          %s273 = scalar_lea.vmem %s0, %s272
        $region44: #{cnn_model_forward.1} parent=39 // pred_fallthru
          _
      $region40: #{cnn_model_forward.1} parent=5 // pred_fallthru
        _
      %p274 = scmp.le.s32.totalorder 1, %s19
      %p275 = scmp.lt.s32.totalorder %s19, 3
      %p276 = pnand %p274, %p275
      %p277 = pneg %p276
      // Predicated region
      $region45: #{cnn_model_forward.1} parent=5 // pred_check
        _
      $region46: #{cnn_model_forward.1} parent=5 // pred_check_branch
        %279 = sbr.rel (%p276) target = $region48
      $region47: #{cnn_model_forward.1} parent=5 // pred_region
        %s280 = ssub.s32 %s19, 1
        // Predicated region
        $region49: #{cnn_model_forward.1} parent=47 // pred_check
          %p281 = pneg %p66
        $region50: #{cnn_model_forward.1} parent=47 // pred_check_branch
          %283 = sbr.rel (%p281) target = $region52
        $region51: #{cnn_model_forward.1} parent=47 // pred_region
          %284 = dma.done [#allocation5], 80
        $region52: #{cnn_model_forward.1} parent=47 // pred_fallthru
          _
        // Predicated region
        $region53: #{cnn_model_forward.1} parent=47 // pred_check
          %p285 = pneg %p87
        $region54: #{cnn_model_forward.1} parent=47 // pred_check_branch
          %287 = sbr.rel (%p285) target = $region56
        $region55: #{cnn_model_forward.1} parent=47 // pred_region
          %288 = dma.done [#allocation7], 16
        $region56: #{cnn_model_forward.1} parent=47 // pred_fallthru
          _
        // Predicated region
        $region57: #{cnn_model_forward.1} parent=47 // pred_check
          %p289 = pneg %p108
        $region58: #{cnn_model_forward.1} parent=47 // pred_check_branch
          %291 = sbr.rel (%p289) target = $region60
        $region59: #{cnn_model_forward.1} parent=47 // pred_region
          %292 = dma.done [#allocation7], 48
        $region60: #{cnn_model_forward.1} parent=47 // pred_fallthru
          _
        // Predicated region
        $region61: #{cnn_model_forward.1} parent=47 // pred_check
          %p293 = pneg %p129
        $region62: #{cnn_model_forward.1} parent=47 // pred_check_branch
          %295 = sbr.rel (%p293) target = $region64
        $region63: #{cnn_model_forward.1} parent=47 // pred_region
          %296 = dma.done [#allocation10], 16
        $region64: #{cnn_model_forward.1} parent=47 // pred_fallthru
          _
        %297 = sfence
        %p298 = scmp.lt.s32.totalorder %s24, 1
        %s299 = scalar_select %p298, %s24, 1
        %s300 = smul.addr %s299, 39
        %s301 = smul.addr %s300, 8
        %s302 = scalar_lea.vmem %s0, %s301
        %p303 = pneg %p45
        %p304 = pneg %p42
        %p305 = pneg %p66
        %p306 = pneg %p63
        %p307 = pneg %p87
        %p308 = pneg %p84
        %p309 = pneg %p108
        %p310 = pneg %p105
        %p311 = pneg %p129
        %p312 = pneg %p126
        %p313 = pneg %p150
        %p314 = pneg %p147
        %p315 = pneg %p171
        %p316 = pneg %p168
        %p317 = pneg %p197
        %p318 = pneg %p194
        %s319 = sand.u32 %s184, 1
        %s320 = scalar_lea.sflag [#allocation4], %s319
        %s321 = sand.u32 %s184, 1
        %s322 = scalar_lea.vmem [#allocation11], %s321
        %p323 = scmp.lt.s32.totalorder %s24, 1
        %s324 = scalar_select %p323, %s24, 1
        %s325 = smul.addr %s324, 39
        %s326 = smul.addr %s325, 8
        %s327 = scalar_lea.vmem %s0, %s326
        %v328 = vld [vmem:[%s327] sm:$0xff]
        %v329 = vld [vmem:[%s327 + $0x8] sm:$0xff]
        %v330 = vld [vmem:[%s327 + $0x10] sm:$0xff]
        %v331 = vld [vmem:[%s327 + $0x18] sm:$0xff]
        %v332 = vld [vmem:[%s327 + $0x20] sm:$0xff]
        %v333 = vld [vmem:[%s327 + $0x28] sm:$0xff]
        %v334 = vld [vmem:[%s327 + $0x30] sm:$0xff]
        %v335 = vld [vmem:[%s327 + $0x38] sm:$0xff]
        %v336 = vld [vmem:[%s327 + $0x40] sm:$0xff]
        %v337 = vld [vmem:[%s327 + $0x48] sm:$0xff]
        %v338 = vld [vmem:[%s327 + $0x50] sm:$0xff]
        %v339 = vld [vmem:[%s327 + $0x58] sm:$0xff]
        %v340 = vld [vmem:[%s327 + $0x60] sm:$0xf]
        %v341 = vld [vmem:[%s327 + $0x68] sm:$0xff]
        %v342 = vld [vmem:[%s327 + $0x70] sm:$0xff]
        %v343 = vld [vmem:[%s327 + $0x78] sm:$0xff]
        %v344 = vld [vmem:[%s327 + $0x80] sm:$0xff]
        %v345 = vld [vmem:[%s327 + $0x88] sm:$0xff]
        %v346 = vld [vmem:[%s327 + $0x90] sm:$0xff]
        %v347 = vld [vmem:[%s327 + $0x98] sm:$0xff]
        %v348 = vld [vmem:[%s327 + $0xa0] sm:$0xff]
        %v349 = vld [vmem:[%s327 + $0xa8] sm:$0xff]
        %v350 = vld [vmem:[%s327 + $0xb0] sm:$0xff]
        %v351 = vld [vmem:[%s327 + $0xb8] sm:$0xff]
        %v352 = vld [vmem:[%s327 + $0xc0] sm:$0xff]
        %v353 = vld [vmem:[%s327 + $0xc8] sm:$0xf]
        %v354 = vld [vmem:[%s327 + $0xd0] sm:$0xff]
        %v355 = vld [vmem:[%s327 + $0xd8] sm:$0xff]
        %v356 = vld [vmem:[%s327 + $0xe0] sm:$0xff]
        %v357 = vld [vmem:[%s327 + $0xe8] sm:$0xff]
        %v358 = vld [vmem:[%s327 + $0xf0] sm:$0xff]
        %v359 = vld [vmem:[%s327 + $0xf8] sm:$0xff]
        %v360 = vld [vmem:[%s327 + $0x100] sm:$0xff]
        %v361 = vld [vmem:[%s327 + $0x108] sm:$0xff]
        %v362 = vld [vmem:[%s327 + $0x110] sm:$0xff]
        %v363 = vld [vmem:[%s327 + $0x118] sm:$0xff]
        %v364 = vld [vmem:[%s327 + $0x120] sm:$0xff]
        %v365 = vld [vmem:[%s327 + $0x128] sm:$0xff]
        %v366 = vld [vmem:[%s327 + $0x130] sm:$0xf]
        loop: start=0, step=1, limit=20
        $region65: #{cnn_model_forward.1} parent=47 // loop_pre_header
          _
        $region66: #{cnn_model_forward.1} parent=47 // loop_header
          %s368 = sphi 0, %s372
          %p369 = scmp.ge.s32.totalorder %s368, 20
        $region67: #{cnn_model_forward.1} parent=47 // loop_header_branch
          %371 = sbr.rel (%p369) target = $region71
        $region68: #{cnn_model_forward.1} parent=47 // loop_body
          %s373 = smul.u32 %s368, 27
          %s374 = sld [smem:[#allocation3 + %s373]]
          %v375 = vstv %s374
          %v376 = vmul.f32 %v375, %v328
          %v377 = vmul.f32 %v375, %v329
          %v378 = vmul.f32 %v375, %v330
          %v379 = vmul.f32 %v375, %v331
          %v380 = vmul.f32 %v375, %v332
          %v381 = vmul.f32 %v375, %v333
          %v382 = vmul.f32 %v375, %v334
          %v383 = vmul.f32 %v375, %v335
          %v384 = vmul.f32 %v375, %v336
          %v385 = vmul.f32 %v375, %v337
          %v386 = vmul.f32 %v375, %v338
          %v387 = vmul.f32 %v375, %v339
          %v388 = vmul.f32 %v375, %v340
          %v389 = vadd.f32 %v376, 0.0
          %v390 = vadd.f32 %v377, 0.0
          %v391 = vadd.f32 %v378, 0.0
          %v392 = vadd.f32 %v379, 0.0
          %v393 = vadd.f32 %v380, 0.0
          %v394 = vadd.f32 %v381, 0.0
          %v395 = vadd.f32 %v382, 0.0
          %v396 = vadd.f32 %v383, 0.0
          %v397 = vadd.f32 %v384, 0.0
          %v398 = vadd.f32 %v385, 0.0
          %v399 = vadd.f32 %v386, 0.0
          %v400 = vadd.f32 %v387, 0.0
          %v401 = vadd.f32 %v388, 0.0
          %s402 = sadd.s32 %s373, 1
          %s403 = sld [smem:[#allocation3 + %s402]]
          %v404 = vstv %s403
          %v405 = vmul.f32 %v404, %v328
          %v406 = vmul.f32 %v404, %v329
          %v407 = vmul.f32 %v404, %v330
          %v408 = vmul.f32 %v404, %v331
          %v409 = vmul.f32 %v404, %v332
          %v410 = vmul.f32 %v404, %v333
          %v411 = vmul.f32 %v404, %v334
          %v412 = vmul.f32 %v404, %v335
          %v413 = vmul.f32 %v404, %v336
          %v414 = vmul.f32 %v404, %v337
          %v415 = vmul.f32 %v404, %v338
          %v416 = vmul.f32 %v404, %v339
          %v417 = vmul.f32 %v404, %v340
          %431 = vrot.lane.b32.xlu0 %v405, 127
          %v432 = vpop.permute.xlu0 %431
          %433 = vrot.lane.b32.xlu0 %v406, 127
          %v434 = vpop.permute.xlu0 %433
          %435 = vrot.lane.b32.xlu0 %v407, 127
          %v436 = vpop.permute.xlu0 %435
          %437 = vrot.lane.b32.xlu0 %v408, 127
          %v438 = vpop.permute.xlu0 %437
          %439 = vrot.lane.b32.xlu0 %v409, 127
          %v440 = vpop.permute.xlu0 %439
          %441 = vrot.lane.b32.xlu0 %v410, 127
          %v442 = vpop.permute.xlu0 %441
          %443 = vrot.lane.b32.xlu0 %v411, 127
          %v444 = vpop.permute.xlu0 %443
          %445 = vrot.lane.b32.xlu0 %v412, 127
          %v446 = vpop.permute.xlu0 %445
          %447 = vrot.lane.b32.xlu0 %v413, 127
          %v448 = vpop.permute.xlu0 %447
          %449 = vrot.lane.b32.xlu0 %v414, 127
          %v450 = vpop.permute.xlu0 %449
          %451 = vrot.lane.b32.xlu0 %v415, 127
          %v452 = vpop.permute.xlu0 %451
          %453 = vrot.lane.b32.xlu0 %v416, 127
          %v454 = vpop.permute.xlu0 %453
          %455 = vrot.lane.b32.xlu0 %v417, 127
          %v456 = vpop.permute.xlu0 %455
          %v470 = vadd.f32 %v389, %v432
          %v471 = vadd.f32 %v390, %v434
          %v472 = vadd.f32 %v391, %v436
          %v473 = vadd.f32 %v392, %v438
          %v474 = vadd.f32 %v393, %v440
          %v475 = vadd.f32 %v394, %v442
          %v476 = vadd.f32 %v395, %v444
          %v477 = vadd.f32 %v396, %v446
          %v478 = vadd.f32 %v397, %v448
          %v479 = vadd.f32 %v398, %v450
          %v480 = vadd.f32 %v399, %v452
          %v481 = vadd.f32 %v400, %v454
          %v482 = vadd.f32 %v401, %v456
          %s483 = sadd.s32 %s373, 2
          %s484 = sld [smem:[#allocation3 + %s483]]
          %v485 = vstv %s484
          %v486 = vmul.f32 %v485, %v328
          %v487 = vmul.f32 %v485, %v329
          %v488 = vmul.f32 %v485, %v330
          %v489 = vmul.f32 %v485, %v331
          %v490 = vmul.f32 %v485, %v332
          %v491 = vmul.f32 %v485, %v333
          %v492 = vmul.f32 %v485, %v334
          %v493 = vmul.f32 %v485, %v335
          %v494 = vmul.f32 %v485, %v336
          %v495 = vmul.f32 %v485, %v337
          %v496 = vmul.f32 %v485, %v338
          %v497 = vmul.f32 %v485, %v339
          %v498 = vmul.f32 %v485, %v340
          %512 = vrot.lane.b32.xlu0 %v486, 126
          %v513 = vpop.permute.xlu0 %512
          %514 = vrot.lane.b32.xlu0 %v487, 126
          %v515 = vpop.permute.xlu0 %514
          %516 = vrot.lane.b32.xlu0 %v488, 126
          %v517 = vpop.permute.xlu0 %516
          %518 = vrot.lane.b32.xlu0 %v489, 126
          %v519 = vpop.permute.xlu0 %518
          %520 = vrot.lane.b32.xlu0 %v490, 126
          %v521 = vpop.permute.xlu0 %520
          %522 = vrot.lane.b32.xlu0 %v491, 126
          %v523 = vpop.permute.xlu0 %522
          %524 = vrot.lane.b32.xlu0 %v492, 126
          %v525 = vpop.permute.xlu0 %524
          %526 = vrot.lane.b32.xlu0 %v493, 126
          %v527 = vpop.permute.xlu0 %526
          %528 = vrot.lane.b32.xlu0 %v494, 126
          %v529 = vpop.permute.xlu0 %528
          %530 = vrot.lane.b32.xlu0 %v495, 126
          %v531 = vpop.permute.xlu0 %530
          %532 = vrot.lane.b32.xlu0 %v496, 126
          %v533 = vpop.permute.xlu0 %532
          %534 = vrot.lane.b32.xlu0 %v497, 126
          %v535 = vpop.permute.xlu0 %534
          %536 = vrot.lane.b32.xlu0 %v498, 126
          %v537 = vpop.permute.xlu0 %536
          %v551 = vadd.f32 %v470, %v513
          %v552 = vadd.f32 %v471, %v515
          %v553 = vadd.f32 %v472, %v517
          %v554 = vadd.f32 %v473, %v519
          %v555 = vadd.f32 %v474, %v521
          %v556 = vadd.f32 %v475, %v523
          %v557 = vadd.f32 %v476, %v525
          %v558 = vadd.f32 %v477, %v527
          %v559 = vadd.f32 %v478, %v529
          %v560 = vadd.f32 %v479, %v531
          %v561 = vadd.f32 %v480, %v533
          %v562 = vadd.f32 %v481, %v535
          %v563 = vadd.f32 %v482, %v537
          %s564 = sadd.s32 %s373, 3
          %s565 = sld [smem:[#allocation3 + %s564]]
          %v566 = vstv %s565
          %v567 = vmul.f32 %v566, %v328
          %v568 = vmul.f32 %v566, %v329
          %v569 = vmul.f32 %v566, %v330
          %v570 = vmul.f32 %v566, %v331
          %v571 = vmul.f32 %v566, %v332
          %v572 = vmul.f32 %v566, %v333
          %v573 = vmul.f32 %v566, %v334
          %v574 = vmul.f32 %v566, %v335
          %v575 = vmul.f32 %v566, %v336
          %v576 = vmul.f32 %v566, %v337
          %v577 = vmul.f32 %v566, %v338
          %v578 = vmul.f32 %v566, %v339
          %v579 = vmul.f32 %v566, %v340
          %vm593 = vcmask 1046528
          %v594 = vrot.slane %v567, 1
          %v595 = vrot.slane %v568, 1
          %v596 = vsel %vm593, %v594, %v595
          %v597 = vrot.slane %v569, 1
          %v598 = vsel %vm593, %v595, %v597
          %v599 = vrot.slane %v570, 1
          %v600 = vsel %vm593, %v597, %v599
          %v601 = vrot.slane %v571, 1
          %v602 = vsel %vm593, %v599, %v601
          %v603 = vrot.slane %v572, 1
          %v604 = vsel %vm593, %v601, %v603
          %v605 = vrot.slane %v573, 1
          %v606 = vsel %vm593, %v603, %v605
          %v607 = vrot.slane %v574, 1
          %v608 = vsel %vm593, %v605, %v607
          %v609 = vrot.slane %v575, 1
          %v610 = vsel %vm593, %v607, %v609
          %v611 = vrot.slane %v576, 1
          %v612 = vsel %vm593, %v609, %v611
          %v613 = vrot.slane %v577, 1
          %v614 = vsel %vm593, %v611, %v613
          %v615 = vrot.slane %v578, 1
          %v616 = vsel %vm593, %v613, %v615
          %v617 = vrot.slane %v579, 1
          %v618 = vsel %vm593, %v615, %v617
          %v632 = vadd.f32 %v551, %v596
          %v633 = vadd.f32 %v552, %v598
          %v634 = vadd.f32 %v553, %v600
          %v635 = vadd.f32 %v554, %v602
          %v636 = vadd.f32 %v555, %v604
          %v637 = vadd.f32 %v556, %v606
          %v638 = vadd.f32 %v557, %v608
          %v639 = vadd.f32 %v558, %v610
          %v640 = vadd.f32 %v559, %v612
          %v641 = vadd.f32 %v560, %v614
          %v642 = vadd.f32 %v561, %v616
          %v643 = vadd.f32 %v562, %v618
          %v644 = vadd.f32 %v563, %v617
          %s645 = sadd.s32 %s373, 4
          %s646 = sld [smem:[#allocation3 + %s645]]
          %v647 = vstv %s646
          %v648 = vmul.f32 %v647, %v328
          %v649 = vmul.f32 %v647, %v329
          %v650 = vmul.f32 %v647, %v330
          %v651 = vmul.f32 %v647, %v331
          %v652 = vmul.f32 %v647, %v332
          %v653 = vmul.f32 %v647, %v333
          %v654 = vmul.f32 %v647, %v334
          %v655 = vmul.f32 %v647, %v335
          %v656 = vmul.f32 %v647, %v336
          %v657 = vmul.f32 %v647, %v337
          %v658 = vmul.f32 %v647, %v338
          %v659 = vmul.f32 %v647, %v339
          %v660 = vmul.f32 %v647, %v340
          %v674 = vrot.slane %v648, 1
          %v675 = vrot.slane %v649, 1
          %v676 = vsel %vm593, %v674, %v675
          %v677 = vrot.slane %v650, 1
          %v678 = vsel %vm593, %v675, %v677
          %v679 = vrot.slane %v651, 1
          %v680 = vsel %vm593, %v677, %v679
          %v681 = vrot.slane %v652, 1
          %v682 = vsel %vm593, %v679, %v681
          %v683 = vrot.slane %v653, 1
          %v684 = vsel %vm593, %v681, %v683
          %v685 = vrot.slane %v654, 1
          %v686 = vsel %vm593, %v683, %v685
          %v687 = vrot.slane %v655, 1
          %v688 = vsel %vm593, %v685, %v687
          %v689 = vrot.slane %v656, 1
          %v690 = vsel %vm593, %v687, %v689
          %v691 = vrot.slane %v657, 1
          %v692 = vsel %vm593, %v689, %v691
          %v693 = vrot.slane %v658, 1
          %v694 = vsel %vm593, %v691, %v693
          %v695 = vrot.slane %v659, 1
          %v696 = vsel %vm593, %v693, %v695
          %v697 = vrot.slane %v660, 1
          %v698 = vsel %vm593, %v695, %v697
          %699 = vrot.lane.b32.xlu0 %v676, 127
          %v700 = vpop.permute.xlu0 %699
          %701 = vrot.lane.b32.xlu0 %v678, 127
          %v702 = vpop.permute.xlu0 %701
          %703 = vrot.lane.b32.xlu0 %v680, 127
          %v704 = vpop.permute.xlu0 %703
          %705 = vrot.lane.b32.xlu0 %v682, 127
          %v706 = vpop.permute.xlu0 %705
          %707 = vrot.lane.b32.xlu0 %v684, 127
          %v708 = vpop.permute.xlu0 %707
          %709 = vrot.lane.b32.xlu0 %v686, 127
          %v710 = vpop.permute.xlu0 %709
          %711 = vrot.lane.b32.xlu0 %v688, 127
          %v712 = vpop.permute.xlu0 %711
          %713 = vrot.lane.b32.xlu0 %v690, 127
          %v714 = vpop.permute.xlu0 %713
          %715 = vrot.lane.b32.xlu0 %v692, 127
          %v716 = vpop.permute.xlu0 %715
          %717 = vrot.lane.b32.xlu0 %v694, 127
          %v718 = vpop.permute.xlu0 %717
          %719 = vrot.lane.b32.xlu0 %v696, 127
          %v720 = vpop.permute.xlu0 %719
          %721 = vrot.lane.b32.xlu0 %v698, 127
          %v722 = vpop.permute.xlu0 %721
          %723 = vrot.lane.b32.xlu0 %v697, 127
          %v724 = vpop.permute.xlu0 %723
          %v738 = vadd.f32 %v632, %v700
          %v739 = vadd.f32 %v633, %v702
          %v740 = vadd.f32 %v634, %v704
          %v741 = vadd.f32 %v635, %v706
          %v742 = vadd.f32 %v636, %v708
          %v743 = vadd.f32 %v637, %v710
          %v744 = vadd.f32 %v638, %v712
          %v745 = vadd.f32 %v639, %v714
          %v746 = vadd.f32 %v640, %v716
          %v747 = vadd.f32 %v641, %v718
          %v748 = vadd.f32 %v642, %v720
          %v749 = vadd.f32 %v643, %v722
          %v750 = vadd.f32 %v644, %v724
          %s751 = sadd.s32 %s373, 5
          %s752 = sld [smem:[#allocation3 + %s751]]
          %v753 = vstv %s752
          %v754 = vmul.f32 %v753, %v328
          %v755 = vmul.f32 %v753, %v329
          %v756 = vmul.f32 %v753, %v330
          %v757 = vmul.f32 %v753, %v331
          %v758 = vmul.f32 %v753, %v332
          %v759 = vmul.f32 %v753, %v333
          %v760 = vmul.f32 %v753, %v334
          %v761 = vmul.f32 %v753, %v335
          %v762 = vmul.f32 %v753, %v336
          %v763 = vmul.f32 %v753, %v337
          %v764 = vmul.f32 %v753, %v338
          %v765 = vmul.f32 %v753, %v339
          %v766 = vmul.f32 %v753, %v340
          %v780 = vrot.slane %v754, 1
          %v781 = vrot.slane %v755, 1
          %v782 = vsel %vm593, %v780, %v781
          %v783 = vrot.slane %v756, 1
          %v784 = vsel %vm593, %v781, %v783
          %v785 = vrot.slane %v757, 1
          %v786 = vsel %vm593, %v783, %v785
          %v787 = vrot.slane %v758, 1
          %v788 = vsel %vm593, %v785, %v787
          %v789 = vrot.slane %v759, 1
          %v790 = vsel %vm593, %v787, %v789
          %v791 = vrot.slane %v760, 1
          %v792 = vsel %vm593, %v789, %v791
          %v793 = vrot.slane %v761, 1
          %v794 = vsel %vm593, %v791, %v793
          %v795 = vrot.slane %v762, 1
          %v796 = vsel %vm593, %v793, %v795
          %v797 = vrot.slane %v763, 1
          %v798 = vsel %vm593, %v795, %v797
          %v799 = vrot.slane %v764, 1
          %v800 = vsel %vm593, %v797, %v799
          %v801 = vrot.slane %v765, 1
          %v802 = vsel %vm593, %v799, %v801
          %v803 = vrot.slane %v766, 1
          %v804 = vsel %vm593, %v801, %v803
          %805 = vrot.lane.b32.xlu0 %v782, 126
          %v806 = vpop.permute.xlu0 %805
          %807 = vrot.lane.b32.xlu0 %v784, 126
          %v808 = vpop.permute.xlu0 %807
          %809 = vrot.lane.b32.xlu0 %v786, 126
          %v810 = vpop.permute.xlu0 %809
          %811 = vrot.lane.b32.xlu0 %v788, 126
          %v812 = vpop.permute.xlu0 %811
          %813 = vrot.lane.b32.xlu0 %v790, 126
          %v814 = vpop.permute.xlu0 %813
          %815 = vrot.lane.b32.xlu0 %v792, 126
          %v816 = vpop.permute.xlu0 %815
          %817 = vrot.lane.b32.xlu0 %v794, 126
          %v818 = vpop.permute.xlu0 %817
          %819 = vrot.lane.b32.xlu0 %v796, 126
          %v820 = vpop.permute.xlu0 %819
          %821 = vrot.lane.b32.xlu0 %v798, 126
          %v822 = vpop.permute.xlu0 %821
          %823 = vrot.lane.b32.xlu0 %v800, 126
          %v824 = vpop.permute.xlu0 %823
          %825 = vrot.lane.b32.xlu0 %v802, 126
          %v826 = vpop.permute.xlu0 %825
          %827 = vrot.lane.b32.xlu0 %v804, 126
          %v828 = vpop.permute.xlu0 %827
          %829 = vrot.lane.b32.xlu0 %v803, 126
          %v830 = vpop.permute.xlu0 %829
          %v844 = vadd.f32 %v738, %v806
          %v845 = vadd.f32 %v739, %v808
          %v846 = vadd.f32 %v740, %v810
          %v847 = vadd.f32 %v741, %v812
          %v848 = vadd.f32 %v742, %v814
          %v849 = vadd.f32 %v743, %v816
          %v850 = vadd.f32 %v744, %v818
          %v851 = vadd.f32 %v745, %v820
          %v852 = vadd.f32 %v746, %v822
          %v853 = vadd.f32 %v747, %v824
          %v854 = vadd.f32 %v748, %v826
          %v855 = vadd.f32 %v749, %v828
          %v856 = vadd.f32 %v750, %v830
          %s857 = sadd.s32 %s373, 6
          %s858 = sld [smem:[#allocation3 + %s857]]
          %v859 = vstv %s858
          %v860 = vmul.f32 %v859, %v328
          %v861 = vmul.f32 %v859, %v329
          %v862 = vmul.f32 %v859, %v330
          %v863 = vmul.f32 %v859, %v331
          %v864 = vmul.f32 %v859, %v332
          %v865 = vmul.f32 %v859, %v333
          %v866 = vmul.f32 %v859, %v334
          %v867 = vmul.f32 %v859, %v335
          %v868 = vmul.f32 %v859, %v336
          %v869 = vmul.f32 %v859, %v337
          %v870 = vmul.f32 %v859, %v338
          %v871 = vmul.f32 %v859, %v339
          %v872 = vmul.f32 %v859, %v340
          %vm886 = vcmask 1045504
          %v887 = vrot.slane %v860, 2
          %v888 = vrot.slane %v861, 2
          %v889 = vsel %vm886, %v887, %v888
          %v890 = vrot.slane %v862, 2
          %v891 = vsel %vm886, %v888, %v890
          %v892 = vrot.slane %v863, 2
          %v893 = vsel %vm886, %v890, %v892
          %v894 = vrot.slane %v864, 2
          %v895 = vsel %vm886, %v892, %v894
          %v896 = vrot.slane %v865, 2
          %v897 = vsel %vm886, %v894, %v896
          %v898 = vrot.slane %v866, 2
          %v899 = vsel %vm886, %v896, %v898
          %v900 = vrot.slane %v867, 2
          %v901 = vsel %vm886, %v898, %v900
          %v902 = vrot.slane %v868, 2
          %v903 = vsel %vm886, %v900, %v902
          %v904 = vrot.slane %v869, 2
          %v905 = vsel %vm886, %v902, %v904
          %v906 = vrot.slane %v870, 2
          %v907 = vsel %vm886, %v904, %v906
          %v908 = vrot.slane %v871, 2
          %v909 = vsel %vm886, %v906, %v908
          %v910 = vrot.slane %v872, 2
          %v911 = vsel %vm886, %v908, %v910
          %v925 = vadd.f32 %v844, %v889
          %v926 = vadd.f32 %v845, %v891
          %v927 = vadd.f32 %v846, %v893
          %v928 = vadd.f32 %v847, %v895
          %v929 = vadd.f32 %v848, %v897
          %v930 = vadd.f32 %v849, %v899
          %v931 = vadd.f32 %v850, %v901
          %v932 = vadd.f32 %v851, %v903
          %v933 = vadd.f32 %v852, %v905
          %v934 = vadd.f32 %v853, %v907
          %v935 = vadd.f32 %v854, %v909
          %v936 = vadd.f32 %v855, %v911
          %v937 = vadd.f32 %v856, %v910
          %s938 = sadd.s32 %s373, 7
          %s939 = sld [smem:[#allocation3 + %s938]]
          %v940 = vstv %s939
          %v941 = vmul.f32 %v940, %v328
          %v942 = vmul.f32 %v940, %v329
          %v943 = vmul.f32 %v940, %v330
          %v944 = vmul.f32 %v940, %v331
          %v945 = vmul.f32 %v940, %v332
          %v946 = vmul.f32 %v940, %v333
          %v947 = vmul.f32 %v940, %v334
          %v948 = vmul.f32 %v940, %v335
          %v949 = vmul.f32 %v940, %v336
          %v950 = vmul.f32 %v940, %v337
          %v951 = vmul.f32 %v940, %v338
          %v952 = vmul.f32 %v940, %v339
          %v953 = vmul.f32 %v940, %v340
          %v967 = vrot.slane %v941, 2
          %v968 = vrot.slane %v942, 2
          %v969 = vsel %vm886, %v967, %v968
          %v970 = vrot.slane %v943, 2
          %v971 = vsel %vm886, %v968, %v970
          %v972 = vrot.slane %v944, 2
          %v973 = vsel %vm886, %v970, %v972
          %v974 = vrot.slane %v945, 2
          %v975 = vsel %vm886, %v972, %v974
          %v976 = vrot.slane %v946, 2
          %v977 = vsel %vm886, %v974, %v976
          %v978 = vrot.slane %v947, 2
          %v979 = vsel %vm886, %v976, %v978
          %v980 = vrot.slane %v948, 2
          %v981 = vsel %vm886, %v978, %v980
          %v982 = vrot.slane %v949, 2
          %v983 = vsel %vm886, %v980, %v982
          %v984 = vrot.slane %v950, 2
          %v985 = vsel %vm886, %v982, %v984
          %v986 = vrot.slane %v951, 2
          %v987 = vsel %vm886, %v984, %v986
          %v988 = vrot.slane %v952, 2
          %v989 = vsel %vm886, %v986, %v988
          %v990 = vrot.slane %v953, 2
          %v991 = vsel %vm886, %v988, %v990
          %992 = vrot.lane.b32.xlu0 %v969, 127
          %v993 = vpop.permute.xlu0 %992
          %994 = vrot.lane.b32.xlu0 %v971, 127
          %v995 = vpop.permute.xlu0 %994
          %996 = vrot.lane.b32.xlu0 %v973, 127
          %v997 = vpop.permute.xlu0 %996
          %998 = vrot.lane.b32.xlu0 %v975, 127
          %v999 = vpop.permute.xlu0 %998
          %1000 = vrot.lane.b32.xlu0 %v977, 127
          %v1001 = vpop.permute.xlu0 %1000
          %1002 = vrot.lane.b32.xlu0 %v979, 127
          %v1003 = vpop.permute.xlu0 %1002
          %1004 = vrot.lane.b32.xlu0 %v981, 127
          %v1005 = vpop.permute.xlu0 %1004
          %1006 = vrot.lane.b32.xlu0 %v983, 127
          %v1007 = vpop.permute.xlu0 %1006
          %1008 = vrot.lane.b32.xlu0 %v985, 127
          %v1009 = vpop.permute.xlu0 %1008
          %1010 = vrot.lane.b32.xlu0 %v987, 127
          %v1011 = vpop.permute.xlu0 %1010
          %1012 = vrot.lane.b32.xlu0 %v989, 127
          %v1013 = vpop.permute.xlu0 %1012
          %1014 = vrot.lane.b32.xlu0 %v991, 127
          %v1015 = vpop.permute.xlu0 %1014
          %1016 = vrot.lane.b32.xlu0 %v990, 127
          %v1017 = vpop.permute.xlu0 %1016
          %v1031 = vadd.f32 %v925, %v993
          %v1032 = vadd.f32 %v926, %v995
          %v1033 = vadd.f32 %v927, %v997
          %v1034 = vadd.f32 %v928, %v999
          %v1035 = vadd.f32 %v929, %v1001
          %v1036 = vadd.f32 %v930, %v1003
          %v1037 = vadd.f32 %v931, %v1005
          %v1038 = vadd.f32 %v932, %v1007
          %v1039 = vadd.f32 %v933, %v1009
          %v1040 = vadd.f32 %v934, %v1011
          %v1041 = vadd.f32 %v935, %v1013
          %v1042 = vadd.f32 %v936, %v1015
          %v1043 = vadd.f32 %v937, %v1017
          %s1044 = sadd.s32 %s373, 8
          %s1045 = sld [smem:[#allocation3 + %s1044]]
          %v1046 = vstv %s1045
          %v1047 = vmul.f32 %v1046, %v328
          %v1048 = vmul.f32 %v1046, %v329
          %v1049 = vmul.f32 %v1046, %v330
          %v1050 = vmul.f32 %v1046, %v331
          %v1051 = vmul.f32 %v1046, %v332
          %v1052 = vmul.f32 %v1046, %v333
          %v1053 = vmul.f32 %v1046, %v334
          %v1054 = vmul.f32 %v1046, %v335
          %v1055 = vmul.f32 %v1046, %v336
          %v1056 = vmul.f32 %v1046, %v337
          %v1057 = vmul.f32 %v1046, %v338
          %v1058 = vmul.f32 %v1046, %v339
          %v1059 = vmul.f32 %v1046, %v340
          %v1073 = vrot.slane %v1047, 2
          %v1074 = vrot.slane %v1048, 2
          %v1075 = vsel %vm886, %v1073, %v1074
          %v1076 = vrot.slane %v1049, 2
          %v1077 = vsel %vm886, %v1074, %v1076
          %v1078 = vrot.slane %v1050, 2
          %v1079 = vsel %vm886, %v1076, %v1078
          %v1080 = vrot.slane %v1051, 2
          %v1081 = vsel %vm886, %v1078, %v1080
          %v1082 = vrot.slane %v1052, 2
          %v1083 = vsel %vm886, %v1080, %v1082
          %v1084 = vrot.slane %v1053, 2
          %v1085 = vsel %vm886, %v1082, %v1084
          %v1086 = vrot.slane %v1054, 2
          %v1087 = vsel %vm886, %v1084, %v1086
          %v1088 = vrot.slane %v1055, 2
          %v1089 = vsel %vm886, %v1086, %v1088
          %v1090 = vrot.slane %v1056, 2
          %v1091 = vsel %vm886, %v1088, %v1090
          %v1092 = vrot.slane %v1057, 2
          %v1093 = vsel %vm886, %v1090, %v1092
          %v1094 = vrot.slane %v1058, 2
          %v1095 = vsel %vm886, %v1092, %v1094
          %v1096 = vrot.slane %v1059, 2
          %v1097 = vsel %vm886, %v1094, %v1096
          %1098 = vrot.lane.b32.xlu0 %v1075, 126
          %v1099 = vpop.permute.xlu0 %1098
          %1100 = vrot.lane.b32.xlu0 %v1077, 126
          %v1101 = vpop.permute.xlu0 %1100
          %1102 = vrot.lane.b32.xlu0 %v1079, 126
          %v1103 = vpop.permute.xlu0 %1102
          %1104 = vrot.lane.b32.xlu0 %v1081, 126
          %v1105 = vpop.permute.xlu0 %1104
          %1106 = vrot.lane.b32.xlu0 %v1083, 126
          %v1107 = vpop.permute.xlu0 %1106
          %1108 = vrot.lane.b32.xlu0 %v1085, 126
          %v1109 = vpop.permute.xlu0 %1108
          %1110 = vrot.lane.b32.xlu0 %v1087, 126
          %v1111 = vpop.permute.xlu0 %1110
          %1112 = vrot.lane.b32.xlu0 %v1089, 126
          %v1113 = vpop.permute.xlu0 %1112
          %1114 = vrot.lane.b32.xlu0 %v1091, 126
          %v1115 = vpop.permute.xlu0 %1114
          %1116 = vrot.lane.b32.xlu0 %v1093, 126
          %v1117 = vpop.permute.xlu0 %1116
          %1118 = vrot.lane.b32.xlu0 %v1095, 126
          %v1119 = vpop.permute.xlu0 %1118
          %1120 = vrot.lane.b32.xlu0 %v1097, 126
          %v1121 = vpop.permute.xlu0 %1120
          %1122 = vrot.lane.b32.xlu0 %v1096, 126
          %v1123 = vpop.permute.xlu0 %1122
          %v1137 = vadd.f32 %v1031, %v1099
          %v1138 = vadd.f32 %v1032, %v1101
          %v1139 = vadd.f32 %v1033, %v1103
          %v1140 = vadd.f32 %v1034, %v1105
          %v1141 = vadd.f32 %v1035, %v1107
          %v1142 = vadd.f32 %v1036, %v1109
          %v1143 = vadd.f32 %v1037, %v1111
          %v1144 = vadd.f32 %v1038, %v1113
          %v1145 = vadd.f32 %v1039, %v1115
          %v1146 = vadd.f32 %v1040, %v1117
          %v1147 = vadd.f32 %v1041, %v1119
          %v1148 = vadd.f32 %v1042, %v1121
          %v1149 = vadd.f32 %v1043, %v1123
          %s1150 = sadd.s32 %s373, 9
          %s1151 = sld [smem:[#allocation3 + %s1150]]
          %v1152 = vstv %s1151
          %v1153 = vmul.f32 %v1152, %v341
          %v1154 = vmul.f32 %v1152, %v342
          %v1155 = vmul.f32 %v1152, %v343
          %v1156 = vmul.f32 %v1152, %v344
          %v1157 = vmul.f32 %v1152, %v345
          %v1158 = vmul.f32 %v1152, %v346
          %v1159 = vmul.f32 %v1152, %v347
          %v1160 = vmul.f32 %v1152, %v348
          %v1161 = vmul.f32 %v1152, %v349
          %v1162 = vmul.f32 %v1152, %v350
          %v1163 = vmul.f32 %v1152, %v351
          %v1164 = vmul.f32 %v1152, %v352
          %v1165 = vmul.f32 %v1152, %v353
          %v1166 = vadd.f32 %v1137, %v1153
          %v1167 = vadd.f32 %v1138, %v1154
          %v1168 = vadd.f32 %v1139, %v1155
          %v1169 = vadd.f32 %v1140, %v1156
          %v1170 = vadd.f32 %v1141, %v1157
          %v1171 = vadd.f32 %v1142, %v1158
          %v1172 = vadd.f32 %v1143, %v1159
          %v1173 = vadd.f32 %v1144, %v1160
          %v1174 = vadd.f32 %v1145, %v1161
          %v1175 = vadd.f32 %v1146, %v1162
          %v1176 = vadd.f32 %v1147, %v1163
          %v1177 = vadd.f32 %v1148, %v1164
          %v1178 = vadd.f32 %v1149, %v1165
          %s1179 = sadd.s32 %s373, 10
          %s1180 = sld [smem:[#allocation3 + %s1179]]
          %v1181 = vstv %s1180
          %v1182 = vmul.f32 %v1181, %v341
          %v1183 = vmul.f32 %v1181, %v342
          %v1184 = vmul.f32 %v1181, %v343
          %v1185 = vmul.f32 %v1181, %v344
          %v1186 = vmul.f32 %v1181, %v345
          %v1187 = vmul.f32 %v1181, %v346
          %v1188 = vmul.f32 %v1181, %v347
          %v1189 = vmul.f32 %v1181, %v348
          %v1190 = vmul.f32 %v1181, %v349
          %v1191 = vmul.f32 %v1181, %v350
          %v1192 = vmul.f32 %v1181, %v351
          %v1193 = vmul.f32 %v1181, %v352
          %v1194 = vmul.f32 %v1181, %v353
          %1208 = vrot.lane.b32.xlu0 %v1182, 127
          %v1209 = vpop.permute.xlu0 %1208
          %1210 = vrot.lane.b32.xlu0 %v1183, 127
          %v1211 = vpop.permute.xlu0 %1210
          %1212 = vrot.lane.b32.xlu0 %v1184, 127
          %v1213 = vpop.permute.xlu0 %1212
          %1214 = vrot.lane.b32.xlu0 %v1185, 127
          %v1215 = vpop.permute.xlu0 %1214
          %1216 = vrot.lane.b32.xlu0 %v1186, 127
          %v1217 = vpop.permute.xlu0 %1216
          %1218 = vrot.lane.b32.xlu0 %v1187, 127
          %v1219 = vpop.permute.xlu0 %1218
          %1220 = vrot.lane.b32.xlu0 %v1188, 127
          %v1221 = vpop.permute.xlu0 %1220
          %1222 = vrot.lane.b32.xlu0 %v1189, 127
          %v1223 = vpop.permute.xlu0 %1222
          %1224 = vrot.lane.b32.xlu0 %v1190, 127
          %v1225 = vpop.permute.xlu0 %1224
          %1226 = vrot.lane.b32.xlu0 %v1191, 127
          %v1227 = vpop.permute.xlu0 %1226
          %1228 = vrot.lane.b32.xlu0 %v1192, 127
          %v1229 = vpop.permute.xlu0 %1228
          %1230 = vrot.lane.b32.xlu0 %v1193, 127
          %v1231 = vpop.permute.xlu0 %1230
          %1232 = vrot.lane.b32.xlu0 %v1194, 127
          %v1233 = vpop.permute.xlu0 %1232
          %v1247 = vadd.f32 %v1166, %v1209
          %v1248 = vadd.f32 %v1167, %v1211
          %v1249 = vadd.f32 %v1168, %v1213
          %v1250 = vadd.f32 %v1169, %v1215
          %v1251 = vadd.f32 %v1170, %v1217
          %v1252 = vadd.f32 %v1171, %v1219
          %v1253 = vadd.f32 %v1172, %v1221
          %v1254 = vadd.f32 %v1173, %v1223
          %v1255 = vadd.f32 %v1174, %v1225
          %v1256 = vadd.f32 %v1175, %v1227
          %v1257 = vadd.f32 %v1176, %v1229
          %v1258 = vadd.f32 %v1177, %v1231
          %v1259 = vadd.f32 %v1178, %v1233
          %s1260 = sadd.s32 %s373, 11
          %s1261 = sld [smem:[#allocation3 + %s1260]]
          %v1262 = vstv %s1261
          %v1263 = vmul.f32 %v1262, %v341
          %v1264 = vmul.f32 %v1262, %v342
          %v1265 = vmul.f32 %v1262, %v343
          %v1266 = vmul.f32 %v1262, %v344
          %v1267 = vmul.f32 %v1262, %v345
          %v1268 = vmul.f32 %v1262, %v346
          %v1269 = vmul.f32 %v1262, %v347
          %v1270 = vmul.f32 %v1262, %v348
          %v1271 = vmul.f32 %v1262, %v349
          %v1272 = vmul.f32 %v1262, %v350
          %v1273 = vmul.f32 %v1262, %v351
          %v1274 = vmul.f32 %v1262, %v352
          %v1275 = vmul.f32 %v1262, %v353
          %1289 = vrot.lane.b32.xlu0 %v1263, 126
          %v1290 = vpop.permute.xlu0 %1289
          %1291 = vrot.lane.b32.xlu0 %v1264, 126
          %v1292 = vpop.permute.xlu0 %1291
          %1293 = vrot.lane.b32.xlu0 %v1265, 126
          %v1294 = vpop.permute.xlu0 %1293
          %1295 = vrot.lane.b32.xlu0 %v1266, 126
          %v1296 = vpop.permute.xlu0 %1295
          %1297 = vrot.lane.b32.xlu0 %v1267, 126
          %v1298 = vpop.permute.xlu0 %1297
          %1299 = vrot.lane.b32.xlu0 %v1268, 126
          %v1300 = vpop.permute.xlu0 %1299
          %1301 = vrot.lane.b32.xlu0 %v1269, 126
          %v1302 = vpop.permute.xlu0 %1301
          %1303 = vrot.lane.b32.xlu0 %v1270, 126
          %v1304 = vpop.permute.xlu0 %1303
          %1305 = vrot.lane.b32.xlu0 %v1271, 126
          %v1306 = vpop.permute.xlu0 %1305
          %1307 = vrot.lane.b32.xlu0 %v1272, 126
          %v1308 = vpop.permute.xlu0 %1307
          %1309 = vrot.lane.b32.xlu0 %v1273, 126
          %v1310 = vpop.permute.xlu0 %1309
          %1311 = vrot.lane.b32.xlu0 %v1274, 126
          %v1312 = vpop.permute.xlu0 %1311
          %1313 = vrot.lane.b32.xlu0 %v1275, 126
          %v1314 = vpop.permute.xlu0 %1313
          %v1328 = vadd.f32 %v1247, %v1290
          %v1329 = vadd.f32 %v1248, %v1292
          %v1330 = vadd.f32 %v1249, %v1294
          %v1331 = vadd.f32 %v1250, %v1296
          %v1332 = vadd.f32 %v1251, %v1298
          %v1333 = vadd.f32 %v1252, %v1300
          %v1334 = vadd.f32 %v1253, %v1302
          %v1335 = vadd.f32 %v1254, %v1304
          %v1336 = vadd.f32 %v1255, %v1306
          %v1337 = vadd.f32 %v1256, %v1308
          %v1338 = vadd.f32 %v1257, %v1310
          %v1339 = vadd.f32 %v1258, %v1312
          %v1340 = vadd.f32 %v1259, %v1314
          %s1341 = sadd.s32 %s373, 12
          %s1342 = sld [smem:[#allocation3 + %s1341]]
          %v1343 = vstv %s1342
          %v1344 = vmul.f32 %v1343, %v341
          %v1345 = vmul.f32 %v1343, %v342
          %v1346 = vmul.f32 %v1343, %v343
          %v1347 = vmul.f32 %v1343, %v344
          %v1348 = vmul.f32 %v1343, %v345
          %v1349 = vmul.f32 %v1343, %v346
          %v1350 = vmul.f32 %v1343, %v347
          %v1351 = vmul.f32 %v1343, %v348
          %v1352 = vmul.f32 %v1343, %v349
          %v1353 = vmul.f32 %v1343, %v350
          %v1354 = vmul.f32 %v1343, %v351
          %v1355 = vmul.f32 %v1343, %v352
          %v1356 = vmul.f32 %v1343, %v353
          %v1370 = vrot.slane %v1344, 1
          %v1371 = vrot.slane %v1345, 1
          %v1372 = vsel %vm593, %v1370, %v1371
          %v1373 = vrot.slane %v1346, 1
          %v1374 = vsel %vm593, %v1371, %v1373
          %v1375 = vrot.slane %v1347, 1
          %v1376 = vsel %vm593, %v1373, %v1375
          %v1377 = vrot.slane %v1348, 1
          %v1378 = vsel %vm593, %v1375, %v1377
          %v1379 = vrot.slane %v1349, 1
          %v1380 = vsel %vm593, %v1377, %v1379
          %v1381 = vrot.slane %v1350, 1
          %v1382 = vsel %vm593, %v1379, %v1381
          %v1383 = vrot.slane %v1351, 1
          %v1384 = vsel %vm593, %v1381, %v1383
          %v1385 = vrot.slane %v1352, 1
          %v1386 = vsel %vm593, %v1383, %v1385
          %v1387 = vrot.slane %v1353, 1
          %v1388 = vsel %vm593, %v1385, %v1387
          %v1389 = vrot.slane %v1354, 1
          %v1390 = vsel %vm593, %v1387, %v1389
          %v1391 = vrot.slane %v1355, 1
          %v1392 = vsel %vm593, %v1389, %v1391
          %v1393 = vrot.slane %v1356, 1
          %v1394 = vsel %vm593, %v1391, %v1393
          %v1408 = vadd.f32 %v1328, %v1372
          %v1409 = vadd.f32 %v1329, %v1374
          %v1410 = vadd.f32 %v1330, %v1376
          %v1411 = vadd.f32 %v1331, %v1378
          %v1412 = vadd.f32 %v1332, %v1380
          %v1413 = vadd.f32 %v1333, %v1382
          %v1414 = vadd.f32 %v1334, %v1384
          %v1415 = vadd.f32 %v1335, %v1386
          %v1416 = vadd.f32 %v1336, %v1388
          %v1417 = vadd.f32 %v1337, %v1390
          %v1418 = vadd.f32 %v1338, %v1392
          %v1419 = vadd.f32 %v1339, %v1394
          %v1420 = vadd.f32 %v1340, %v1393
          %s1421 = sadd.s32 %s373, 13
          %s1422 = sld [smem:[#allocation3 + %s1421]]
          %v1423 = vstv %s1422
          %v1424 = vmul.f32 %v1423, %v341
          %v1425 = vmul.f32 %v1423, %v342
          %v1426 = vmul.f32 %v1423, %v343
          %v1427 = vmul.f32 %v1423, %v344
          %v1428 = vmul.f32 %v1423, %v345
          %v1429 = vmul.f32 %v1423, %v346
          %v1430 = vmul.f32 %v1423, %v347
          %v1431 = vmul.f32 %v1423, %v348
          %v1432 = vmul.f32 %v1423, %v349
          %v1433 = vmul.f32 %v1423, %v350
          %v1434 = vmul.f32 %v1423, %v351
          %v1435 = vmul.f32 %v1423, %v352
          %v1436 = vmul.f32 %v1423, %v353
          %v1450 = vrot.slane %v1424, 1
          %v1451 = vrot.slane %v1425, 1
          %v1452 = vsel %vm593, %v1450, %v1451
          %v1453 = vrot.slane %v1426, 1
          %v1454 = vsel %vm593, %v1451, %v1453
          %v1455 = vrot.slane %v1427, 1
          %v1456 = vsel %vm593, %v1453, %v1455
          %v1457 = vrot.slane %v1428, 1
          %v1458 = vsel %vm593, %v1455, %v1457
          %v1459 = vrot.slane %v1429, 1
          %v1460 = vsel %vm593, %v1457, %v1459
          %v1461 = vrot.slane %v1430, 1
          %v1462 = vsel %vm593, %v1459, %v1461
          %v1463 = vrot.slane %v1431, 1
          %v1464 = vsel %vm593, %v1461, %v1463
          %v1465 = vrot.slane %v1432, 1
          %v1466 = vsel %vm593, %v1463, %v1465
          %v1467 = vrot.slane %v1433, 1
          %v1468 = vsel %vm593, %v1465, %v1467
          %v1469 = vrot.slane %v1434, 1
          %v1470 = vsel %vm593, %v1467, %v1469
          %v1471 = vrot.slane %v1435, 1
          %v1472 = vsel %vm593, %v1469, %v1471
          %v1473 = vrot.slane %v1436, 1
          %v1474 = vsel %vm593, %v1471, %v1473
          %1475 = vrot.lane.b32.xlu0 %v1452, 127
          %v1476 = vpop.permute.xlu0 %1475
          %1477 = vrot.lane.b32.xlu0 %v1454, 127
          %v1478 = vpop.permute.xlu0 %1477
          %1479 = vrot.lane.b32.xlu0 %v1456, 127
          %v1480 = vpop.permute.xlu0 %1479
          %1481 = vrot.lane.b32.xlu0 %v1458, 127
          %v1482 = vpop.permute.xlu0 %1481
          %1483 = vrot.lane.b32.xlu0 %v1460, 127
          %v1484 = vpop.permute.xlu0 %1483
          %1485 = vrot.lane.b32.xlu0 %v1462, 127
          %v1486 = vpop.permute.xlu0 %1485
          %1487 = vrot.lane.b32.xlu0 %v1464, 127
          %v1488 = vpop.permute.xlu0 %1487
          %1489 = vrot.lane.b32.xlu0 %v1466, 127
          %v1490 = vpop.permute.xlu0 %1489
          %1491 = vrot.lane.b32.xlu0 %v1468, 127
          %v1492 = vpop.permute.xlu0 %1491
          %1493 = vrot.lane.b32.xlu0 %v1470, 127
          %v1494 = vpop.permute.xlu0 %1493
          %1495 = vrot.lane.b32.xlu0 %v1472, 127
          %v1496 = vpop.permute.xlu0 %1495
          %1497 = vrot.lane.b32.xlu0 %v1474, 127
          %v1498 = vpop.permute.xlu0 %1497
          %1499 = vrot.lane.b32.xlu0 %v1473, 127
          %v1500 = vpop.permute.xlu0 %1499
          %v1514 = vadd.f32 %v1408, %v1476
          %v1515 = vadd.f32 %v1409, %v1478
          %v1516 = vadd.f32 %v1410, %v1480
          %v1517 = vadd.f32 %v1411, %v1482
          %v1518 = vadd.f32 %v1412, %v1484
          %v1519 = vadd.f32 %v1413, %v1486
          %v1520 = vadd.f32 %v1414, %v1488
          %v1521 = vadd.f32 %v1415, %v1490
          %v1522 = vadd.f32 %v1416, %v1492
          %v1523 = vadd.f32 %v1417, %v1494
          %v1524 = vadd.f32 %v1418, %v1496
          %v1525 = vadd.f32 %v1419, %v1498
          %v1526 = vadd.f32 %v1420, %v1500
          %s1527 = sadd.s32 %s373, 14
          %s1528 = sld [smem:[#allocation3 + %s1527]]
          %v1529 = vstv %s1528
          %v1530 = vmul.f32 %v1529, %v341
          %v1531 = vmul.f32 %v1529, %v342
          %v1532 = vmul.f32 %v1529, %v343
          %v1533 = vmul.f32 %v1529, %v344
          %v1534 = vmul.f32 %v1529, %v345
          %v1535 = vmul.f32 %v1529, %v346
          %v1536 = vmul.f32 %v1529, %v347
          %v1537 = vmul.f32 %v1529, %v348
          %v1538 = vmul.f32 %v1529, %v349
          %v1539 = vmul.f32 %v1529, %v350
          %v1540 = vmul.f32 %v1529, %v351
          %v1541 = vmul.f32 %v1529, %v352
          %v1542 = vmul.f32 %v1529, %v353
          %v1556 = vrot.slane %v1530, 1
          %v1557 = vrot.slane %v1531, 1
          %v1558 = vsel %vm593, %v1556, %v1557
          %v1559 = vrot.slane %v1532, 1
          %v1560 = vsel %vm593, %v1557, %v1559
          %v1561 = vrot.slane %v1533, 1
          %v1562 = vsel %vm593, %v1559, %v1561
          %v1563 = vrot.slane %v1534, 1
          %v1564 = vsel %vm593, %v1561, %v1563
          %v1565 = vrot.slane %v1535, 1
          %v1566 = vsel %vm593, %v1563, %v1565
          %v1567 = vrot.slane %v1536, 1
          %v1568 = vsel %vm593, %v1565, %v1567
          %v1569 = vrot.slane %v1537, 1
          %v1570 = vsel %vm593, %v1567, %v1569
          %v1571 = vrot.slane %v1538, 1
          %v1572 = vsel %vm593, %v1569, %v1571
          %v1573 = vrot.slane %v1539, 1
          %v1574 = vsel %vm593, %v1571, %v1573
          %v1575 = vrot.slane %v1540, 1
          %v1576 = vsel %vm593, %v1573, %v1575
          %v1577 = vrot.slane %v1541, 1
          %v1578 = vsel %vm593, %v1575, %v1577
          %v1579 = vrot.slane %v1542, 1
          %v1580 = vsel %vm593, %v1577, %v1579
          %1581 = vrot.lane.b32.xlu0 %v1558, 126
          %v1582 = vpop.permute.xlu0 %1581
          %1583 = vrot.lane.b32.xlu0 %v1560, 126
          %v1584 = vpop.permute.xlu0 %1583
          %1585 = vrot.lane.b32.xlu0 %v1562, 126
          %v1586 = vpop.permute.xlu0 %1585
          %1587 = vrot.lane.b32.xlu0 %v1564, 126
          %v1588 = vpop.permute.xlu0 %1587
          %1589 = vrot.lane.b32.xlu0 %v1566, 126
          %v1590 = vpop.permute.xlu0 %1589
          %1591 = vrot.lane.b32.xlu0 %v1568, 126
          %v1592 = vpop.permute.xlu0 %1591
          %1593 = vrot.lane.b32.xlu0 %v1570, 126
          %v1594 = vpop.permute.xlu0 %1593
          %1595 = vrot.lane.b32.xlu0 %v1572, 126
          %v1596 = vpop.permute.xlu0 %1595
          %1597 = vrot.lane.b32.xlu0 %v1574, 126
          %v1598 = vpop.permute.xlu0 %1597
          %1599 = vrot.lane.b32.xlu0 %v1576, 126
          %v1600 = vpop.permute.xlu0 %1599
          %1601 = vrot.lane.b32.xlu0 %v1578, 126
          %v1602 = vpop.permute.xlu0 %1601
          %1603 = vrot.lane.b32.xlu0 %v1580, 126
          %v1604 = vpop.permute.xlu0 %1603
          %1605 = vrot.lane.b32.xlu0 %v1579, 126
          %v1606 = vpop.permute.xlu0 %1605
          %v1620 = vadd.f32 %v1514, %v1582
          %v1621 = vadd.f32 %v1515, %v1584
          %v1622 = vadd.f32 %v1516, %v1586
          %v1623 = vadd.f32 %v1517, %v1588
          %v1624 = vadd.f32 %v1518, %v1590
          %v1625 = vadd.f32 %v1519, %v1592
          %v1626 = vadd.f32 %v1520, %v1594
          %v1627 = vadd.f32 %v1521, %v1596
          %v1628 = vadd.f32 %v1522, %v1598
          %v1629 = vadd.f32 %v1523, %v1600
          %v1630 = vadd.f32 %v1524, %v1602
          %v1631 = vadd.f32 %v1525, %v1604
          %v1632 = vadd.f32 %v1526, %v1606
          %s1633 = sadd.s32 %s373, 15
          %s1634 = sld [smem:[#allocation3 + %s1633]]
          %v1635 = vstv %s1634
          %v1636 = vmul.f32 %v1635, %v341
          %v1637 = vmul.f32 %v1635, %v342
          %v1638 = vmul.f32 %v1635, %v343
          %v1639 = vmul.f32 %v1635, %v344
          %v1640 = vmul.f32 %v1635, %v345
          %v1641 = vmul.f32 %v1635, %v346
          %v1642 = vmul.f32 %v1635, %v347
          %v1643 = vmul.f32 %v1635, %v348
          %v1644 = vmul.f32 %v1635, %v349
          %v1645 = vmul.f32 %v1635, %v350
          %v1646 = vmul.f32 %v1635, %v351
          %v1647 = vmul.f32 %v1635, %v352
          %v1648 = vmul.f32 %v1635, %v353
          %v1662 = vrot.slane %v1636, 2
          %v1663 = vrot.slane %v1637, 2
          %v1664 = vsel %vm886, %v1662, %v1663
          %v1665 = vrot.slane %v1638, 2
          %v1666 = vsel %vm886, %v1663, %v1665
          %v1667 = vrot.slane %v1639, 2
          %v1668 = vsel %vm886, %v1665, %v1667
          %v1669 = vrot.slane %v1640, 2
          %v1670 = vsel %vm886, %v1667, %v1669
          %v1671 = vrot.slane %v1641, 2
          %v1672 = vsel %vm886, %v1669, %v1671
          %v1673 = vrot.slane %v1642, 2
          %v1674 = vsel %vm886, %v1671, %v1673
          %v1675 = vrot.slane %v1643, 2
          %v1676 = vsel %vm886, %v1673, %v1675
          %v1677 = vrot.slane %v1644, 2
          %v1678 = vsel %vm886, %v1675, %v1677
          %v1679 = vrot.slane %v1645, 2
          %v1680 = vsel %vm886, %v1677, %v1679
          %v1681 = vrot.slane %v1646, 2
          %v1682 = vsel %vm886, %v1679, %v1681
          %v1683 = vrot.slane %v1647, 2
          %v1684 = vsel %vm886, %v1681, %v1683
          %v1685 = vrot.slane %v1648, 2
          %v1686 = vsel %vm886, %v1683, %v1685
          %v1700 = vadd.f32 %v1620, %v1664
          %v1701 = vadd.f32 %v1621, %v1666
          %v1702 = vadd.f32 %v1622, %v1668
          %v1703 = vadd.f32 %v1623, %v1670
          %v1704 = vadd.f32 %v1624, %v1672
          %v1705 = vadd.f32 %v1625, %v1674
          %v1706 = vadd.f32 %v1626, %v1676
          %v1707 = vadd.f32 %v1627, %v1678
          %v1708 = vadd.f32 %v1628, %v1680
          %v1709 = vadd.f32 %v1629, %v1682
          %v1710 = vadd.f32 %v1630, %v1684
          %v1711 = vadd.f32 %v1631, %v1686
          %v1712 = vadd.f32 %v1632, %v1685
          %s1713 = sadd.s32 %s373, 16
          %s1714 = sld [smem:[#allocation3 + %s1713]]
          %v1715 = vstv %s1714
          %v1716 = vmul.f32 %v1715, %v341
          %v1717 = vmul.f32 %v1715, %v342
          %v1718 = vmul.f32 %v1715, %v343
          %v1719 = vmul.f32 %v1715, %v344
          %v1720 = vmul.f32 %v1715, %v345
          %v1721 = vmul.f32 %v1715, %v346
          %v1722 = vmul.f32 %v1715, %v347
          %v1723 = vmul.f32 %v1715, %v348
          %v1724 = vmul.f32 %v1715, %v349
          %v1725 = vmul.f32 %v1715, %v350
          %v1726 = vmul.f32 %v1715, %v351
          %v1727 = vmul.f32 %v1715, %v352
          %v1728 = vmul.f32 %v1715, %v353
          %v1742 = vrot.slane %v1716, 2
          %v1743 = vrot.slane %v1717, 2
          %v1744 = vsel %vm886, %v1742, %v1743
          %v1745 = vrot.slane %v1718, 2
          %v1746 = vsel %vm886, %v1743, %v1745
          %v1747 = vrot.slane %v1719, 2
          %v1748 = vsel %vm886, %v1745, %v1747
          %v1749 = vrot.slane %v1720, 2
          %v1750 = vsel %vm886, %v1747, %v1749
          %v1751 = vrot.slane %v1721, 2
          %v1752 = vsel %vm886, %v1749, %v1751
          %v1753 = vrot.slane %v1722, 2
          %v1754 = vsel %vm886, %v1751, %v1753
          %v1755 = vrot.slane %v1723, 2
          %v1756 = vsel %vm886, %v1753, %v1755
          %v1757 = vrot.slane %v1724, 2
          %v1758 = vsel %vm886, %v1755, %v1757
          %v1759 = vrot.slane %v1725, 2
          %v1760 = vsel %vm886, %v1757, %v1759
          %v1761 = vrot.slane %v1726, 2
          %v1762 = vsel %vm886, %v1759, %v1761
          %v1763 = vrot.slane %v1727, 2
          %v1764 = vsel %vm886, %v1761, %v1763
          %v1765 = vrot.slane %v1728, 2
          %v1766 = vsel %vm886, %v1763, %v1765
          %1767 = vrot.lane.b32.xlu0 %v1744, 127
          %v1768 = vpop.permute.xlu0 %1767
          %1769 = vrot.lane.b32.xlu0 %v1746, 127
          %v1770 = vpop.permute.xlu0 %1769
          %1771 = vrot.lane.b32.xlu0 %v1748, 127
          %v1772 = vpop.permute.xlu0 %1771
          %1773 = vrot.lane.b32.xlu0 %v1750, 127
          %v1774 = vpop.permute.xlu0 %1773
          %1775 = vrot.lane.b32.xlu0 %v1752, 127
          %v1776 = vpop.permute.xlu0 %1775
          %1777 = vrot.lane.b32.xlu0 %v1754, 127
          %v1778 = vpop.permute.xlu0 %1777
          %1779 = vrot.lane.b32.xlu0 %v1756, 127
          %v1780 = vpop.permute.xlu0 %1779
          %1781 = vrot.lane.b32.xlu0 %v1758, 127
          %v1782 = vpop.permute.xlu0 %1781
          %1783 = vrot.lane.b32.xlu0 %v1760, 127
          %v1784 = vpop.permute.xlu0 %1783
          %1785 = vrot.lane.b32.xlu0 %v1762, 127
          %v1786 = vpop.permute.xlu0 %1785
          %1787 = vrot.lane.b32.xlu0 %v1764, 127
          %v1788 = vpop.permute.xlu0 %1787
          %1789 = vrot.lane.b32.xlu0 %v1766, 127
          %v1790 = vpop.permute.xlu0 %1789
          %1791 = vrot.lane.b32.xlu0 %v1765, 127
          %v1792 = vpop.permute.xlu0 %1791
          %v1806 = vadd.f32 %v1700, %v1768
          %v1807 = vadd.f32 %v1701, %v1770
          %v1808 = vadd.f32 %v1702, %v1772
          %v1809 = vadd.f32 %v1703, %v1774
          %v1810 = vadd.f32 %v1704, %v1776
          %v1811 = vadd.f32 %v1705, %v1778
          %v1812 = vadd.f32 %v1706, %v1780
          %v1813 = vadd.f32 %v1707, %v1782
          %v1814 = vadd.f32 %v1708, %v1784
          %v1815 = vadd.f32 %v1709, %v1786
          %v1816 = vadd.f32 %v1710, %v1788
          %v1817 = vadd.f32 %v1711, %v1790
          %v1818 = vadd.f32 %v1712, %v1792
          %s1819 = sadd.s32 %s373, 17
          %s1820 = sld [smem:[#allocation3 + %s1819]]
          %v1821 = vstv %s1820
          %v1822 = vmul.f32 %v1821, %v341
          %v1823 = vmul.f32 %v1821, %v342
          %v1824 = vmul.f32 %v1821, %v343
          %v1825 = vmul.f32 %v1821, %v344
          %v1826 = vmul.f32 %v1821, %v345
          %v1827 = vmul.f32 %v1821, %v346
          %v1828 = vmul.f32 %v1821, %v347
          %v1829 = vmul.f32 %v1821, %v348
          %v1830 = vmul.f32 %v1821, %v349
          %v1831 = vmul.f32 %v1821, %v350
          %v1832 = vmul.f32 %v1821, %v351
          %v1833 = vmul.f32 %v1821, %v352
          %v1834 = vmul.f32 %v1821, %v353
          %v1848 = vrot.slane %v1822, 2
          %v1849 = vrot.slane %v1823, 2
          %v1850 = vsel %vm886, %v1848, %v1849
          %v1851 = vrot.slane %v1824, 2
          %v1852 = vsel %vm886, %v1849, %v1851
          %v1853 = vrot.slane %v1825, 2
          %v1854 = vsel %vm886, %v1851, %v1853
          %v1855 = vrot.slane %v1826, 2
          %v1856 = vsel %vm886, %v1853, %v1855
          %v1857 = vrot.slane %v1827, 2
          %v1858 = vsel %vm886, %v1855, %v1857
          %v1859 = vrot.slane %v1828, 2
          %v1860 = vsel %vm886, %v1857, %v1859
          %v1861 = vrot.slane %v1829, 2
          %v1862 = vsel %vm886, %v1859, %v1861
          %v1863 = vrot.slane %v1830, 2
          %v1864 = vsel %vm886, %v1861, %v1863
          %v1865 = vrot.slane %v1831, 2
          %v1866 = vsel %vm886, %v1863, %v1865
          %v1867 = vrot.slane %v1832, 2
          %v1868 = vsel %vm886, %v1865, %v1867
          %v1869 = vrot.slane %v1833, 2
          %v1870 = vsel %vm886, %v1867, %v1869
          %v1871 = vrot.slane %v1834, 2
          %v1872 = vsel %vm886, %v1869, %v1871
          %1873 = vrot.lane.b32.xlu0 %v1850, 126
          %v1874 = vpop.permute.xlu0 %1873
          %1875 = vrot.lane.b32.xlu0 %v1852, 126
          %v1876 = vpop.permute.xlu0 %1875
          %1877 = vrot.lane.b32.xlu0 %v1854, 126
          %v1878 = vpop.permute.xlu0 %1877
          %1879 = vrot.lane.b32.xlu0 %v1856, 126
          %v1880 = vpop.permute.xlu0 %1879
          %1881 = vrot.lane.b32.xlu0 %v1858, 126
          %v1882 = vpop.permute.xlu0 %1881
          %1883 = vrot.lane.b32.xlu0 %v1860, 126
          %v1884 = vpop.permute.xlu0 %1883
          %1885 = vrot.lane.b32.xlu0 %v1862, 126
          %v1886 = vpop.permute.xlu0 %1885
          %1887 = vrot.lane.b32.xlu0 %v1864, 126
          %v1888 = vpop.permute.xlu0 %1887
          %1889 = vrot.lane.b32.xlu0 %v1866, 126
          %v1890 = vpop.permute.xlu0 %1889
          %1891 = vrot.lane.b32.xlu0 %v1868, 126
          %v1892 = vpop.permute.xlu0 %1891
          %1893 = vrot.lane.b32.xlu0 %v1870, 126
          %v1894 = vpop.permute.xlu0 %1893
          %1895 = vrot.lane.b32.xlu0 %v1872, 126
          %v1896 = vpop.permute.xlu0 %1895
          %1897 = vrot.lane.b32.xlu0 %v1871, 126
          %v1898 = vpop.permute.xlu0 %1897
          %v1912 = vadd.f32 %v1806, %v1874
          %v1913 = vadd.f32 %v1807, %v1876
          %v1914 = vadd.f32 %v1808, %v1878
          %v1915 = vadd.f32 %v1809, %v1880
          %v1916 = vadd.f32 %v1810, %v1882
          %v1917 = vadd.f32 %v1811, %v1884
          %v1918 = vadd.f32 %v1812, %v1886
          %v1919 = vadd.f32 %v1813, %v1888
          %v1920 = vadd.f32 %v1814, %v1890
          %v1921 = vadd.f32 %v1815, %v1892
          %v1922 = vadd.f32 %v1816, %v1894
          %v1923 = vadd.f32 %v1817, %v1896
          %v1924 = vadd.f32 %v1818, %v1898
          %s1925 = sadd.s32 %s373, 18
          %s1926 = sld [smem:[#allocation3 + %s1925]]
          %v1927 = vstv %s1926
          %v1928 = vmul.f32 %v1927, %v354
          %v1929 = vmul.f32 %v1927, %v355
          %v1930 = vmul.f32 %v1927, %v356
          %v1931 = vmul.f32 %v1927, %v357
          %v1932 = vmul.f32 %v1927, %v358
          %v1933 = vmul.f32 %v1927, %v359
          %v1934 = vmul.f32 %v1927, %v360
          %v1935 = vmul.f32 %v1927, %v361
          %v1936 = vmul.f32 %v1927, %v362
          %v1937 = vmul.f32 %v1927, %v363
          %v1938 = vmul.f32 %v1927, %v364
          %v1939 = vmul.f32 %v1927, %v365
          %v1940 = vmul.f32 %v1927, %v366
          %v1941 = vadd.f32 %v1912, %v1928
          %v1942 = vadd.f32 %v1913, %v1929
          %v1943 = vadd.f32 %v1914, %v1930
          %v1944 = vadd.f32 %v1915, %v1931
          %v1945 = vadd.f32 %v1916, %v1932
          %v1946 = vadd.f32 %v1917, %v1933
          %v1947 = vadd.f32 %v1918, %v1934
          %v1948 = vadd.f32 %v1919, %v1935
          %v1949 = vadd.f32 %v1920, %v1936
          %v1950 = vadd.f32 %v1921, %v1937
          %v1951 = vadd.f32 %v1922, %v1938
          %v1952 = vadd.f32 %v1923, %v1939
          %v1953 = vadd.f32 %v1924, %v1940
          %s1954 = sadd.s32 %s373, 19
          %s1955 = sld [smem:[#allocation3 + %s1954]]
          %v1956 = vstv %s1955
          %v1957 = vmul.f32 %v1956, %v354
          %v1958 = vmul.f32 %v1956, %v355
          %v1959 = vmul.f32 %v1956, %v356
          %v1960 = vmul.f32 %v1956, %v357
          %v1961 = vmul.f32 %v1956, %v358
          %v1962 = vmul.f32 %v1956, %v359
          %v1963 = vmul.f32 %v1956, %v360
          %v1964 = vmul.f32 %v1956, %v361
          %v1965 = vmul.f32 %v1956, %v362
          %v1966 = vmul.f32 %v1956, %v363
          %v1967 = vmul.f32 %v1956, %v364
          %v1968 = vmul.f32 %v1956, %v365
          %v1969 = vmul.f32 %v1956, %v366
          %1983 = vrot.lane.b32.xlu0 %v1957, 127
          %v1984 = vpop.permute.xlu0 %1983
          %1985 = vrot.lane.b32.xlu0 %v1958, 127
          %v1986 = vpop.permute.xlu0 %1985
          %1987 = vrot.lane.b32.xlu0 %v1959, 127
          %v1988 = vpop.permute.xlu0 %1987
          %1989 = vrot.lane.b32.xlu0 %v1960, 127
          %v1990 = vpop.permute.xlu0 %1989
          %1991 = vrot.lane.b32.xlu0 %v1961, 127
          %v1992 = vpop.permute.xlu0 %1991
          %1993 = vrot.lane.b32.xlu0 %v1962, 127
          %v1994 = vpop.permute.xlu0 %1993
          %1995 = vrot.lane.b32.xlu0 %v1963, 127
          %v1996 = vpop.permute.xlu0 %1995
          %1997 = vrot.lane.b32.xlu0 %v1964, 127
          %v1998 = vpop.permute.xlu0 %1997
          %1999 = vrot.lane.b32.xlu0 %v1965, 127
          %v2000 = vpop.permute.xlu0 %1999
          %2001 = vrot.lane.b32.xlu0 %v1966, 127
          %v2002 = vpop.permute.xlu0 %2001
          %2003 = vrot.lane.b32.xlu0 %v1967, 127
          %v2004 = vpop.permute.xlu0 %2003
          %2005 = vrot.lane.b32.xlu0 %v1968, 127
          %v2006 = vpop.permute.xlu0 %2005
          %2007 = vrot.lane.b32.xlu0 %v1969, 127
          %v2008 = vpop.permute.xlu0 %2007
          %v2022 = vadd.f32 %v1941, %v1984
          %v2023 = vadd.f32 %v1942, %v1986
          %v2024 = vadd.f32 %v1943, %v1988
          %v2025 = vadd.f32 %v1944, %v1990
          %v2026 = vadd.f32 %v1945, %v1992
          %v2027 = vadd.f32 %v1946, %v1994
          %v2028 = vadd.f32 %v1947, %v1996
          %v2029 = vadd.f32 %v1948, %v1998
          %v2030 = vadd.f32 %v1949, %v2000
          %v2031 = vadd.f32 %v1950, %v2002
          %v2032 = vadd.f32 %v1951, %v2004
          %v2033 = vadd.f32 %v1952, %v2006
          %v2034 = vadd.f32 %v1953, %v2008
          %s2035 = sadd.s32 %s373, 20
          %s2036 = sld [smem:[#allocation3 + %s2035]]
          %v2037 = vstv %s2036
          %v2038 = vmul.f32 %v2037, %v354
          %v2039 = vmul.f32 %v2037, %v355
          %v2040 = vmul.f32 %v2037, %v356
          %v2041 = vmul.f32 %v2037, %v357
          %v2042 = vmul.f32 %v2037, %v358
          %v2043 = vmul.f32 %v2037, %v359
          %v2044 = vmul.f32 %v2037, %v360
          %v2045 = vmul.f32 %v2037, %v361
          %v2046 = vmul.f32 %v2037, %v362
          %v2047 = vmul.f32 %v2037, %v363
          %v2048 = vmul.f32 %v2037, %v364
          %v2049 = vmul.f32 %v2037, %v365
          %v2050 = vmul.f32 %v2037, %v366
          %2064 = vrot.lane.b32.xlu0 %v2038, 126
          %v2065 = vpop.permute.xlu0 %2064
          %2066 = vrot.lane.b32.xlu0 %v2039, 126
          %v2067 = vpop.permute.xlu0 %2066
          %2068 = vrot.lane.b32.xlu0 %v2040, 126
          %v2069 = vpop.permute.xlu0 %2068
          %2070 = vrot.lane.b32.xlu0 %v2041, 126
          %v2071 = vpop.permute.xlu0 %2070
          %2072 = vrot.lane.b32.xlu0 %v2042, 126
          %v2073 = vpop.permute.xlu0 %2072
          %2074 = vrot.lane.b32.xlu0 %v2043, 126
          %v2075 = vpop.permute.xlu0 %2074
          %2076 = vrot.lane.b32.xlu0 %v2044, 126
          %v2077 = vpop.permute.xlu0 %2076
          %2078 = vrot.lane.b32.xlu0 %v2045, 126
          %v2079 = vpop.permute.xlu0 %2078
          %2080 = vrot.lane.b32.xlu0 %v2046, 126
          %v2081 = vpop.permute.xlu0 %2080
          %2082 = vrot.lane.b32.xlu0 %v2047, 126
          %v2083 = vpop.permute.xlu0 %2082
          %2084 = vrot.lane.b32.xlu0 %v2048, 126
          %v2085 = vpop.permute.xlu0 %2084
          %2086 = vrot.lane.b32.xlu0 %v2049, 126
          %v2087 = vpop.permute.xlu0 %2086
          %2088 = vrot.lane.b32.xlu0 %v2050, 126
          %v2089 = vpop.permute.xlu0 %2088
          %v2103 = vadd.f32 %v2022, %v2065
          %v2104 = vadd.f32 %v2023, %v2067
          %v2105 = vadd.f32 %v2024, %v2069
          %v2106 = vadd.f32 %v2025, %v2071
          %v2107 = vadd.f32 %v2026, %v2073
          %v2108 = vadd.f32 %v2027, %v2075
          %v2109 = vadd.f32 %v2028, %v2077
          %v2110 = vadd.f32 %v2029, %v2079
          %v2111 = vadd.f32 %v2030, %v2081
          %v2112 = vadd.f32 %v2031, %v2083
          %v2113 = vadd.f32 %v2032, %v2085
          %v2114 = vadd.f32 %v2033, %v2087
          %v2115 = vadd.f32 %v2034, %v2089
          %s2116 = sadd.s32 %s373, 21
          %s2117 = sld [smem:[#allocation3 + %s2116]]
          %v2118 = vstv %s2117
          %v2119 = vmul.f32 %v2118, %v354
          %v2120 = vmul.f32 %v2118, %v355
          %v2121 = vmul.f32 %v2118, %v356
          %v2122 = vmul.f32 %v2118, %v357
          %v2123 = vmul.f32 %v2118, %v358
          %v2124 = vmul.f32 %v2118, %v359
          %v2125 = vmul.f32 %v2118, %v360
          %v2126 = vmul.f32 %v2118, %v361
          %v2127 = vmul.f32 %v2118, %v362
          %v2128 = vmul.f32 %v2118, %v363
          %v2129 = vmul.f32 %v2118, %v364
          %v2130 = vmul.f32 %v2118, %v365
          %v2131 = vmul.f32 %v2118, %v366
          %v2145 = vrot.slane %v2119, 1
          %v2146 = vrot.slane %v2120, 1
          %v2147 = vsel %vm593, %v2145, %v2146
          %v2148 = vrot.slane %v2121, 1
          %v2149 = vsel %vm593, %v2146, %v2148
          %v2150 = vrot.slane %v2122, 1
          %v2151 = vsel %vm593, %v2148, %v2150
          %v2152 = vrot.slane %v2123, 1
          %v2153 = vsel %vm593, %v2150, %v2152
          %v2154 = vrot.slane %v2124, 1
          %v2155 = vsel %vm593, %v2152, %v2154
          %v2156 = vrot.slane %v2125, 1
          %v2157 = vsel %vm593, %v2154, %v2156
          %v2158 = vrot.slane %v2126, 1
          %v2159 = vsel %vm593, %v2156, %v2158
          %v2160 = vrot.slane %v2127, 1
          %v2161 = vsel %vm593, %v2158, %v2160
          %v2162 = vrot.slane %v2128, 1
          %v2163 = vsel %vm593, %v2160, %v2162
          %v2164 = vrot.slane %v2129, 1
          %v2165 = vsel %vm593, %v2162, %v2164
          %v2166 = vrot.slane %v2130, 1
          %v2167 = vsel %vm593, %v2164, %v2166
          %v2168 = vrot.slane %v2131, 1
          %v2169 = vsel %vm593, %v2166, %v2168
          %v2183 = vadd.f32 %v2103, %v2147
          %v2184 = vadd.f32 %v2104, %v2149
          %v2185 = vadd.f32 %v2105, %v2151
          %v2186 = vadd.f32 %v2106, %v2153
          %v2187 = vadd.f32 %v2107, %v2155
          %v2188 = vadd.f32 %v2108, %v2157
          %v2189 = vadd.f32 %v2109, %v2159
          %v2190 = vadd.f32 %v2110, %v2161
          %v2191 = vadd.f32 %v2111, %v2163
          %v2192 = vadd.f32 %v2112, %v2165
          %v2193 = vadd.f32 %v2113, %v2167
          %v2194 = vadd.f32 %v2114, %v2169
          %v2195 = vadd.f32 %v2115, %v2168
          %s2196 = sadd.s32 %s373, 22
          %s2197 = sld [smem:[#allocation3 + %s2196]]
          %v2198 = vstv %s2197
          %v2199 = vmul.f32 %v2198, %v354
          %v2200 = vmul.f32 %v2198, %v355
          %v2201 = vmul.f32 %v2198, %v356
          %v2202 = vmul.f32 %v2198, %v357
          %v2203 = vmul.f32 %v2198, %v358
          %v2204 = vmul.f32 %v2198, %v359
          %v2205 = vmul.f32 %v2198, %v360
          %v2206 = vmul.f32 %v2198, %v361
          %v2207 = vmul.f32 %v2198, %v362
          %v2208 = vmul.f32 %v2198, %v363
          %v2209 = vmul.f32 %v2198, %v364
          %v2210 = vmul.f32 %v2198, %v365
          %v2211 = vmul.f32 %v2198, %v366
          %v2225 = vrot.slane %v2199, 1
          %v2226 = vrot.slane %v2200, 1
          %v2227 = vsel %vm593, %v2225, %v2226
          %v2228 = vrot.slane %v2201, 1
          %v2229 = vsel %vm593, %v2226, %v2228
          %v2230 = vrot.slane %v2202, 1
          %v2231 = vsel %vm593, %v2228, %v2230
          %v2232 = vrot.slane %v2203, 1
          %v2233 = vsel %vm593, %v2230, %v2232
          %v2234 = vrot.slane %v2204, 1
          %v2235 = vsel %vm593, %v2232, %v2234
          %v2236 = vrot.slane %v2205, 1
          %v2237 = vsel %vm593, %v2234, %v2236
          %v2238 = vrot.slane %v2206, 1
          %v2239 = vsel %vm593, %v2236, %v2238
          %v2240 = vrot.slane %v2207, 1
          %v2241 = vsel %vm593, %v2238, %v2240
          %v2242 = vrot.slane %v2208, 1
          %v2243 = vsel %vm593, %v2240, %v2242
          %v2244 = vrot.slane %v2209, 1
          %v2245 = vsel %vm593, %v2242, %v2244
          %v2246 = vrot.slane %v2210, 1
          %v2247 = vsel %vm593, %v2244, %v2246
          %v2248 = vrot.slane %v2211, 1
          %v2249 = vsel %vm593, %v2246, %v2248
          %2250 = vrot.lane.b32.xlu0 %v2227, 127
          %v2251 = vpop.permute.xlu0 %2250
          %2252 = vrot.lane.b32.xlu0 %v2229, 127
          %v2253 = vpop.permute.xlu0 %2252
          %2254 = vrot.lane.b32.xlu0 %v2231, 127
          %v2255 = vpop.permute.xlu0 %2254
          %2256 = vrot.lane.b32.xlu0 %v2233, 127
          %v2257 = vpop.permute.xlu0 %2256
          %2258 = vrot.lane.b32.xlu0 %v2235, 127
          %v2259 = vpop.permute.xlu0 %2258
          %2260 = vrot.lane.b32.xlu0 %v2237, 127
          %v2261 = vpop.permute.xlu0 %2260
          %2262 = vrot.lane.b32.xlu0 %v2239, 127
          %v2263 = vpop.permute.xlu0 %2262
          %2264 = vrot.lane.b32.xlu0 %v2241, 127
          %v2265 = vpop.permute.xlu0 %2264
          %2266 = vrot.lane.b32.xlu0 %v2243, 127
          %v2267 = vpop.permute.xlu0 %2266
          %2268 = vrot.lane.b32.xlu0 %v2245, 127
          %v2269 = vpop.permute.xlu0 %2268
          %2270 = vrot.lane.b32.xlu0 %v2247, 127
          %v2271 = vpop.permute.xlu0 %2270
          %2272 = vrot.lane.b32.xlu0 %v2249, 127
          %v2273 = vpop.permute.xlu0 %2272
          %2274 = vrot.lane.b32.xlu0 %v2248, 127
          %v2275 = vpop.permute.xlu0 %2274
          %v2289 = vadd.f32 %v2183, %v2251
          %v2290 = vadd.f32 %v2184, %v2253
          %v2291 = vadd.f32 %v2185, %v2255
          %v2292 = vadd.f32 %v2186, %v2257
          %v2293 = vadd.f32 %v2187, %v2259
          %v2294 = vadd.f32 %v2188, %v2261
          %v2295 = vadd.f32 %v2189, %v2263
          %v2296 = vadd.f32 %v2190, %v2265
          %v2297 = vadd.f32 %v2191, %v2267
          %v2298 = vadd.f32 %v2192, %v2269
          %v2299 = vadd.f32 %v2193, %v2271
          %v2300 = vadd.f32 %v2194, %v2273
          %v2301 = vadd.f32 %v2195, %v2275
          %s2302 = sadd.s32 %s373, 23
          %s2303 = sld [smem:[#allocation3 + %s2302]]
          %v2304 = vstv %s2303
          %v2305 = vmul.f32 %v2304, %v354
          %v2306 = vmul.f32 %v2304, %v355
          %v2307 = vmul.f32 %v2304, %v356
          %v2308 = vmul.f32 %v2304, %v357
          %v2309 = vmul.f32 %v2304, %v358
          %v2310 = vmul.f32 %v2304, %v359
          %v2311 = vmul.f32 %v2304, %v360
          %v2312 = vmul.f32 %v2304, %v361
          %v2313 = vmul.f32 %v2304, %v362
          %v2314 = vmul.f32 %v2304, %v363
          %v2315 = vmul.f32 %v2304, %v364
          %v2316 = vmul.f32 %v2304, %v365
          %v2317 = vmul.f32 %v2304, %v366
          %v2331 = vrot.slane %v2305, 1
          %v2332 = vrot.slane %v2306, 1
          %v2333 = vsel %vm593, %v2331, %v2332
          %v2334 = vrot.slane %v2307, 1
          %v2335 = vsel %vm593, %v2332, %v2334
          %v2336 = vrot.slane %v2308, 1
          %v2337 = vsel %vm593, %v2334, %v2336
          %v2338 = vrot.slane %v2309, 1
          %v2339 = vsel %vm593, %v2336, %v2338
          %v2340 = vrot.slane %v2310, 1
          %v2341 = vsel %vm593, %v2338, %v2340
          %v2342 = vrot.slane %v2311, 1
          %v2343 = vsel %vm593, %v2340, %v2342
          %v2344 = vrot.slane %v2312, 1
          %v2345 = vsel %vm593, %v2342, %v2344
          %v2346 = vrot.slane %v2313, 1
          %v2347 = vsel %vm593, %v2344, %v2346
          %v2348 = vrot.slane %v2314, 1
          %v2349 = vsel %vm593, %v2346, %v2348
          %v2350 = vrot.slane %v2315, 1
          %v2351 = vsel %vm593, %v2348, %v2350
          %v2352 = vrot.slane %v2316, 1
          %v2353 = vsel %vm593, %v2350, %v2352
          %v2354 = vrot.slane %v2317, 1
          %v2355 = vsel %vm593, %v2352, %v2354
          %2356 = vrot.lane.b32.xlu0 %v2333, 126
          %v2357 = vpop.permute.xlu0 %2356
          %2358 = vrot.lane.b32.xlu0 %v2335, 126
          %v2359 = vpop.permute.xlu0 %2358
          %2360 = vrot.lane.b32.xlu0 %v2337, 126
          %v2361 = vpop.permute.xlu0 %2360
          %2362 = vrot.lane.b32.xlu0 %v2339, 126
          %v2363 = vpop.permute.xlu0 %2362
          %2364 = vrot.lane.b32.xlu0 %v2341, 126
          %v2365 = vpop.permute.xlu0 %2364
          %2366 = vrot.lane.b32.xlu0 %v2343, 126
          %v2367 = vpop.permute.xlu0 %2366
          %2368 = vrot.lane.b32.xlu0 %v2345, 126
          %v2369 = vpop.permute.xlu0 %2368
          %2370 = vrot.lane.b32.xlu0 %v2347, 126
          %v2371 = vpop.permute.xlu0 %2370
          %2372 = vrot.lane.b32.xlu0 %v2349, 126
          %v2373 = vpop.permute.xlu0 %2372
          %2374 = vrot.lane.b32.xlu0 %v2351, 126
          %v2375 = vpop.permute.xlu0 %2374
          %2376 = vrot.lane.b32.xlu0 %v2353, 126
          %v2377 = vpop.permute.xlu0 %2376
          %2378 = vrot.lane.b32.xlu0 %v2355, 126
          %v2379 = vpop.permute.xlu0 %2378
          %2380 = vrot.lane.b32.xlu0 %v2354, 126
          %v2381 = vpop.permute.xlu0 %2380
          %v2395 = vadd.f32 %v2289, %v2357
          %v2396 = vadd.f32 %v2290, %v2359
          %v2397 = vadd.f32 %v2291, %v2361
          %v2398 = vadd.f32 %v2292, %v2363
          %v2399 = vadd.f32 %v2293, %v2365
          %v2400 = vadd.f32 %v2294, %v2367
          %v2401 = vadd.f32 %v2295, %v2369
          %v2402 = vadd.f32 %v2296, %v2371
          %v2403 = vadd.f32 %v2297, %v2373
          %v2404 = vadd.f32 %v2298, %v2375
          %v2405 = vadd.f32 %v2299, %v2377
          %v2406 = vadd.f32 %v2300, %v2379
          %v2407 = vadd.f32 %v2301, %v2381
          %s2408 = sadd.s32 %s373, 24
          %s2409 = sld [smem:[#allocation3 + %s2408]]
          %v2410 = vstv %s2409
          %v2411 = vmul.f32 %v2410, %v354
          %v2412 = vmul.f32 %v2410, %v355
          %v2413 = vmul.f32 %v2410, %v356
          %v2414 = vmul.f32 %v2410, %v357
          %v2415 = vmul.f32 %v2410, %v358
          %v2416 = vmul.f32 %v2410, %v359
          %v2417 = vmul.f32 %v2410, %v360
          %v2418 = vmul.f32 %v2410, %v361
          %v2419 = vmul.f32 %v2410, %v362
          %v2420 = vmul.f32 %v2410, %v363
          %v2421 = vmul.f32 %v2410, %v364
          %v2422 = vmul.f32 %v2410, %v365
          %v2423 = vmul.f32 %v2410, %v366
          %v2437 = vrot.slane %v2411, 2
          %v2438 = vrot.slane %v2412, 2
          %v2439 = vsel %vm886, %v2437, %v2438
          %v2440 = vrot.slane %v2413, 2
          %v2441 = vsel %vm886, %v2438, %v2440
          %v2442 = vrot.slane %v2414, 2
          %v2443 = vsel %vm886, %v2440, %v2442
          %v2444 = vrot.slane %v2415, 2
          %v2445 = vsel %vm886, %v2442, %v2444
          %v2446 = vrot.slane %v2416, 2
          %v2447 = vsel %vm886, %v2444, %v2446
          %v2448 = vrot.slane %v2417, 2
          %v2449 = vsel %vm886, %v2446, %v2448
          %v2450 = vrot.slane %v2418, 2
          %v2451 = vsel %vm886, %v2448, %v2450
          %v2452 = vrot.slane %v2419, 2
          %v2453 = vsel %vm886, %v2450, %v2452
          %v2454 = vrot.slane %v2420, 2
          %v2455 = vsel %vm886, %v2452, %v2454
          %v2456 = vrot.slane %v2421, 2
          %v2457 = vsel %vm886, %v2454, %v2456
          %v2458 = vrot.slane %v2422, 2
          %v2459 = vsel %vm886, %v2456, %v2458
          %v2460 = vrot.slane %v2423, 2
          %v2461 = vsel %vm886, %v2458, %v2460
          %v2475 = vadd.f32 %v2395, %v2439
          %v2476 = vadd.f32 %v2396, %v2441
          %v2477 = vadd.f32 %v2397, %v2443
          %v2478 = vadd.f32 %v2398, %v2445
          %v2479 = vadd.f32 %v2399, %v2447
          %v2480 = vadd.f32 %v2400, %v2449
          %v2481 = vadd.f32 %v2401, %v2451
          %v2482 = vadd.f32 %v2402, %v2453
          %v2483 = vadd.f32 %v2403, %v2455
          %v2484 = vadd.f32 %v2404, %v2457
          %v2485 = vadd.f32 %v2405, %v2459
          %v2486 = vadd.f32 %v2406, %v2461
          %v2487 = vadd.f32 %v2407, %v2460
          %s2488 = sadd.s32 %s373, 25
          %s2489 = sld [smem:[#allocation3 + %s2488]]
          %v2490 = vstv %s2489
          %v2491 = vmul.f32 %v2490, %v354
          %v2492 = vmul.f32 %v2490, %v355
          %v2493 = vmul.f32 %v2490, %v356
          %v2494 = vmul.f32 %v2490, %v357
          %v2495 = vmul.f32 %v2490, %v358
          %v2496 = vmul.f32 %v2490, %v359
          %v2497 = vmul.f32 %v2490, %v360
          %v2498 = vmul.f32 %v2490, %v361
          %v2499 = vmul.f32 %v2490, %v362
          %v2500 = vmul.f32 %v2490, %v363
          %v2501 = vmul.f32 %v2490, %v364
          %v2502 = vmul.f32 %v2490, %v365
          %v2503 = vmul.f32 %v2490, %v366
          %v2517 = vrot.slane %v2491, 2
          %v2518 = vrot.slane %v2492, 2
          %v2519 = vsel %vm886, %v2517, %v2518
          %v2520 = vrot.slane %v2493, 2
          %v2521 = vsel %vm886, %v2518, %v2520
          %v2522 = vrot.slane %v2494, 2
          %v2523 = vsel %vm886, %v2520, %v2522
          %v2524 = vrot.slane %v2495, 2
          %v2525 = vsel %vm886, %v2522, %v2524
          %v2526 = vrot.slane %v2496, 2
          %v2527 = vsel %vm886, %v2524, %v2526
          %v2528 = vrot.slane %v2497, 2
          %v2529 = vsel %vm886, %v2526, %v2528
          %v2530 = vrot.slane %v2498, 2
          %v2531 = vsel %vm886, %v2528, %v2530
          %v2532 = vrot.slane %v2499, 2
          %v2533 = vsel %vm886, %v2530, %v2532
          %v2534 = vrot.slane %v2500, 2
          %v2535 = vsel %vm886, %v2532, %v2534
          %v2536 = vrot.slane %v2501, 2
          %v2537 = vsel %vm886, %v2534, %v2536
          %v2538 = vrot.slane %v2502, 2
          %v2539 = vsel %vm886, %v2536, %v2538
          %v2540 = vrot.slane %v2503, 2
          %v2541 = vsel %vm886, %v2538, %v2540
          %2542 = vrot.lane.b32.xlu0 %v2519, 127
          %v2543 = vpop.permute.xlu0 %2542
          %2544 = vrot.lane.b32.xlu0 %v2521, 127
          %v2545 = vpop.permute.xlu0 %2544
          %2546 = vrot.lane.b32.xlu0 %v2523, 127
          %v2547 = vpop.permute.xlu0 %2546
          %2548 = vrot.lane.b32.xlu0 %v2525, 127
          %v2549 = vpop.permute.xlu0 %2548
          %2550 = vrot.lane.b32.xlu0 %v2527, 127
          %v2551 = vpop.permute.xlu0 %2550
          %2552 = vrot.lane.b32.xlu0 %v2529, 127
          %v2553 = vpop.permute.xlu0 %2552
          %2554 = vrot.lane.b32.xlu0 %v2531, 127
          %v2555 = vpop.permute.xlu0 %2554
          %2556 = vrot.lane.b32.xlu0 %v2533, 127
          %v2557 = vpop.permute.xlu0 %2556
          %2558 = vrot.lane.b32.xlu0 %v2535, 127
          %v2559 = vpop.permute.xlu0 %2558
          %2560 = vrot.lane.b32.xlu0 %v2537, 127
          %v2561 = vpop.permute.xlu0 %2560
          %2562 = vrot.lane.b32.xlu0 %v2539, 127
          %v2563 = vpop.permute.xlu0 %2562
          %2564 = vrot.lane.b32.xlu0 %v2541, 127
          %v2565 = vpop.permute.xlu0 %2564
          %2566 = vrot.lane.b32.xlu0 %v2540, 127
          %v2567 = vpop.permute.xlu0 %2566
          %v2581 = vadd.f32 %v2475, %v2543
          %v2582 = vadd.f32 %v2476, %v2545
          %v2583 = vadd.f32 %v2477, %v2547
          %v2584 = vadd.f32 %v2478, %v2549
          %v2585 = vadd.f32 %v2479, %v2551
          %v2586 = vadd.f32 %v2480, %v2553
          %v2587 = vadd.f32 %v2481, %v2555
          %v2588 = vadd.f32 %v2482, %v2557
          %v2589 = vadd.f32 %v2483, %v2559
          %v2590 = vadd.f32 %v2484, %v2561
          %v2591 = vadd.f32 %v2485, %v2563
          %v2592 = vadd.f32 %v2486, %v2565
          %v2593 = vadd.f32 %v2487, %v2567
          %s2594 = sadd.s32 %s373, 26
          %s2595 = sld [smem:[#allocation3 + %s2594]]
          %v2596 = vstv %s2595
          %v2597 = vmul.f32 %v2596, %v354
          %v2598 = vmul.f32 %v2596, %v355
          %v2599 = vmul.f32 %v2596, %v356
          %v2600 = vmul.f32 %v2596, %v357
          %v2601 = vmul.f32 %v2596, %v358
          %v2602 = vmul.f32 %v2596, %v359
          %v2603 = vmul.f32 %v2596, %v360
          %v2604 = vmul.f32 %v2596, %v361
          %v2605 = vmul.f32 %v2596, %v362
          %v2606 = vmul.f32 %v2596, %v363
          %v2607 = vmul.f32 %v2596, %v364
          %v2608 = vmul.f32 %v2596, %v365
          %v2609 = vmul.f32 %v2596, %v366
          %v2623 = vrot.slane %v2597, 2
          %v2624 = vrot.slane %v2598, 2
          %v2625 = vsel %vm886, %v2623, %v2624
          %v2626 = vrot.slane %v2599, 2
          %v2627 = vsel %vm886, %v2624, %v2626
          %v2628 = vrot.slane %v2600, 2
          %v2629 = vsel %vm886, %v2626, %v2628
          %v2630 = vrot.slane %v2601, 2
          %v2631 = vsel %vm886, %v2628, %v2630
          %v2632 = vrot.slane %v2602, 2
          %v2633 = vsel %vm886, %v2630, %v2632
          %v2634 = vrot.slane %v2603, 2
          %v2635 = vsel %vm886, %v2632, %v2634
          %v2636 = vrot.slane %v2604, 2
          %v2637 = vsel %vm886, %v2634, %v2636
          %v2638 = vrot.slane %v2605, 2
          %v2639 = vsel %vm886, %v2636, %v2638
          %v2640 = vrot.slane %v2606, 2
          %v2641 = vsel %vm886, %v2638, %v2640
          %v2642 = vrot.slane %v2607, 2
          %v2643 = vsel %vm886, %v2640, %v2642
          %v2644 = vrot.slane %v2608, 2
          %v2645 = vsel %vm886, %v2642, %v2644
          %v2646 = vrot.slane %v2609, 2
          %v2647 = vsel %vm886, %v2644, %v2646
          %2648 = vrot.lane.b32.xlu0 %v2625, 126
          %v2649 = vpop.permute.xlu0 %2648
          %2650 = vrot.lane.b32.xlu0 %v2627, 126
          %v2651 = vpop.permute.xlu0 %2650
          %2652 = vrot.lane.b32.xlu0 %v2629, 126
          %v2653 = vpop.permute.xlu0 %2652
          %2654 = vrot.lane.b32.xlu0 %v2631, 126
          %v2655 = vpop.permute.xlu0 %2654
          %2656 = vrot.lane.b32.xlu0 %v2633, 126
          %v2657 = vpop.permute.xlu0 %2656
          %2658 = vrot.lane.b32.xlu0 %v2635, 126
          %v2659 = vpop.permute.xlu0 %2658
          %2660 = vrot.lane.b32.xlu0 %v2637, 126
          %v2661 = vpop.permute.xlu0 %2660
          %2662 = vrot.lane.b32.xlu0 %v2639, 126
          %v2663 = vpop.permute.xlu0 %2662
          %2664 = vrot.lane.b32.xlu0 %v2641, 126
          %v2665 = vpop.permute.xlu0 %2664
          %2666 = vrot.lane.b32.xlu0 %v2643, 126
          %v2667 = vpop.permute.xlu0 %2666
          %2668 = vrot.lane.b32.xlu0 %v2645, 126
          %v2669 = vpop.permute.xlu0 %2668
          %2670 = vrot.lane.b32.xlu0 %v2647, 126
          %v2671 = vpop.permute.xlu0 %2670
          %2672 = vrot.lane.b32.xlu0 %v2646, 126
          %v2673 = vpop.permute.xlu0 %2672
          %v2687 = vadd.f32 %v2581, %v2649
          %v2688 = vadd.f32 %v2582, %v2651
          %v2689 = vadd.f32 %v2583, %v2653
          %v2690 = vadd.f32 %v2584, %v2655
          %v2691 = vadd.f32 %v2585, %v2657
          %v2692 = vadd.f32 %v2586, %v2659
          %v2693 = vadd.f32 %v2587, %v2661
          %v2694 = vadd.f32 %v2588, %v2663
          %v2695 = vadd.f32 %v2589, %v2665
          %v2696 = vadd.f32 %v2590, %v2667
          %v2697 = vadd.f32 %v2591, %v2669
          %v2698 = vadd.f32 %v2592, %v2671
          %v2699 = vadd.f32 %v2593, %v2673
          %s2700 = sld [smem:[#allocation6 + %s368]]
          %v2701 = vstv %s2700
          %v2702 = vadd.f32 %v2687, %v2701
          %v2703 = vadd.f32 %v2688, %v2701
          %v2704 = vadd.f32 %v2689, %v2701
          %v2705 = vadd.f32 %v2690, %v2701
          %v2706 = vadd.f32 %v2691, %v2701
          %v2707 = vadd.f32 %v2692, %v2701
          %v2708 = vadd.f32 %v2693, %v2701
          %v2709 = vadd.f32 %v2694, %v2701
          %v2710 = vadd.f32 %v2695, %v2701
          %v2711 = vadd.f32 %v2696, %v2701
          %v2712 = vadd.f32 %v2697, %v2701
          %v2713 = vadd.f32 %v2698, %v2701
          %v2714 = vadd.f32 %v2699, %v2701
          %v2715 = vmax.f32 %v2702, 0.0
          %v2716 = vmax.f32 %v2703, 0.0
          %v2717 = vmax.f32 %v2704, 0.0
          %v2718 = vmax.f32 %v2705, 0.0
          %v2719 = vmax.f32 %v2706, 0.0
          %v2720 = vmax.f32 %v2707, 0.0
          %v2721 = vmax.f32 %v2708, 0.0
          %v2722 = vmax.f32 %v2709, 0.0
          %v2723 = vmax.f32 %v2710, 0.0
          %v2724 = vmax.f32 %v2711, 0.0
          %v2725 = vmax.f32 %v2712, 0.0
          %v2726 = vmax.f32 %v2713, 0.0
          %v2727 = vmax.f32 %v2714, 0.0
          %s2728 = smul.u32 %s368, 104
          %s2729 = scalar_lea.vmem [#allocation2], %s2728
          %vm2730 = vcmask 801792
          %2731 = vst.msk [vmem:[%s2729] sm:$0xff] %vm2730, %v2715
          %2732 = vst.msk [vmem:[%s2729 + $0x8] sm:$0xff] %vm2730, %v2716
          %2733 = vst.msk [vmem:[%s2729 + $0x10] sm:$0xff] %vm2730, %v2717
          %2734 = vst.msk [vmem:[%s2729 + $0x18] sm:$0xff] %vm2730, %v2718
          %2735 = vst.msk [vmem:[%s2729 + $0x20] sm:$0xff] %vm2730, %v2719
          %2736 = vst.msk [vmem:[%s2729 + $0x28] sm:$0xff] %vm2730, %v2720
          %2737 = vst.msk [vmem:[%s2729 + $0x30] sm:$0xff] %vm2730, %v2721
          %2738 = vst.msk [vmem:[%s2729 + $0x38] sm:$0xff] %vm2730, %v2722
          %2739 = vst.msk [vmem:[%s2729 + $0x40] sm:$0xff] %vm2730, %v2723
          %2740 = vst.msk [vmem:[%s2729 + $0x48] sm:$0xff] %vm2730, %v2724
          %2741 = vst.msk [vmem:[%s2729 + $0x50] sm:$0xff] %vm2730, %v2725
          %2742 = vst.msk [vmem:[%s2729 + $0x58] sm:$0xff] %vm2730, %v2726
          %vm2743 = vcmask 795648
          %2744 = vst.msk [vmem:[%s2729 + $0x60] sm:$0x3] %vm2743, %v2727
        $region69: #{cnn_model_forward.1} parent=47 // loop_footer
          %s372 = sadd.s32 1, %s368
        $region70: #{cnn_model_forward.1} parent=47 // loop_footer_branch
          %367 = sbr.rel target = $region66
        $region71: #{cnn_model_forward.1} parent=47 // loop_exit
          _
        loop: start=0, step=1, limit=20
        $region72: #{cnn_model_forward.1} parent=47 // loop_pre_header
          _
        $region73: #{cnn_model_forward.1} parent=47 // loop_header
          %s2746 = sphi 0, %s2750
          %p2747 = scmp.ge.s32.totalorder %s2746, 20
          %v2751 = vphi 0.0, %v4160
          %v2752 = vphi 0.0, %v4161
          %v2753 = vphi 0.0, %v4162
          %v2754 = vphi 0.0, %v4163
          %v2755 = vphi 0.0, %v4164
          %v2756 = vphi 0.0, %v4165
          %v2757 = vphi 0.0, %v4166
          %v2758 = vphi 0.0, %v4167
          %v2759 = vphi 0.0, %v4168
          %v2760 = vphi 0.0, %v4169
          %v2761 = vphi 0.0, %v4170
          %v2762 = vphi 0.0, %v4171
          %v2763 = vphi 0.0, %v4262
          %v2764 = vphi 0.0, %v4263
          %v2765 = vphi 0.0, %v4264
          %v2766 = vphi 0.0, %v4265
          %v2767 = vphi 0.0, %v4266
          %v2768 = vphi 0.0, %v4267
          %v2769 = vphi 0.0, %v4268
          %v2770 = vphi 0.0, %v4269
          %v2771 = vphi 0.0, %v4270
          %v2772 = vphi 0.0, %v4271
          %v2773 = vphi 0.0, %v4272
          %v2774 = vphi 0.0, %v4273
        $region74: #{cnn_model_forward.1} parent=47 // loop_header_branch
          %2749 = sbr.rel (%p2747) target = $region78
        $region75: #{cnn_model_forward.1} parent=47 // loop_body
          %s2775 = smul.u32 %s2746, 104
          %s2776 = scalar_lea.vmem [#allocation2], %s2775
          %v2777 = vld [vmem:[%s2776] sm:$0xff]
          %v2778 = vld [vmem:[%s2776 + $0x8] sm:$0xff]
          %v2779 = vld [vmem:[%s2776 + $0x10] sm:$0xff]
          %v2780 = vld [vmem:[%s2776 + $0x18] sm:$0xff]
          %v2781 = vld [vmem:[%s2776 + $0x20] sm:$0xff]
          %v2782 = vld [vmem:[%s2776 + $0x28] sm:$0xff]
          %v2783 = vld [vmem:[%s2776 + $0x30] sm:$0xff]
          %v2784 = vld [vmem:[%s2776 + $0x38] sm:$0xff]
          %v2785 = vld [vmem:[%s2776 + $0x40] sm:$0xff]
          %v2786 = vld [vmem:[%s2776 + $0x48] sm:$0xff]
          %v2787 = vld [vmem:[%s2776 + $0x50] sm:$0xff]
          %v2788 = vld [vmem:[%s2776 + $0x58] sm:$0xff]
          %v2789 = vld [vmem:[%s2776 + $0x60] sm:$0x3]
          %s2790 = smul.u32 %s2746, 9
          %s2791 = sld [smem:[#allocation8 + %s2790]]
          %v2792 = vstv %s2791
          %v2793 = vmul.f32 %v2792, %v2777
          %v2794 = vmul.f32 %v2792, %v2778
          %v2795 = vmul.f32 %v2792, %v2779
          %v2796 = vmul.f32 %v2792, %v2780
          %v2797 = vmul.f32 %v2792, %v2781
          %v2798 = vmul.f32 %v2792, %v2782
          %v2799 = vmul.f32 %v2792, %v2783
          %v2800 = vmul.f32 %v2792, %v2784
          %v2801 = vmul.f32 %v2792, %v2785
          %v2802 = vmul.f32 %v2792, %v2786
          %v2803 = vmul.f32 %v2792, %v2787
          %v2804 = vmul.f32 %v2792, %v2788
          %v2805 = vadd.f32 %v2751, %v2793
          %v2806 = vadd.f32 %v2752, %v2794
          %v2807 = vadd.f32 %v2753, %v2795
          %v2808 = vadd.f32 %v2754, %v2796
          %v2809 = vadd.f32 %v2755, %v2797
          %v2810 = vadd.f32 %v2756, %v2798
          %v2811 = vadd.f32 %v2757, %v2799
          %v2812 = vadd.f32 %v2758, %v2800
          %v2813 = vadd.f32 %v2759, %v2801
          %v2814 = vadd.f32 %v2760, %v2802
          %v2815 = vadd.f32 %v2761, %v2803
          %v2816 = vadd.f32 %v2762, %v2804
          %s2817 = sadd.s32 %s2790, 180
          %s2818 = sld [smem:[#allocation8 + %s2817]]
          %v2819 = vstv %s2818
          %v2820 = vmul.f32 %v2819, %v2777
          %v2821 = vmul.f32 %v2819, %v2778
          %v2822 = vmul.f32 %v2819, %v2779
          %v2823 = vmul.f32 %v2819, %v2780
          %v2824 = vmul.f32 %v2819, %v2781
          %v2825 = vmul.f32 %v2819, %v2782
          %v2826 = vmul.f32 %v2819, %v2783
          %v2827 = vmul.f32 %v2819, %v2784
          %v2828 = vmul.f32 %v2819, %v2785
          %v2829 = vmul.f32 %v2819, %v2786
          %v2830 = vmul.f32 %v2819, %v2787
          %v2831 = vmul.f32 %v2819, %v2788
          %v2832 = vadd.f32 %v2763, %v2820
          %v2833 = vadd.f32 %v2764, %v2821
          %v2834 = vadd.f32 %v2765, %v2822
          %v2835 = vadd.f32 %v2766, %v2823
          %v2836 = vadd.f32 %v2767, %v2824
          %v2837 = vadd.f32 %v2768, %v2825
          %v2838 = vadd.f32 %v2769, %v2826
          %v2839 = vadd.f32 %v2770, %v2827
          %v2840 = vadd.f32 %v2771, %v2828
          %v2841 = vadd.f32 %v2772, %v2829
          %v2842 = vadd.f32 %v2773, %v2830
          %v2843 = vadd.f32 %v2774, %v2831
          %s2844 = sadd.s32 %s2790, 1
          %s2845 = sld [smem:[#allocation8 + %s2844]]
          %v2846 = vstv %s2845
          %v2847 = vmul.f32 %v2846, %v2777
          %v2848 = vmul.f32 %v2846, %v2778
          %v2849 = vmul.f32 %v2846, %v2779
          %v2850 = vmul.f32 %v2846, %v2780
          %v2851 = vmul.f32 %v2846, %v2781
          %v2852 = vmul.f32 %v2846, %v2782
          %v2853 = vmul.f32 %v2846, %v2783
          %v2854 = vmul.f32 %v2846, %v2784
          %v2855 = vmul.f32 %v2846, %v2785
          %v2856 = vmul.f32 %v2846, %v2786
          %v2857 = vmul.f32 %v2846, %v2787
          %v2858 = vmul.f32 %v2846, %v2788
          %2871 = vrot.lane.b32.xlu0 %v2847, 127
          %v2872 = vpop.permute.xlu0 %2871
          %2873 = vrot.lane.b32.xlu0 %v2848, 127
          %v2874 = vpop.permute.xlu0 %2873
          %2875 = vrot.lane.b32.xlu0 %v2849, 127
          %v2876 = vpop.permute.xlu0 %2875
          %2877 = vrot.lane.b32.xlu0 %v2850, 127
          %v2878 = vpop.permute.xlu0 %2877
          %2879 = vrot.lane.b32.xlu0 %v2851, 127
          %v2880 = vpop.permute.xlu0 %2879
          %2881 = vrot.lane.b32.xlu0 %v2852, 127
          %v2882 = vpop.permute.xlu0 %2881
          %2883 = vrot.lane.b32.xlu0 %v2853, 127
          %v2884 = vpop.permute.xlu0 %2883
          %2885 = vrot.lane.b32.xlu0 %v2854, 127
          %v2886 = vpop.permute.xlu0 %2885
          %2887 = vrot.lane.b32.xlu0 %v2855, 127
          %v2888 = vpop.permute.xlu0 %2887
          %2889 = vrot.lane.b32.xlu0 %v2856, 127
          %v2890 = vpop.permute.xlu0 %2889
          %2891 = vrot.lane.b32.xlu0 %v2857, 127
          %v2892 = vpop.permute.xlu0 %2891
          %2893 = vrot.lane.b32.xlu0 %v2858, 127
          %v2894 = vpop.permute.xlu0 %2893
          %v2907 = vadd.f32 %v2805, %v2872
          %v2908 = vadd.f32 %v2806, %v2874
          %v2909 = vadd.f32 %v2807, %v2876
          %v2910 = vadd.f32 %v2808, %v2878
          %v2911 = vadd.f32 %v2809, %v2880
          %v2912 = vadd.f32 %v2810, %v2882
          %v2913 = vadd.f32 %v2811, %v2884
          %v2914 = vadd.f32 %v2812, %v2886
          %v2915 = vadd.f32 %v2813, %v2888
          %v2916 = vadd.f32 %v2814, %v2890
          %v2917 = vadd.f32 %v2815, %v2892
          %v2918 = vadd.f32 %v2816, %v2894
          %s2919 = sadd.s32 %s2790, 181
          %s2920 = sld [smem:[#allocation8 + %s2919]]
          %v2921 = vstv %s2920
          %v2922 = vmul.f32 %v2921, %v2777
          %v2923 = vmul.f32 %v2921, %v2778
          %v2924 = vmul.f32 %v2921, %v2779
          %v2925 = vmul.f32 %v2921, %v2780
          %v2926 = vmul.f32 %v2921, %v2781
          %v2927 = vmul.f32 %v2921, %v2782
          %v2928 = vmul.f32 %v2921, %v2783
          %v2929 = vmul.f32 %v2921, %v2784
          %v2930 = vmul.f32 %v2921, %v2785
          %v2931 = vmul.f32 %v2921, %v2786
          %v2932 = vmul.f32 %v2921, %v2787
          %v2933 = vmul.f32 %v2921, %v2788
          %2946 = vrot.lane.b32.xlu0 %v2922, 127
          %v2947 = vpop.permute.xlu0 %2946
          %2948 = vrot.lane.b32.xlu0 %v2923, 127
          %v2949 = vpop.permute.xlu0 %2948
          %2950 = vrot.lane.b32.xlu0 %v2924, 127
          %v2951 = vpop.permute.xlu0 %2950
          %2952 = vrot.lane.b32.xlu0 %v2925, 127
          %v2953 = vpop.permute.xlu0 %2952
          %2954 = vrot.lane.b32.xlu0 %v2926, 127
          %v2955 = vpop.permute.xlu0 %2954
          %2956 = vrot.lane.b32.xlu0 %v2927, 127
          %v2957 = vpop.permute.xlu0 %2956
          %2958 = vrot.lane.b32.xlu0 %v2928, 127
          %v2959 = vpop.permute.xlu0 %2958
          %2960 = vrot.lane.b32.xlu0 %v2929, 127
          %v2961 = vpop.permute.xlu0 %2960
          %2962 = vrot.lane.b32.xlu0 %v2930, 127
          %v2963 = vpop.permute.xlu0 %2962
          %2964 = vrot.lane.b32.xlu0 %v2931, 127
          %v2965 = vpop.permute.xlu0 %2964
          %2966 = vrot.lane.b32.xlu0 %v2932, 127
          %v2967 = vpop.permute.xlu0 %2966
          %2968 = vrot.lane.b32.xlu0 %v2933, 127
          %v2969 = vpop.permute.xlu0 %2968
          %v2982 = vadd.f32 %v2832, %v2947
          %v2983 = vadd.f32 %v2833, %v2949
          %v2984 = vadd.f32 %v2834, %v2951
          %v2985 = vadd.f32 %v2835, %v2953
          %v2986 = vadd.f32 %v2836, %v2955
          %v2987 = vadd.f32 %v2837, %v2957
          %v2988 = vadd.f32 %v2838, %v2959
          %v2989 = vadd.f32 %v2839, %v2961
          %v2990 = vadd.f32 %v2840, %v2963
          %v2991 = vadd.f32 %v2841, %v2965
          %v2992 = vadd.f32 %v2842, %v2967
          %v2993 = vadd.f32 %v2843, %v2969
          %s2994 = sadd.s32 %s2790, 2
          %s2995 = sld [smem:[#allocation8 + %s2994]]
          %v2996 = vstv %s2995
          %v2997 = vmul.f32 %v2996, %v2777
          %v2998 = vmul.f32 %v2996, %v2778
          %v2999 = vmul.f32 %v2996, %v2779
          %v3000 = vmul.f32 %v2996, %v2780
          %v3001 = vmul.f32 %v2996, %v2781
          %v3002 = vmul.f32 %v2996, %v2782
          %v3003 = vmul.f32 %v2996, %v2783
          %v3004 = vmul.f32 %v2996, %v2784
          %v3005 = vmul.f32 %v2996, %v2785
          %v3006 = vmul.f32 %v2996, %v2786
          %v3007 = vmul.f32 %v2996, %v2787
          %v3008 = vmul.f32 %v2996, %v2788
          %3021 = vrot.lane.b32.xlu0 %v2997, 126
          %v3022 = vpop.permute.xlu0 %3021
          %3023 = vrot.lane.b32.xlu0 %v2998, 126
          %v3024 = vpop.permute.xlu0 %3023
          %3025 = vrot.lane.b32.xlu0 %v2999, 126
          %v3026 = vpop.permute.xlu0 %3025
          %3027 = vrot.lane.b32.xlu0 %v3000, 126
          %v3028 = vpop.permute.xlu0 %3027
          %3029 = vrot.lane.b32.xlu0 %v3001, 126
          %v3030 = vpop.permute.xlu0 %3029
          %3031 = vrot.lane.b32.xlu0 %v3002, 126
          %v3032 = vpop.permute.xlu0 %3031
          %3033 = vrot.lane.b32.xlu0 %v3003, 126
          %v3034 = vpop.permute.xlu0 %3033
          %3035 = vrot.lane.b32.xlu0 %v3004, 126
          %v3036 = vpop.permute.xlu0 %3035
          %3037 = vrot.lane.b32.xlu0 %v3005, 126
          %v3038 = vpop.permute.xlu0 %3037
          %3039 = vrot.lane.b32.xlu0 %v3006, 126
          %v3040 = vpop.permute.xlu0 %3039
          %3041 = vrot.lane.b32.xlu0 %v3007, 126
          %v3042 = vpop.permute.xlu0 %3041
          %3043 = vrot.lane.b32.xlu0 %v3008, 126
          %v3044 = vpop.permute.xlu0 %3043
          %v3057 = vadd.f32 %v2907, %v3022
          %v3058 = vadd.f32 %v2908, %v3024
          %v3059 = vadd.f32 %v2909, %v3026
          %v3060 = vadd.f32 %v2910, %v3028
          %v3061 = vadd.f32 %v2911, %v3030
          %v3062 = vadd.f32 %v2912, %v3032
          %v3063 = vadd.f32 %v2913, %v3034
          %v3064 = vadd.f32 %v2914, %v3036
          %v3065 = vadd.f32 %v2915, %v3038
          %v3066 = vadd.f32 %v2916, %v3040
          %v3067 = vadd.f32 %v2917, %v3042
          %v3068 = vadd.f32 %v2918, %v3044
          %s3069 = sadd.s32 %s2790, 182
          %s3070 = sld [smem:[#allocation8 + %s3069]]
          %v3071 = vstv %s3070
          %v3072 = vmul.f32 %v3071, %v2777
          %v3073 = vmul.f32 %v3071, %v2778
          %v3074 = vmul.f32 %v3071, %v2779
          %v3075 = vmul.f32 %v3071, %v2780
          %v3076 = vmul.f32 %v3071, %v2781
          %v3077 = vmul.f32 %v3071, %v2782
          %v3078 = vmul.f32 %v3071, %v2783
          %v3079 = vmul.f32 %v3071, %v2784
          %v3080 = vmul.f32 %v3071, %v2785
          %v3081 = vmul.f32 %v3071, %v2786
          %v3082 = vmul.f32 %v3071, %v2787
          %v3083 = vmul.f32 %v3071, %v2788
          %3096 = vrot.lane.b32.xlu0 %v3072, 126
          %v3097 = vpop.permute.xlu0 %3096
          %3098 = vrot.lane.b32.xlu0 %v3073, 126
          %v3099 = vpop.permute.xlu0 %3098
          %3100 = vrot.lane.b32.xlu0 %v3074, 126
          %v3101 = vpop.permute.xlu0 %3100
          %3102 = vrot.lane.b32.xlu0 %v3075, 126
          %v3103 = vpop.permute.xlu0 %3102
          %3104 = vrot.lane.b32.xlu0 %v3076, 126
          %v3105 = vpop.permute.xlu0 %3104
          %3106 = vrot.lane.b32.xlu0 %v3077, 126
          %v3107 = vpop.permute.xlu0 %3106
          %3108 = vrot.lane.b32.xlu0 %v3078, 126
          %v3109 = vpop.permute.xlu0 %3108
          %3110 = vrot.lane.b32.xlu0 %v3079, 126
          %v3111 = vpop.permute.xlu0 %3110
          %3112 = vrot.lane.b32.xlu0 %v3080, 126
          %v3113 = vpop.permute.xlu0 %3112
          %3114 = vrot.lane.b32.xlu0 %v3081, 126
          %v3115 = vpop.permute.xlu0 %3114
          %3116 = vrot.lane.b32.xlu0 %v3082, 126
          %v3117 = vpop.permute.xlu0 %3116
          %3118 = vrot.lane.b32.xlu0 %v3083, 126
          %v3119 = vpop.permute.xlu0 %3118
          %v3132 = vadd.f32 %v2982, %v3097
          %v3133 = vadd.f32 %v2983, %v3099
          %v3134 = vadd.f32 %v2984, %v3101
          %v3135 = vadd.f32 %v2985, %v3103
          %v3136 = vadd.f32 %v2986, %v3105
          %v3137 = vadd.f32 %v2987, %v3107
          %v3138 = vadd.f32 %v2988, %v3109
          %v3139 = vadd.f32 %v2989, %v3111
          %v3140 = vadd.f32 %v2990, %v3113
          %v3141 = vadd.f32 %v2991, %v3115
          %v3142 = vadd.f32 %v2992, %v3117
          %v3143 = vadd.f32 %v2993, %v3119
          %s3144 = sadd.s32 %s2790, 3
          %s3145 = sld [smem:[#allocation8 + %s3144]]
          %v3146 = vstv %s3145
          %v3147 = vmul.f32 %v3146, %v2777
          %v3148 = vmul.f32 %v3146, %v2778
          %v3149 = vmul.f32 %v3146, %v2779
          %v3150 = vmul.f32 %v3146, %v2780
          %v3151 = vmul.f32 %v3146, %v2781
          %v3152 = vmul.f32 %v3146, %v2782
          %v3153 = vmul.f32 %v3146, %v2783
          %v3154 = vmul.f32 %v3146, %v2784
          %v3155 = vmul.f32 %v3146, %v2785
          %v3156 = vmul.f32 %v3146, %v2786
          %v3157 = vmul.f32 %v3146, %v2787
          %v3158 = vmul.f32 %v3146, %v2788
          %v3159 = vmul.f32 %v3146, %v2789
          %vm3173 = vcmask 1046528
          %v3174 = vrot.slane %v3147, 1
          %v3175 = vrot.slane %v3148, 1
          %v3176 = vsel %vm3173, %v3174, %v3175
          %v3177 = vrot.slane %v3149, 1
          %v3178 = vsel %vm3173, %v3175, %v3177
          %v3179 = vrot.slane %v3150, 1
          %v3180 = vsel %vm3173, %v3177, %v3179
          %v3181 = vrot.slane %v3151, 1
          %v3182 = vsel %vm3173, %v3179, %v3181
          %v3183 = vrot.slane %v3152, 1
          %v3184 = vsel %vm3173, %v3181, %v3183
          %v3185 = vrot.slane %v3153, 1
          %v3186 = vsel %vm3173, %v3183, %v3185
          %v3187 = vrot.slane %v3154, 1
          %v3188 = vsel %vm3173, %v3185, %v3187
          %v3189 = vrot.slane %v3155, 1
          %v3190 = vsel %vm3173, %v3187, %v3189
          %v3191 = vrot.slane %v3156, 1
          %v3192 = vsel %vm3173, %v3189, %v3191
          %v3193 = vrot.slane %v3157, 1
          %v3194 = vsel %vm3173, %v3191, %v3193
          %v3195 = vrot.slane %v3158, 1
          %v3196 = vsel %vm3173, %v3193, %v3195
          %v3197 = vrot.slane %v3159, 1
          %v3198 = vsel %vm3173, %v3195, %v3197
          %v3211 = vadd.f32 %v3057, %v3176
          %v3212 = vadd.f32 %v3058, %v3178
          %v3213 = vadd.f32 %v3059, %v3180
          %v3214 = vadd.f32 %v3060, %v3182
          %v3215 = vadd.f32 %v3061, %v3184
          %v3216 = vadd.f32 %v3062, %v3186
          %v3217 = vadd.f32 %v3063, %v3188
          %v3218 = vadd.f32 %v3064, %v3190
          %v3219 = vadd.f32 %v3065, %v3192
          %v3220 = vadd.f32 %v3066, %v3194
          %v3221 = vadd.f32 %v3067, %v3196
          %v3222 = vadd.f32 %v3068, %v3198
          %s3223 = sadd.s32 %s2790, 183
          %s3224 = sld [smem:[#allocation8 + %s3223]]
          %v3225 = vstv %s3224
          %v3226 = vmul.f32 %v3225, %v2777
          %v3227 = vmul.f32 %v3225, %v2778
          %v3228 = vmul.f32 %v3225, %v2779
          %v3229 = vmul.f32 %v3225, %v2780
          %v3230 = vmul.f32 %v3225, %v2781
          %v3231 = vmul.f32 %v3225, %v2782
          %v3232 = vmul.f32 %v3225, %v2783
          %v3233 = vmul.f32 %v3225, %v2784
          %v3234 = vmul.f32 %v3225, %v2785
          %v3235 = vmul.f32 %v3225, %v2786
          %v3236 = vmul.f32 %v3225, %v2787
          %v3237 = vmul.f32 %v3225, %v2788
          %v3238 = vmul.f32 %v3225, %v2789
          %v3252 = vrot.slane %v3226, 1
          %v3253 = vrot.slane %v3227, 1
          %v3254 = vsel %vm3173, %v3252, %v3253
          %v3255 = vrot.slane %v3228, 1
          %v3256 = vsel %vm3173, %v3253, %v3255
          %v3257 = vrot.slane %v3229, 1
          %v3258 = vsel %vm3173, %v3255, %v3257
          %v3259 = vrot.slane %v3230, 1
          %v3260 = vsel %vm3173, %v3257, %v3259
          %v3261 = vrot.slane %v3231, 1
          %v3262 = vsel %vm3173, %v3259, %v3261
          %v3263 = vrot.slane %v3232, 1
          %v3264 = vsel %vm3173, %v3261, %v3263
          %v3265 = vrot.slane %v3233, 1
          %v3266 = vsel %vm3173, %v3263, %v3265
          %v3267 = vrot.slane %v3234, 1
          %v3268 = vsel %vm3173, %v3265, %v3267
          %v3269 = vrot.slane %v3235, 1
          %v3270 = vsel %vm3173, %v3267, %v3269
          %v3271 = vrot.slane %v3236, 1
          %v3272 = vsel %vm3173, %v3269, %v3271
          %v3273 = vrot.slane %v3237, 1
          %v3274 = vsel %vm3173, %v3271, %v3273
          %v3275 = vrot.slane %v3238, 1
          %v3276 = vsel %vm3173, %v3273, %v3275
          %v3289 = vadd.f32 %v3132, %v3254
          %v3290 = vadd.f32 %v3133, %v3256
          %v3291 = vadd.f32 %v3134, %v3258
          %v3292 = vadd.f32 %v3135, %v3260
          %v3293 = vadd.f32 %v3136, %v3262
          %v3294 = vadd.f32 %v3137, %v3264
          %v3295 = vadd.f32 %v3138, %v3266
          %v3296 = vadd.f32 %v3139, %v3268
          %v3297 = vadd.f32 %v3140, %v3270
          %v3298 = vadd.f32 %v3141, %v3272
          %v3299 = vadd.f32 %v3142, %v3274
          %v3300 = vadd.f32 %v3143, %v3276
          %s3301 = sadd.s32 %s2790, 4
          %s3302 = sld [smem:[#allocation8 + %s3301]]
          %v3303 = vstv %s3302
          %v3304 = vmul.f32 %v3303, %v2777
          %v3305 = vmul.f32 %v3303, %v2778
          %v3306 = vmul.f32 %v3303, %v2779
          %v3307 = vmul.f32 %v3303, %v2780
          %v3308 = vmul.f32 %v3303, %v2781
          %v3309 = vmul.f32 %v3303, %v2782
          %v3310 = vmul.f32 %v3303, %v2783
          %v3311 = vmul.f32 %v3303, %v2784
          %v3312 = vmul.f32 %v3303, %v2785
          %v3313 = vmul.f32 %v3303, %v2786
          %v3314 = vmul.f32 %v3303, %v2787
          %v3315 = vmul.f32 %v3303, %v2788
          %v3316 = vmul.f32 %v3303, %v2789
          %v3330 = vrot.slane %v3304, 1
          %v3331 = vrot.slane %v3305, 1
          %v3332 = vsel %vm3173, %v3330, %v3331
          %v3333 = vrot.slane %v3306, 1
          %v3334 = vsel %vm3173, %v3331, %v3333
          %v3335 = vrot.slane %v3307, 1
          %v3336 = vsel %vm3173, %v3333, %v3335
          %v3337 = vrot.slane %v3308, 1
          %v3338 = vsel %vm3173, %v3335, %v3337
          %v3339 = vrot.slane %v3309, 1
          %v3340 = vsel %vm3173, %v3337, %v3339
          %v3341 = vrot.slane %v3310, 1
          %v3342 = vsel %vm3173, %v3339, %v3341
          %v3343 = vrot.slane %v3311, 1
          %v3344 = vsel %vm3173, %v3341, %v3343
          %v3345 = vrot.slane %v3312, 1
          %v3346 = vsel %vm3173, %v3343, %v3345
          %v3347 = vrot.slane %v3313, 1
          %v3348 = vsel %vm3173, %v3345, %v3347
          %v3349 = vrot.slane %v3314, 1
          %v3350 = vsel %vm3173, %v3347, %v3349
          %v3351 = vrot.slane %v3315, 1
          %v3352 = vsel %vm3173, %v3349, %v3351
          %v3353 = vrot.slane %v3316, 1
          %v3354 = vsel %vm3173, %v3351, %v3353
          %3355 = vrot.lane.b32.xlu0 %v3332, 127
          %v3356 = vpop.permute.xlu0 %3355
          %3357 = vrot.lane.b32.xlu0 %v3334, 127
          %v3358 = vpop.permute.xlu0 %3357
          %3359 = vrot.lane.b32.xlu0 %v3336, 127
          %v3360 = vpop.permute.xlu0 %3359
          %3361 = vrot.lane.b32.xlu0 %v3338, 127
          %v3362 = vpop.permute.xlu0 %3361
          %3363 = vrot.lane.b32.xlu0 %v3340, 127
          %v3364 = vpop.permute.xlu0 %3363
          %3365 = vrot.lane.b32.xlu0 %v3342, 127
          %v3366 = vpop.permute.xlu0 %3365
          %3367 = vrot.lane.b32.xlu0 %v3344, 127
          %v3368 = vpop.permute.xlu0 %3367
          %3369 = vrot.lane.b32.xlu0 %v3346, 127
          %v3370 = vpop.permute.xlu0 %3369
          %3371 = vrot.lane.b32.xlu0 %v3348, 127
          %v3372 = vpop.permute.xlu0 %3371
          %3373 = vrot.lane.b32.xlu0 %v3350, 127
          %v3374 = vpop.permute.xlu0 %3373
          %3375 = vrot.lane.b32.xlu0 %v3352, 127
          %v3376 = vpop.permute.xlu0 %3375
          %3377 = vrot.lane.b32.xlu0 %v3354, 127
          %v3378 = vpop.permute.xlu0 %3377
          %v3391 = vadd.f32 %v3211, %v3356
          %v3392 = vadd.f32 %v3212, %v3358
          %v3393 = vadd.f32 %v3213, %v3360
          %v3394 = vadd.f32 %v3214, %v3362
          %v3395 = vadd.f32 %v3215, %v3364
          %v3396 = vadd.f32 %v3216, %v3366
          %v3397 = vadd.f32 %v3217, %v3368
          %v3398 = vadd.f32 %v3218, %v3370
          %v3399 = vadd.f32 %v3219, %v3372
          %v3400 = vadd.f32 %v3220, %v3374
          %v3401 = vadd.f32 %v3221, %v3376
          %v3402 = vadd.f32 %v3222, %v3378
          %s3403 = sadd.s32 %s2790, 184
          %s3404 = sld [smem:[#allocation8 + %s3403]]
          %v3405 = vstv %s3404
          %v3406 = vmul.f32 %v3405, %v2777
          %v3407 = vmul.f32 %v3405, %v2778
          %v3408 = vmul.f32 %v3405, %v2779
          %v3409 = vmul.f32 %v3405, %v2780
          %v3410 = vmul.f32 %v3405, %v2781
          %v3411 = vmul.f32 %v3405, %v2782
          %v3412 = vmul.f32 %v3405, %v2783
          %v3413 = vmul.f32 %v3405, %v2784
          %v3414 = vmul.f32 %v3405, %v2785
          %v3415 = vmul.f32 %v3405, %v2786
          %v3416 = vmul.f32 %v3405, %v2787
          %v3417 = vmul.f32 %v3405, %v2788
          %v3418 = vmul.f32 %v3405, %v2789
          %v3432 = vrot.slane %v3406, 1
          %v3433 = vrot.slane %v3407, 1
          %v3434 = vsel %vm3173, %v3432, %v3433
          %v3435 = vrot.slane %v3408, 1
          %v3436 = vsel %vm3173, %v3433, %v3435
          %v3437 = vrot.slane %v3409, 1
          %v3438 = vsel %vm3173, %v3435, %v3437
          %v3439 = vrot.slane %v3410, 1
          %v3440 = vsel %vm3173, %v3437, %v3439
          %v3441 = vrot.slane %v3411, 1
          %v3442 = vsel %vm3173, %v3439, %v3441
          %v3443 = vrot.slane %v3412, 1
          %v3444 = vsel %vm3173, %v3441, %v3443
          %v3445 = vrot.slane %v3413, 1
          %v3446 = vsel %vm3173, %v3443, %v3445
          %v3447 = vrot.slane %v3414, 1
          %v3448 = vsel %vm3173, %v3445, %v3447
          %v3449 = vrot.slane %v3415, 1
          %v3450 = vsel %vm3173, %v3447, %v3449
          %v3451 = vrot.slane %v3416, 1
          %v3452 = vsel %vm3173, %v3449, %v3451
          %v3453 = vrot.slane %v3417, 1
          %v3454 = vsel %vm3173, %v3451, %v3453
          %v3455 = vrot.slane %v3418, 1
          %v3456 = vsel %vm3173, %v3453, %v3455
          %3457 = vrot.lane.b32.xlu0 %v3434, 127
          %v3458 = vpop.permute.xlu0 %3457
          %3459 = vrot.lane.b32.xlu0 %v3436, 127
          %v3460 = vpop.permute.xlu0 %3459
          %3461 = vrot.lane.b32.xlu0 %v3438, 127
          %v3462 = vpop.permute.xlu0 %3461
          %3463 = vrot.lane.b32.xlu0 %v3440, 127
          %v3464 = vpop.permute.xlu0 %3463
          %3465 = vrot.lane.b32.xlu0 %v3442, 127
          %v3466 = vpop.permute.xlu0 %3465
          %3467 = vrot.lane.b32.xlu0 %v3444, 127
          %v3468 = vpop.permute.xlu0 %3467
          %3469 = vrot.lane.b32.xlu0 %v3446, 127
          %v3470 = vpop.permute.xlu0 %3469
          %3471 = vrot.lane.b32.xlu0 %v3448, 127
          %v3472 = vpop.permute.xlu0 %3471
          %3473 = vrot.lane.b32.xlu0 %v3450, 127
          %v3474 = vpop.permute.xlu0 %3473
          %3475 = vrot.lane.b32.xlu0 %v3452, 127
          %v3476 = vpop.permute.xlu0 %3475
          %3477 = vrot.lane.b32.xlu0 %v3454, 127
          %v3478 = vpop.permute.xlu0 %3477
          %3479 = vrot.lane.b32.xlu0 %v3456, 127
          %v3480 = vpop.permute.xlu0 %3479
          %v3493 = vadd.f32 %v3289, %v3458
          %v3494 = vadd.f32 %v3290, %v3460
          %v3495 = vadd.f32 %v3291, %v3462
          %v3496 = vadd.f32 %v3292, %v3464
          %v3497 = vadd.f32 %v3293, %v3466
          %v3498 = vadd.f32 %v3294, %v3468
          %v3499 = vadd.f32 %v3295, %v3470
          %v3500 = vadd.f32 %v3296, %v3472
          %v3501 = vadd.f32 %v3297, %v3474
          %v3502 = vadd.f32 %v3298, %v3476
          %v3503 = vadd.f32 %v3299, %v3478
          %v3504 = vadd.f32 %v3300, %v3480
          %s3505 = sadd.s32 %s2790, 5
          %s3506 = sld [smem:[#allocation8 + %s3505]]
          %v3507 = vstv %s3506
          %v3508 = vmul.f32 %v3507, %v2777
          %v3509 = vmul.f32 %v3507, %v2778
          %v3510 = vmul.f32 %v3507, %v2779
          %v3511 = vmul.f32 %v3507, %v2780
          %v3512 = vmul.f32 %v3507, %v2781
          %v3513 = vmul.f32 %v3507, %v2782
          %v3514 = vmul.f32 %v3507, %v2783
          %v3515 = vmul.f32 %v3507, %v2784
          %v3516 = vmul.f32 %v3507, %v2785
          %v3517 = vmul.f32 %v3507, %v2786
          %v3518 = vmul.f32 %v3507, %v2787
          %v3519 = vmul.f32 %v3507, %v2788
          %v3520 = vmul.f32 %v3507, %v2789
          %v3534 = vrot.slane %v3508, 1
          %v3535 = vrot.slane %v3509, 1
          %v3536 = vsel %vm3173, %v3534, %v3535
          %v3537 = vrot.slane %v3510, 1
          %v3538 = vsel %vm3173, %v3535, %v3537
          %v3539 = vrot.slane %v3511, 1
          %v3540 = vsel %vm3173, %v3537, %v3539
          %v3541 = vrot.slane %v3512, 1
          %v3542 = vsel %vm3173, %v3539, %v3541
          %v3543 = vrot.slane %v3513, 1
          %v3544 = vsel %vm3173, %v3541, %v3543
          %v3545 = vrot.slane %v3514, 1
          %v3546 = vsel %vm3173, %v3543, %v3545
          %v3547 = vrot.slane %v3515, 1
          %v3548 = vsel %vm3173, %v3545, %v3547
          %v3549 = vrot.slane %v3516, 1
          %v3550 = vsel %vm3173, %v3547, %v3549
          %v3551 = vrot.slane %v3517, 1
          %v3552 = vsel %vm3173, %v3549, %v3551
          %v3553 = vrot.slane %v3518, 1
          %v3554 = vsel %vm3173, %v3551, %v3553
          %v3555 = vrot.slane %v3519, 1
          %v3556 = vsel %vm3173, %v3553, %v3555
          %v3557 = vrot.slane %v3520, 1
          %v3558 = vsel %vm3173, %v3555, %v3557
          %3559 = vrot.lane.b32.xlu0 %v3536, 126
          %v3560 = vpop.permute.xlu0 %3559
          %3561 = vrot.lane.b32.xlu0 %v3538, 126
          %v3562 = vpop.permute.xlu0 %3561
          %3563 = vrot.lane.b32.xlu0 %v3540, 126
          %v3564 = vpop.permute.xlu0 %3563
          %3565 = vrot.lane.b32.xlu0 %v3542, 126
          %v3566 = vpop.permute.xlu0 %3565
          %3567 = vrot.lane.b32.xlu0 %v3544, 126
          %v3568 = vpop.permute.xlu0 %3567
          %3569 = vrot.lane.b32.xlu0 %v3546, 126
          %v3570 = vpop.permute.xlu0 %3569
          %3571 = vrot.lane.b32.xlu0 %v3548, 126
          %v3572 = vpop.permute.xlu0 %3571
          %3573 = vrot.lane.b32.xlu0 %v3550, 126
          %v3574 = vpop.permute.xlu0 %3573
          %3575 = vrot.lane.b32.xlu0 %v3552, 126
          %v3576 = vpop.permute.xlu0 %3575
          %3577 = vrot.lane.b32.xlu0 %v3554, 126
          %v3578 = vpop.permute.xlu0 %3577
          %3579 = vrot.lane.b32.xlu0 %v3556, 126
          %v3580 = vpop.permute.xlu0 %3579
          %3581 = vrot.lane.b32.xlu0 %v3558, 126
          %v3582 = vpop.permute.xlu0 %3581
          %v3595 = vadd.f32 %v3391, %v3560
          %v3596 = vadd.f32 %v3392, %v3562
          %v3597 = vadd.f32 %v3393, %v3564
          %v3598 = vadd.f32 %v3394, %v3566
          %v3599 = vadd.f32 %v3395, %v3568
          %v3600 = vadd.f32 %v3396, %v3570
          %v3601 = vadd.f32 %v3397, %v3572
          %v3602 = vadd.f32 %v3398, %v3574
          %v3603 = vadd.f32 %v3399, %v3576
          %v3604 = vadd.f32 %v3400, %v3578
          %v3605 = vadd.f32 %v3401, %v3580
          %v3606 = vadd.f32 %v3402, %v3582
          %s3607 = sadd.s32 %s2790, 185
          %s3608 = sld [smem:[#allocation8 + %s3607]]
          %v3609 = vstv %s3608
          %v3610 = vmul.f32 %v3609, %v2777
          %v3611 = vmul.f32 %v3609, %v2778
          %v3612 = vmul.f32 %v3609, %v2779
          %v3613 = vmul.f32 %v3609, %v2780
          %v3614 = vmul.f32 %v3609, %v2781
          %v3615 = vmul.f32 %v3609, %v2782
          %v3616 = vmul.f32 %v3609, %v2783
          %v3617 = vmul.f32 %v3609, %v2784
          %v3618 = vmul.f32 %v3609, %v2785
          %v3619 = vmul.f32 %v3609, %v2786
          %v3620 = vmul.f32 %v3609, %v2787
          %v3621 = vmul.f32 %v3609, %v2788
          %v3622 = vmul.f32 %v3609, %v2789
          %v3636 = vrot.slane %v3610, 1
          %v3637 = vrot.slane %v3611, 1
          %v3638 = vsel %vm3173, %v3636, %v3637
          %v3639 = vrot.slane %v3612, 1
          %v3640 = vsel %vm3173, %v3637, %v3639
          %v3641 = vrot.slane %v3613, 1
          %v3642 = vsel %vm3173, %v3639, %v3641
          %v3643 = vrot.slane %v3614, 1
          %v3644 = vsel %vm3173, %v3641, %v3643
          %v3645 = vrot.slane %v3615, 1
          %v3646 = vsel %vm3173, %v3643, %v3645
          %v3647 = vrot.slane %v3616, 1
          %v3648 = vsel %vm3173, %v3645, %v3647
          %v3649 = vrot.slane %v3617, 1
          %v3650 = vsel %vm3173, %v3647, %v3649
          %v3651 = vrot.slane %v3618, 1
          %v3652 = vsel %vm3173, %v3649, %v3651
          %v3653 = vrot.slane %v3619, 1
          %v3654 = vsel %vm3173, %v3651, %v3653
          %v3655 = vrot.slane %v3620, 1
          %v3656 = vsel %vm3173, %v3653, %v3655
          %v3657 = vrot.slane %v3621, 1
          %v3658 = vsel %vm3173, %v3655, %v3657
          %v3659 = vrot.slane %v3622, 1
          %v3660 = vsel %vm3173, %v3657, %v3659
          %3661 = vrot.lane.b32.xlu0 %v3638, 126
          %v3662 = vpop.permute.xlu0 %3661
          %3663 = vrot.lane.b32.xlu0 %v3640, 126
          %v3664 = vpop.permute.xlu0 %3663
          %3665 = vrot.lane.b32.xlu0 %v3642, 126
          %v3666 = vpop.permute.xlu0 %3665
          %3667 = vrot.lane.b32.xlu0 %v3644, 126
          %v3668 = vpop.permute.xlu0 %3667
          %3669 = vrot.lane.b32.xlu0 %v3646, 126
          %v3670 = vpop.permute.xlu0 %3669
          %3671 = vrot.lane.b32.xlu0 %v3648, 126
          %v3672 = vpop.permute.xlu0 %3671
          %3673 = vrot.lane.b32.xlu0 %v3650, 126
          %v3674 = vpop.permute.xlu0 %3673
          %3675 = vrot.lane.b32.xlu0 %v3652, 126
          %v3676 = vpop.permute.xlu0 %3675
          %3677 = vrot.lane.b32.xlu0 %v3654, 126
          %v3678 = vpop.permute.xlu0 %3677
          %3679 = vrot.lane.b32.xlu0 %v3656, 126
          %v3680 = vpop.permute.xlu0 %3679
          %3681 = vrot.lane.b32.xlu0 %v3658, 126
          %v3682 = vpop.permute.xlu0 %3681
          %3683 = vrot.lane.b32.xlu0 %v3660, 126
          %v3684 = vpop.permute.xlu0 %3683
          %v3697 = vadd.f32 %v3493, %v3662
          %v3698 = vadd.f32 %v3494, %v3664
          %v3699 = vadd.f32 %v3495, %v3666
          %v3700 = vadd.f32 %v3496, %v3668
          %v3701 = vadd.f32 %v3497, %v3670
          %v3702 = vadd.f32 %v3498, %v3672
          %v3703 = vadd.f32 %v3499, %v3674
          %v3704 = vadd.f32 %v3500, %v3676
          %v3705 = vadd.f32 %v3501, %v3678
          %v3706 = vadd.f32 %v3502, %v3680
          %v3707 = vadd.f32 %v3503, %v3682
          %v3708 = vadd.f32 %v3504, %v3684
          %s3709 = sadd.s32 %s2790, 6
          %s3710 = sld [smem:[#allocation8 + %s3709]]
          %v3711 = vstv %s3710
          %v3712 = vmul.f32 %v3711, %v2777
          %v3713 = vmul.f32 %v3711, %v2778
          %v3714 = vmul.f32 %v3711, %v2779
          %v3715 = vmul.f32 %v3711, %v2780
          %v3716 = vmul.f32 %v3711, %v2781
          %v3717 = vmul.f32 %v3711, %v2782
          %v3718 = vmul.f32 %v3711, %v2783
          %v3719 = vmul.f32 %v3711, %v2784
          %v3720 = vmul.f32 %v3711, %v2785
          %v3721 = vmul.f32 %v3711, %v2786
          %v3722 = vmul.f32 %v3711, %v2787
          %v3723 = vmul.f32 %v3711, %v2788
          %v3724 = vmul.f32 %v3711, %v2789
          %vm3738 = vcmask 1045504
          %v3739 = vrot.slane %v3712, 2
          %v3740 = vrot.slane %v3713, 2
          %v3741 = vsel %vm3738, %v3739, %v3740
          %v3742 = vrot.slane %v3714, 2
          %v3743 = vsel %vm3738, %v3740, %v3742
          %v3744 = vrot.slane %v3715, 2
          %v3745 = vsel %vm3738, %v3742, %v3744
          %v3746 = vrot.slane %v3716, 2
          %v3747 = vsel %vm3738, %v3744, %v3746
          %v3748 = vrot.slane %v3717, 2
          %v3749 = vsel %vm3738, %v3746, %v3748
          %v3750 = vrot.slane %v3718, 2
          %v3751 = vsel %vm3738, %v3748, %v3750
          %v3752 = vrot.slane %v3719, 2
          %v3753 = vsel %vm3738, %v3750, %v3752
          %v3754 = vrot.slane %v3720, 2
          %v3755 = vsel %vm3738, %v3752, %v3754
          %v3756 = vrot.slane %v3721, 2
          %v3757 = vsel %vm3738, %v3754, %v3756
          %v3758 = vrot.slane %v3722, 2
          %v3759 = vsel %vm3738, %v3756, %v3758
          %v3760 = vrot.slane %v3723, 2
          %v3761 = vsel %vm3738, %v3758, %v3760
          %v3762 = vrot.slane %v3724, 2
          %v3763 = vsel %vm3738, %v3760, %v3762
          %v3776 = vadd.f32 %v3595, %v3741
          %v3777 = vadd.f32 %v3596, %v3743
          %v3778 = vadd.f32 %v3597, %v3745
          %v3779 = vadd.f32 %v3598, %v3747
          %v3780 = vadd.f32 %v3599, %v3749
          %v3781 = vadd.f32 %v3600, %v3751
          %v3782 = vadd.f32 %v3601, %v3753
          %v3783 = vadd.f32 %v3602, %v3755
          %v3784 = vadd.f32 %v3603, %v3757
          %v3785 = vadd.f32 %v3604, %v3759
          %v3786 = vadd.f32 %v3605, %v3761
          %v3787 = vadd.f32 %v3606, %v3763
          %s3788 = sadd.s32 %s2790, 186
          %s3789 = sld [smem:[#allocation8 + %s3788]]
          %v3790 = vstv %s3789
          %v3791 = vmul.f32 %v3790, %v2777
          %v3792 = vmul.f32 %v3790, %v2778
          %v3793 = vmul.f32 %v3790, %v2779
          %v3794 = vmul.f32 %v3790, %v2780
          %v3795 = vmul.f32 %v3790, %v2781
          %v3796 = vmul.f32 %v3790, %v2782
          %v3797 = vmul.f32 %v3790, %v2783
          %v3798 = vmul.f32 %v3790, %v2784
          %v3799 = vmul.f32 %v3790, %v2785
          %v3800 = vmul.f32 %v3790, %v2786
          %v3801 = vmul.f32 %v3790, %v2787
          %v3802 = vmul.f32 %v3790, %v2788
          %v3803 = vmul.f32 %v3790, %v2789
          %v3817 = vrot.slane %v3791, 2
          %v3818 = vrot.slane %v3792, 2
          %v3819 = vsel %vm3738, %v3817, %v3818
          %v3820 = vrot.slane %v3793, 2
          %v3821 = vsel %vm3738, %v3818, %v3820
          %v3822 = vrot.slane %v3794, 2
          %v3823 = vsel %vm3738, %v3820, %v3822
          %v3824 = vrot.slane %v3795, 2
          %v3825 = vsel %vm3738, %v3822, %v3824
          %v3826 = vrot.slane %v3796, 2
          %v3827 = vsel %vm3738, %v3824, %v3826
          %v3828 = vrot.slane %v3797, 2
          %v3829 = vsel %vm3738, %v3826, %v3828
          %v3830 = vrot.slane %v3798, 2
          %v3831 = vsel %vm3738, %v3828, %v3830
          %v3832 = vrot.slane %v3799, 2
          %v3833 = vsel %vm3738, %v3830, %v3832
          %v3834 = vrot.slane %v3800, 2
          %v3835 = vsel %vm3738, %v3832, %v3834
          %v3836 = vrot.slane %v3801, 2
          %v3837 = vsel %vm3738, %v3834, %v3836
          %v3838 = vrot.slane %v3802, 2
          %v3839 = vsel %vm3738, %v3836, %v3838
          %v3840 = vrot.slane %v3803, 2
          %v3841 = vsel %vm3738, %v3838, %v3840
          %v3854 = vadd.f32 %v3697, %v3819
          %v3855 = vadd.f32 %v3698, %v3821
          %v3856 = vadd.f32 %v3699, %v3823
          %v3857 = vadd.f32 %v3700, %v3825
          %v3858 = vadd.f32 %v3701, %v3827
          %v3859 = vadd.f32 %v3702, %v3829
          %v3860 = vadd.f32 %v3703, %v3831
          %v3861 = vadd.f32 %v3704, %v3833
          %v3862 = vadd.f32 %v3705, %v3835
          %v3863 = vadd.f32 %v3706, %v3837
          %v3864 = vadd.f32 %v3707, %v3839
          %v3865 = vadd.f32 %v3708, %v3841
          %s3866 = sadd.s32 %s2790, 7
          %s3867 = sld [smem:[#allocation8 + %s3866]]
          %v3868 = vstv %s3867
          %v3869 = vmul.f32 %v3868, %v2777
          %v3870 = vmul.f32 %v3868, %v2778
          %v3871 = vmul.f32 %v3868, %v2779
          %v3872 = vmul.f32 %v3868, %v2780
          %v3873 = vmul.f32 %v3868, %v2781
          %v3874 = vmul.f32 %v3868, %v2782
          %v3875 = vmul.f32 %v3868, %v2783
          %v3876 = vmul.f32 %v3868, %v2784
          %v3877 = vmul.f32 %v3868, %v2785
          %v3878 = vmul.f32 %v3868, %v2786
          %v3879 = vmul.f32 %v3868, %v2787
          %v3880 = vmul.f32 %v3868, %v2788
          %v3881 = vmul.f32 %v3868, %v2789
          %v3895 = vrot.slane %v3869, 2
          %v3896 = vrot.slane %v3870, 2
          %v3897 = vsel %vm3738, %v3895, %v3896
          %v3898 = vrot.slane %v3871, 2
          %v3899 = vsel %vm3738, %v3896, %v3898
          %v3900 = vrot.slane %v3872, 2
          %v3901 = vsel %vm3738, %v3898, %v3900
          %v3902 = vrot.slane %v3873, 2
          %v3903 = vsel %vm3738, %v3900, %v3902
          %v3904 = vrot.slane %v3874, 2
          %v3905 = vsel %vm3738, %v3902, %v3904
          %v3906 = vrot.slane %v3875, 2
          %v3907 = vsel %vm3738, %v3904, %v3906
          %v3908 = vrot.slane %v3876, 2
          %v3909 = vsel %vm3738, %v3906, %v3908
          %v3910 = vrot.slane %v3877, 2
          %v3911 = vsel %vm3738, %v3908, %v3910
          %v3912 = vrot.slane %v3878, 2
          %v3913 = vsel %vm3738, %v3910, %v3912
          %v3914 = vrot.slane %v3879, 2
          %v3915 = vsel %vm3738, %v3912, %v3914
          %v3916 = vrot.slane %v3880, 2
          %v3917 = vsel %vm3738, %v3914, %v3916
          %v3918 = vrot.slane %v3881, 2
          %v3919 = vsel %vm3738, %v3916, %v3918
          %3920 = vrot.lane.b32.xlu0 %v3897, 127
          %v3921 = vpop.permute.xlu0 %3920
          %3922 = vrot.lane.b32.xlu0 %v3899, 127
          %v3923 = vpop.permute.xlu0 %3922
          %3924 = vrot.lane.b32.xlu0 %v3901, 127
          %v3925 = vpop.permute.xlu0 %3924
          %3926 = vrot.lane.b32.xlu0 %v3903, 127
          %v3927 = vpop.permute.xlu0 %3926
          %3928 = vrot.lane.b32.xlu0 %v3905, 127
          %v3929 = vpop.permute.xlu0 %3928
          %3930 = vrot.lane.b32.xlu0 %v3907, 127
          %v3931 = vpop.permute.xlu0 %3930
          %3932 = vrot.lane.b32.xlu0 %v3909, 127
          %v3933 = vpop.permute.xlu0 %3932
          %3934 = vrot.lane.b32.xlu0 %v3911, 127
          %v3935 = vpop.permute.xlu0 %3934
          %3936 = vrot.lane.b32.xlu0 %v3913, 127
          %v3937 = vpop.permute.xlu0 %3936
          %3938 = vrot.lane.b32.xlu0 %v3915, 127
          %v3939 = vpop.permute.xlu0 %3938
          %3940 = vrot.lane.b32.xlu0 %v3917, 127
          %v3941 = vpop.permute.xlu0 %3940
          %3942 = vrot.lane.b32.xlu0 %v3919, 127
          %v3943 = vpop.permute.xlu0 %3942
          %v3956 = vadd.f32 %v3776, %v3921
          %v3957 = vadd.f32 %v3777, %v3923
          %v3958 = vadd.f32 %v3778, %v3925
          %v3959 = vadd.f32 %v3779, %v3927
          %v3960 = vadd.f32 %v3780, %v3929
          %v3961 = vadd.f32 %v3781, %v3931
          %v3962 = vadd.f32 %v3782, %v3933
          %v3963 = vadd.f32 %v3783, %v3935
          %v3964 = vadd.f32 %v3784, %v3937
          %v3965 = vadd.f32 %v3785, %v3939
          %v3966 = vadd.f32 %v3786, %v3941
          %v3967 = vadd.f32 %v3787, %v3943
          %s3968 = sadd.s32 %s2790, 187
          %s3969 = sld [smem:[#allocation8 + %s3968]]
          %v3970 = vstv %s3969
          %v3971 = vmul.f32 %v3970, %v2777
          %v3972 = vmul.f32 %v3970, %v2778
          %v3973 = vmul.f32 %v3970, %v2779
          %v3974 = vmul.f32 %v3970, %v2780
          %v3975 = vmul.f32 %v3970, %v2781
          %v3976 = vmul.f32 %v3970, %v2782
          %v3977 = vmul.f32 %v3970, %v2783
          %v3978 = vmul.f32 %v3970, %v2784
          %v3979 = vmul.f32 %v3970, %v2785
          %v3980 = vmul.f32 %v3970, %v2786
          %v3981 = vmul.f32 %v3970, %v2787
          %v3982 = vmul.f32 %v3970, %v2788
          %v3983 = vmul.f32 %v3970, %v2789
          %v3997 = vrot.slane %v3971, 2
          %v3998 = vrot.slane %v3972, 2
          %v3999 = vsel %vm3738, %v3997, %v3998
          %v4000 = vrot.slane %v3973, 2
          %v4001 = vsel %vm3738, %v3998, %v4000
          %v4002 = vrot.slane %v3974, 2
          %v4003 = vsel %vm3738, %v4000, %v4002
          %v4004 = vrot.slane %v3975, 2
          %v4005 = vsel %vm3738, %v4002, %v4004
          %v4006 = vrot.slane %v3976, 2
          %v4007 = vsel %vm3738, %v4004, %v4006
          %v4008 = vrot.slane %v3977, 2
          %v4009 = vsel %vm3738, %v4006, %v4008
          %v4010 = vrot.slane %v3978, 2
          %v4011 = vsel %vm3738, %v4008, %v4010
          %v4012 = vrot.slane %v3979, 2
          %v4013 = vsel %vm3738, %v4010, %v4012
          %v4014 = vrot.slane %v3980, 2
          %v4015 = vsel %vm3738, %v4012, %v4014
          %v4016 = vrot.slane %v3981, 2
          %v4017 = vsel %vm3738, %v4014, %v4016
          %v4018 = vrot.slane %v3982, 2
          %v4019 = vsel %vm3738, %v4016, %v4018
          %v4020 = vrot.slane %v3983, 2
          %v4021 = vsel %vm3738, %v4018, %v4020
          %4022 = vrot.lane.b32.xlu0 %v3999, 127
          %v4023 = vpop.permute.xlu0 %4022
          %4024 = vrot.lane.b32.xlu0 %v4001, 127
          %v4025 = vpop.permute.xlu0 %4024
          %4026 = vrot.lane.b32.xlu0 %v4003, 127
          %v4027 = vpop.permute.xlu0 %4026
          %4028 = vrot.lane.b32.xlu0 %v4005, 127
          %v4029 = vpop.permute.xlu0 %4028
          %4030 = vrot.lane.b32.xlu0 %v4007, 127
          %v4031 = vpop.permute.xlu0 %4030
          %4032 = vrot.lane.b32.xlu0 %v4009, 127
          %v4033 = vpop.permute.xlu0 %4032
          %4034 = vrot.lane.b32.xlu0 %v4011, 127
          %v4035 = vpop.permute.xlu0 %4034
          %4036 = vrot.lane.b32.xlu0 %v4013, 127
          %v4037 = vpop.permute.xlu0 %4036
          %4038 = vrot.lane.b32.xlu0 %v4015, 127
          %v4039 = vpop.permute.xlu0 %4038
          %4040 = vrot.lane.b32.xlu0 %v4017, 127
          %v4041 = vpop.permute.xlu0 %4040
          %4042 = vrot.lane.b32.xlu0 %v4019, 127
          %v4043 = vpop.permute.xlu0 %4042
          %4044 = vrot.lane.b32.xlu0 %v4021, 127
          %v4045 = vpop.permute.xlu0 %4044
          %v4058 = vadd.f32 %v3854, %v4023
          %v4059 = vadd.f32 %v3855, %v4025
          %v4060 = vadd.f32 %v3856, %v4027
          %v4061 = vadd.f32 %v3857, %v4029
          %v4062 = vadd.f32 %v3858, %v4031
          %v4063 = vadd.f32 %v3859, %v4033
          %v4064 = vadd.f32 %v3860, %v4035
          %v4065 = vadd.f32 %v3861, %v4037
          %v4066 = vadd.f32 %v3862, %v4039
          %v4067 = vadd.f32 %v3863, %v4041
          %v4068 = vadd.f32 %v3864, %v4043
          %v4069 = vadd.f32 %v3865, %v4045
          %s4070 = sadd.s32 %s2790, 8
          %s4071 = sld [smem:[#allocation8 + %s4070]]
          %v4072 = vstv %s4071
          %v4073 = vmul.f32 %v4072, %v2777
          %v4074 = vmul.f32 %v4072, %v2778
          %v4075 = vmul.f32 %v4072, %v2779
          %v4076 = vmul.f32 %v4072, %v2780
          %v4077 = vmul.f32 %v4072, %v2781
          %v4078 = vmul.f32 %v4072, %v2782
          %v4079 = vmul.f32 %v4072, %v2783
          %v4080 = vmul.f32 %v4072, %v2784
          %v4081 = vmul.f32 %v4072, %v2785
          %v4082 = vmul.f32 %v4072, %v2786
          %v4083 = vmul.f32 %v4072, %v2787
          %v4084 = vmul.f32 %v4072, %v2788
          %v4085 = vmul.f32 %v4072, %v2789
          %v4099 = vrot.slane %v4073, 2
          %v4100 = vrot.slane %v4074, 2
          %v4101 = vsel %vm3738, %v4099, %v4100
          %v4102 = vrot.slane %v4075, 2
          %v4103 = vsel %vm3738, %v4100, %v4102
          %v4104 = vrot.slane %v4076, 2
          %v4105 = vsel %vm3738, %v4102, %v4104
          %v4106 = vrot.slane %v4077, 2
          %v4107 = vsel %vm3738, %v4104, %v4106
          %v4108 = vrot.slane %v4078, 2
          %v4109 = vsel %vm3738, %v4106, %v4108
          %v4110 = vrot.slane %v4079, 2
          %v4111 = vsel %vm3738, %v4108, %v4110
          %v4112 = vrot.slane %v4080, 2
          %v4113 = vsel %vm3738, %v4110, %v4112
          %v4114 = vrot.slane %v4081, 2
          %v4115 = vsel %vm3738, %v4112, %v4114
          %v4116 = vrot.slane %v4082, 2
          %v4117 = vsel %vm3738, %v4114, %v4116
          %v4118 = vrot.slane %v4083, 2
          %v4119 = vsel %vm3738, %v4116, %v4118
          %v4120 = vrot.slane %v4084, 2
          %v4121 = vsel %vm3738, %v4118, %v4120
          %v4122 = vrot.slane %v4085, 2
          %v4123 = vsel %vm3738, %v4120, %v4122
          %4124 = vrot.lane.b32.xlu0 %v4101, 126
          %v4125 = vpop.permute.xlu0 %4124
          %4126 = vrot.lane.b32.xlu0 %v4103, 126
          %v4127 = vpop.permute.xlu0 %4126
          %4128 = vrot.lane.b32.xlu0 %v4105, 126
          %v4129 = vpop.permute.xlu0 %4128
          %4130 = vrot.lane.b32.xlu0 %v4107, 126
          %v4131 = vpop.permute.xlu0 %4130
          %4132 = vrot.lane.b32.xlu0 %v4109, 126
          %v4133 = vpop.permute.xlu0 %4132
          %4134 = vrot.lane.b32.xlu0 %v4111, 126
          %v4135 = vpop.permute.xlu0 %4134
          %4136 = vrot.lane.b32.xlu0 %v4113, 126
          %v4137 = vpop.permute.xlu0 %4136
          %4138 = vrot.lane.b32.xlu0 %v4115, 126
          %v4139 = vpop.permute.xlu0 %4138
          %4140 = vrot.lane.b32.xlu0 %v4117, 126
          %v4141 = vpop.permute.xlu0 %4140
          %4142 = vrot.lane.b32.xlu0 %v4119, 126
          %v4143 = vpop.permute.xlu0 %4142
          %4144 = vrot.lane.b32.xlu0 %v4121, 126
          %v4145 = vpop.permute.xlu0 %4144
          %4146 = vrot.lane.b32.xlu0 %v4123, 126
          %v4147 = vpop.permute.xlu0 %4146
          %v4160 = vadd.f32 %v3956, %v4125
          %v4161 = vadd.f32 %v3957, %v4127
          %v4162 = vadd.f32 %v3958, %v4129
          %v4163 = vadd.f32 %v3959, %v4131
          %v4164 = vadd.f32 %v3960, %v4133
          %v4165 = vadd.f32 %v3961, %v4135
          %v4166 = vadd.f32 %v3962, %v4137
          %v4167 = vadd.f32 %v3963, %v4139
          %v4168 = vadd.f32 %v3964, %v4141
          %v4169 = vadd.f32 %v3965, %v4143
          %v4170 = vadd.f32 %v3966, %v4145
          %v4171 = vadd.f32 %v3967, %v4147
          %s4172 = sadd.s32 %s2790, 188
          %s4173 = sld [smem:[#allocation8 + %s4172]]
          %v4174 = vstv %s4173
          %v4175 = vmul.f32 %v4174, %v2777
          %v4176 = vmul.f32 %v4174, %v2778
          %v4177 = vmul.f32 %v4174, %v2779
          %v4178 = vmul.f32 %v4174, %v2780
          %v4179 = vmul.f32 %v4174, %v2781
          %v4180 = vmul.f32 %v4174, %v2782
          %v4181 = vmul.f32 %v4174, %v2783
          %v4182 = vmul.f32 %v4174, %v2784
          %v4183 = vmul.f32 %v4174, %v2785
          %v4184 = vmul.f32 %v4174, %v2786
          %v4185 = vmul.f32 %v4174, %v2787
          %v4186 = vmul.f32 %v4174, %v2788
          %v4187 = vmul.f32 %v4174, %v2789
          %v4201 = vrot.slane %v4175, 2
          %v4202 = vrot.slane %v4176, 2
          %v4203 = vsel %vm3738, %v4201, %v4202
          %v4204 = vrot.slane %v4177, 2
          %v4205 = vsel %vm3738, %v4202, %v4204
          %v4206 = vrot.slane %v4178, 2
          %v4207 = vsel %vm3738, %v4204, %v4206
          %v4208 = vrot.slane %v4179, 2
          %v4209 = vsel %vm3738, %v4206, %v4208
          %v4210 = vrot.slane %v4180, 2
          %v4211 = vsel %vm3738, %v4208, %v4210
          %v4212 = vrot.slane %v4181, 2
          %v4213 = vsel %vm3738, %v4210, %v4212
          %v4214 = vrot.slane %v4182, 2
          %v4215 = vsel %vm3738, %v4212, %v4214
          %v4216 = vrot.slane %v4183, 2
          %v4217 = vsel %vm3738, %v4214, %v4216
          %v4218 = vrot.slane %v4184, 2
          %v4219 = vsel %vm3738, %v4216, %v4218
          %v4220 = vrot.slane %v4185, 2
          %v4221 = vsel %vm3738, %v4218, %v4220
          %v4222 = vrot.slane %v4186, 2
          %v4223 = vsel %vm3738, %v4220, %v4222
          %v4224 = vrot.slane %v4187, 2
          %v4225 = vsel %vm3738, %v4222, %v4224
          %4226 = vrot.lane.b32.xlu0 %v4203, 126
          %v4227 = vpop.permute.xlu0 %4226
          %4228 = vrot.lane.b32.xlu0 %v4205, 126
          %v4229 = vpop.permute.xlu0 %4228
          %4230 = vrot.lane.b32.xlu0 %v4207, 126
          %v4231 = vpop.permute.xlu0 %4230
          %4232 = vrot.lane.b32.xlu0 %v4209, 126
          %v4233 = vpop.permute.xlu0 %4232
          %4234 = vrot.lane.b32.xlu0 %v4211, 126
          %v4235 = vpop.permute.xlu0 %4234
          %4236 = vrot.lane.b32.xlu0 %v4213, 126
          %v4237 = vpop.permute.xlu0 %4236
          %4238 = vrot.lane.b32.xlu0 %v4215, 126
          %v4239 = vpop.permute.xlu0 %4238
          %4240 = vrot.lane.b32.xlu0 %v4217, 126
          %v4241 = vpop.permute.xlu0 %4240
          %4242 = vrot.lane.b32.xlu0 %v4219, 126
          %v4243 = vpop.permute.xlu0 %4242
          %4244 = vrot.lane.b32.xlu0 %v4221, 126
          %v4245 = vpop.permute.xlu0 %4244
          %4246 = vrot.lane.b32.xlu0 %v4223, 126
          %v4247 = vpop.permute.xlu0 %4246
          %4248 = vrot.lane.b32.xlu0 %v4225, 126
          %v4249 = vpop.permute.xlu0 %4248
          %v4262 = vadd.f32 %v4058, %v4227
          %v4263 = vadd.f32 %v4059, %v4229
          %v4264 = vadd.f32 %v4060, %v4231
          %v4265 = vadd.f32 %v4061, %v4233
          %v4266 = vadd.f32 %v4062, %v4235
          %v4267 = vadd.f32 %v4063, %v4237
          %v4268 = vadd.f32 %v4064, %v4239
          %v4269 = vadd.f32 %v4065, %v4241
          %v4270 = vadd.f32 %v4066, %v4243
          %v4271 = vadd.f32 %v4067, %v4245
          %v4272 = vadd.f32 %v4068, %v4247
          %v4273 = vadd.f32 %v4069, %v4249
        $region76: #{cnn_model_forward.1} parent=47 // loop_footer
          %s2750 = sadd.s32 1, %s2746
        $region77: #{cnn_model_forward.1} parent=47 // loop_footer_branch
          %2745 = sbr.rel target = $region73
        $region78: #{cnn_model_forward.1} parent=47 // loop_exit
          _
        %s4274 = sld [smem:[#allocation9]]
        %v4275 = vstv %s4274
        %v4276 = vadd.f32 %v2751, %v4275
        %v4277 = vadd.f32 %v2752, %v4275
        %v4278 = vadd.f32 %v2753, %v4275
        %v4279 = vadd.f32 %v2754, %v4275
        %v4280 = vadd.f32 %v2755, %v4275
        %v4281 = vadd.f32 %v2756, %v4275
        %v4282 = vadd.f32 %v2757, %v4275
        %v4283 = vadd.f32 %v2758, %v4275
        %v4284 = vadd.f32 %v2759, %v4275
        %v4285 = vadd.f32 %v2760, %v4275
        %v4286 = vadd.f32 %v2761, %v4275
        %v4287 = vadd.f32 %v2762, %v4275
        %v4288 = vmax.f32 %v4276, 0.0
        %v4289 = vmax.f32 %v4277, 0.0
        %v4290 = vmax.f32 %v4278, 0.0
        %v4291 = vmax.f32 %v4279, 0.0
        %v4292 = vmax.f32 %v4280, 0.0
        %v4293 = vmax.f32 %v4281, 0.0
        %v4294 = vmax.f32 %v4282, 0.0
        %v4295 = vmax.f32 %v4283, 0.0
        %v4296 = vmax.f32 %v4284, 0.0
        %v4297 = vmax.f32 %v4285, 0.0
        %v4298 = vmax.f32 %v4286, 0.0
        %v4299 = vmax.f32 %v4287, 0.0
        %s4300 = sld [smem:[#allocation9 + $0x1]]
        %v4301 = vstv %s4300
        %v4302 = vadd.f32 %v2763, %v4301
        %v4303 = vadd.f32 %v2764, %v4301
        %v4304 = vadd.f32 %v2765, %v4301
        %v4305 = vadd.f32 %v2766, %v4301
        %v4306 = vadd.f32 %v2767, %v4301
        %v4307 = vadd.f32 %v2768, %v4301
        %v4308 = vadd.f32 %v2769, %v4301
        %v4309 = vadd.f32 %v2770, %v4301
        %v4310 = vadd.f32 %v2771, %v4301
        %v4311 = vadd.f32 %v2772, %v4301
        %v4312 = vadd.f32 %v2773, %v4301
        %v4313 = vadd.f32 %v2774, %v4301
        %v4314 = vmax.f32 %v4302, 0.0
        %v4315 = vmax.f32 %v4303, 0.0
        %v4316 = vmax.f32 %v4304, 0.0
        %v4317 = vmax.f32 %v4305, 0.0
        %v4318 = vmax.f32 %v4306, 0.0
        %v4319 = vmax.f32 %v4307, 0.0
        %v4320 = vmax.f32 %v4308, 0.0
        %v4321 = vmax.f32 %v4309, 0.0
        %v4322 = vmax.f32 %v4310, 0.0
        %v4323 = vmax.f32 %v4311, 0.0
        %v4324 = vmax.f32 %v4312, 0.0
        %v4325 = vmax.f32 %v4313, 0.0
        %v4326 = vld [vmem:[%s5] sm:$0xff]
        %v4327 = vld [vmem:[%s5 + $0x8] sm:$0xff]
        %v4328 = vld [vmem:[%s5 + $0x10] sm:$0xff]
        %v4329 = vld [vmem:[%s5 + $0x18] sm:$0xff]
        %v4330 = vld [vmem:[%s5 + $0x20] sm:$0xff]
        %v4331 = vld [vmem:[%s5 + $0x28] sm:$0xff]
        %v4332 = vld [vmem:[%s5 + $0x30] sm:$0xff]
        %v4333 = vld [vmem:[%s5 + $0x38] sm:$0xff]
        %v4334 = vld [vmem:[%s5 + $0x40] sm:$0xff]
        %v4335 = vld [vmem:[%s5 + $0x48] sm:$0xff]
        %v4336 = vld [vmem:[%s5 + $0x50] sm:$0xff]
        %v4337 = vld [vmem:[%s5 + $0x58] sm:$0xff]
        %v4338 = vmul.f32 %v4288, %v4326
        %v4339 = vmul.f32 %v4289, %v4327
        %v4340 = vmul.f32 %v4290, %v4328
        %v4341 = vmul.f32 %v4291, %v4329
        %v4342 = vmul.f32 %v4292, %v4330
        %v4343 = vmul.f32 %v4293, %v4331
        %v4344 = vmul.f32 %v4294, %v4332
        %v4345 = vmul.f32 %v4295, %v4333
        %v4346 = vmul.f32 %v4296, %v4334
        %v4347 = vmul.f32 %v4297, %v4335
        %v4348 = vmul.f32 %v4298, %v4336
        %v4349 = vmul.f32 %v4299, %v4337
        %s4350 = scalar_lea.vmem %s5, 96
        %v4351 = vld [vmem:[%s4350] sm:$0xff]
        %v4352 = vld [vmem:[%s4350 + $0x8] sm:$0xff]
        %v4353 = vld [vmem:[%s4350 + $0x10] sm:$0xff]
        %v4354 = vld [vmem:[%s4350 + $0x18] sm:$0xff]
        %v4355 = vld [vmem:[%s4350 + $0x20] sm:$0xff]
        %v4356 = vld [vmem:[%s4350 + $0x28] sm:$0xff]
        %v4357 = vld [vmem:[%s4350 + $0x30] sm:$0xff]
        %v4358 = vld [vmem:[%s4350 + $0x38] sm:$0xff]
        %v4359 = vld [vmem:[%s4350 + $0x40] sm:$0xff]
        %v4360 = vld [vmem:[%s4350 + $0x48] sm:$0xff]
        %v4361 = vld [vmem:[%s4350 + $0x50] sm:$0xff]
        %v4362 = vld [vmem:[%s4350 + $0x58] sm:$0xff]
        %v4363 = vmul.f32 %v4314, %v4351
        %v4364 = vmul.f32 %v4315, %v4352
        %v4365 = vmul.f32 %v4316, %v4353
        %v4366 = vmul.f32 %v4317, %v4354
        %v4367 = vmul.f32 %v4318, %v4355
        %v4368 = vmul.f32 %v4319, %v4356
        %v4369 = vmul.f32 %v4320, %v4357
        %v4370 = vmul.f32 %v4321, %v4358
        %v4371 = vmul.f32 %v4322, %v4359
        %v4372 = vmul.f32 %v4323, %v4360
        %v4373 = vmul.f32 %v4324, %v4361
        %v4374 = vmul.f32 %v4325, %v4362
        %v4375 = vadd.f32 %v4338, %v4363
        %v4376 = vadd.f32 %v4339, %v4364
        %v4377 = vadd.f32 %v4340, %v4365
        %v4378 = vadd.f32 %v4341, %v4366
        %v4379 = vadd.f32 %v4342, %v4367
        %v4380 = vadd.f32 %v4343, %v4368
        %v4381 = vadd.f32 %v4344, %v4369
        %v4382 = vadd.f32 %v4345, %v4370
        %v4383 = vadd.f32 %v4346, %v4371
        %v4384 = vadd.f32 %v4347, %v4372
        %v4385 = vadd.f32 %v4348, %v4373
        %v4386 = vadd.f32 %v4349, %v4374
        %vm4387 = vcmask 785408
        %v4388 = vsel %vm4387, %v4375, 0.0
        %4389 = vadd.xlane.f32.xlu0 %v4388
        %v4390 = vpop.xlane.xlu0 %4389
        %v4391 = vsel %vm4387, %v4376, 0.0
        %4392 = vadd.xlane.f32.xlu0 %v4391
        %v4393 = vpop.xlane.xlu0 %4392
        %v4394 = vsel %vm4387, %v4377, 0.0
        %4395 = vadd.xlane.f32.xlu0 %v4394
        %v4396 = vpop.xlane.xlu0 %4395
        %v4397 = vsel %vm4387, %v4378, 0.0
        %4398 = vadd.xlane.f32.xlu0 %v4397
        %v4399 = vpop.xlane.xlu0 %4398
        %v4400 = vsel %vm4387, %v4379, 0.0
        %4401 = vadd.xlane.f32.xlu0 %v4400
        %v4402 = vpop.xlane.xlu0 %4401
        %v4403 = vsel %vm4387, %v4380, 0.0
        %4404 = vadd.xlane.f32.xlu0 %v4403
        %v4405 = vpop.xlane.xlu0 %4404
        %v4406 = vsel %vm4387, %v4381, 0.0
        %4407 = vadd.xlane.f32.xlu0 %v4406
        %v4408 = vpop.xlane.xlu0 %4407
        %v4409 = vsel %vm4387, %v4382, 0.0
        %4410 = vadd.xlane.f32.xlu0 %v4409
        %v4411 = vpop.xlane.xlu0 %4410
        %v4412 = vsel %vm4387, %v4383, 0.0
        %4413 = vadd.xlane.f32.xlu0 %v4412
        %v4414 = vpop.xlane.xlu0 %4413
        %v4415 = vsel %vm4387, %v4384, 0.0
        %4416 = vadd.xlane.f32.xlu0 %v4415
        %v4417 = vpop.xlane.xlu0 %4416
        %v4418 = vsel %vm4387, %v4385, 0.0
        %4419 = vadd.xlane.f32.xlu0 %v4418
        %v4420 = vpop.xlane.xlu0 %4419
        %v4421 = vsel %vm4387, %v4386, 0.0
        %4422 = vadd.xlane.f32.xlu0 %v4421
        %v4423 = vpop.xlane.xlu0 %4422
        %v4424 = vadd.f32 %v4390, %v4393
        %v4425 = vadd.f32 %v4424, %v4396
        %v4426 = vadd.f32 %v4425, %v4399
        %v4427 = vadd.f32 %v4426, %v4402
        %v4428 = vadd.f32 %v4427, %v4405
        %v4429 = vadd.f32 %v4428, %v4408
        %v4430 = vadd.f32 %v4429, %v4411
        %v4431 = vadd.f32 %v4430, %v4414
        %v4432 = vadd.f32 %v4431, %v4417
        %v4433 = vadd.f32 %v4432, %v4420
        %v4434 = vadd.f32 %v4433, %v4423
        %v4435 = vrot.slane %v4434, 4
        %v4436 = vadd.f32 %v4434, %v4435
        %v4437 = vrot.slane %v4436, 2
        %v4438 = vadd.f32 %v4436, %v4437
        %v4439 = vrot.slane %v4438, 1
        %v4440 = vadd.f32 %v4438, %v4439
        %s4441 = scalar_lea.vmem %s5, 192
        %v4442 = vld [vmem:[%s4441] sm:$0xff]
        %v4443 = vld [vmem:[%s4441 + $0x8] sm:$0xff]
        %v4444 = vld [vmem:[%s4441 + $0x10] sm:$0xff]
        %v4445 = vld [vmem:[%s4441 + $0x18] sm:$0xff]
        %v4446 = vld [vmem:[%s4441 + $0x20] sm:$0xff]
        %v4447 = vld [vmem:[%s4441 + $0x28] sm:$0xff]
        %v4448 = vld [vmem:[%s4441 + $0x30] sm:$0xff]
        %v4449 = vld [vmem:[%s4441 + $0x38] sm:$0xff]
        %v4450 = vld [vmem:[%s4441 + $0x40] sm:$0xff]
        %v4451 = vld [vmem:[%s4441 + $0x48] sm:$0xff]
        %v4452 = vld [vmem:[%s4441 + $0x50] sm:$0xff]
        %v4453 = vld [vmem:[%s4441 + $0x58] sm:$0xff]
        %v4454 = vmul.f32 %v4288, %v4442
        %v4455 = vmul.f32 %v4289, %v4443
        %v4456 = vmul.f32 %v4290, %v4444
        %v4457 = vmul.f32 %v4291, %v4445
        %v4458 = vmul.f32 %v4292, %v4446
        %v4459 = vmul.f32 %v4293, %v4447
        %v4460 = vmul.f32 %v4294, %v4448
        %v4461 = vmul.f32 %v4295, %v4449
        %v4462 = vmul.f32 %v4296, %v4450
        %v4463 = vmul.f32 %v4297, %v4451
        %v4464 = vmul.f32 %v4298, %v4452
        %v4465 = vmul.f32 %v4299, %v4453
        %s4466 = scalar_lea.vmem %s5, 288
        %v4467 = vld [vmem:[%s4466] sm:$0xff]
        %v4468 = vld [vmem:[%s4466 + $0x8] sm:$0xff]
        %v4469 = vld [vmem:[%s4466 + $0x10] sm:$0xff]
        %v4470 = vld [vmem:[%s4466 + $0x18] sm:$0xff]
        %v4471 = vld [vmem:[%s4466 + $0x20] sm:$0xff]
        %v4472 = vld [vmem:[%s4466 + $0x28] sm:$0xff]
        %v4473 = vld [vmem:[%s4466 + $0x30] sm:$0xff]
        %v4474 = vld [vmem:[%s4466 + $0x38] sm:$0xff]
        %v4475 = vld [vmem:[%s4466 + $0x40] sm:$0xff]
        %v4476 = vld [vmem:[%s4466 + $0x48] sm:$0xff]
        %v4477 = vld [vmem:[%s4466 + $0x50] sm:$0xff]
        %v4478 = vld [vmem:[%s4466 + $0x58] sm:$0xff]
        %v4479 = vmul.f32 %v4314, %v4467
        %v4480 = vmul.f32 %v4315, %v4468
        %v4481 = vmul.f32 %v4316, %v4469
        %v4482 = vmul.f32 %v4317, %v4470
        %v4483 = vmul.f32 %v4318, %v4471
        %v4484 = vmul.f32 %v4319, %v4472
        %v4485 = vmul.f32 %v4320, %v4473
        %v4486 = vmul.f32 %v4321, %v4474
        %v4487 = vmul.f32 %v4322, %v4475
        %v4488 = vmul.f32 %v4323, %v4476
        %v4489 = vmul.f32 %v4324, %v4477
        %v4490 = vmul.f32 %v4325, %v4478
        %v4491 = vadd.f32 %v4454, %v4479
        %v4492 = vadd.f32 %v4455, %v4480
        %v4493 = vadd.f32 %v4456, %v4481
        %v4494 = vadd.f32 %v4457, %v4482
        %v4495 = vadd.f32 %v4458, %v4483
        %v4496 = vadd.f32 %v4459, %v4484
        %v4497 = vadd.f32 %v4460, %v4485
        %v4498 = vadd.f32 %v4461, %v4486
        %v4499 = vadd.f32 %v4462, %v4487
        %v4500 = vadd.f32 %v4463, %v4488
        %v4501 = vadd.f32 %v4464, %v4489
        %v4502 = vadd.f32 %v4465, %v4490
        %v4503 = vsel %vm4387, %v4491, 0.0
        %4504 = vadd.xlane.f32.xlu0 %v4503
        %v4505 = vpop.xlane.xlu0 %4504
        %v4506 = vsel %vm4387, %v4492, 0.0
        %4507 = vadd.xlane.f32.xlu0 %v4506
        %v4508 = vpop.xlane.xlu0 %4507
        %v4509 = vsel %vm4387, %v4493, 0.0
        %4510 = vadd.xlane.f32.xlu0 %v4509
        %v4511 = vpop.xlane.xlu0 %4510
        %v4512 = vsel %vm4387, %v4494, 0.0
        %4513 = vadd.xlane.f32.xlu0 %v4512
        %v4514 = vpop.xlane.xlu0 %4513
        %v4515 = vsel %vm4387, %v4495, 0.0
        %4516 = vadd.xlane.f32.xlu0 %v4515
        %v4517 = vpop.xlane.xlu0 %4516
        %v4518 = vsel %vm4387, %v4496, 0.0
        %4519 = vadd.xlane.f32.xlu0 %v4518
        %v4520 = vpop.xlane.xlu0 %4519
        %v4521 = vsel %vm4387, %v4497, 0.0
        %4522 = vadd.xlane.f32.xlu0 %v4521
        %v4523 = vpop.xlane.xlu0 %4522
        %v4524 = vsel %vm4387, %v4498, 0.0
        %4525 = vadd.xlane.f32.xlu0 %v4524
        %v4526 = vpop.xlane.xlu0 %4525
        %v4527 = vsel %vm4387, %v4499, 0.0
        %4528 = vadd.xlane.f32.xlu0 %v4527
        %v4529 = vpop.xlane.xlu0 %4528
        %v4530 = vsel %vm4387, %v4500, 0.0
        %4531 = vadd.xlane.f32.xlu0 %v4530
        %v4532 = vpop.xlane.xlu0 %4531
        %v4533 = vsel %vm4387, %v4501, 0.0
        %4534 = vadd.xlane.f32.xlu0 %v4533
        %v4535 = vpop.xlane.xlu0 %4534
        %v4536 = vsel %vm4387, %v4502, 0.0
        %4537 = vadd.xlane.f32.xlu0 %v4536
        %v4538 = vpop.xlane.xlu0 %4537
        %v4539 = vadd.f32 %v4505, %v4508
        %v4540 = vadd.f32 %v4539, %v4511
        %v4541 = vadd.f32 %v4540, %v4514
        %v4542 = vadd.f32 %v4541, %v4517
        %v4543 = vadd.f32 %v4542, %v4520
        %v4544 = vadd.f32 %v4543, %v4523
        %v4545 = vadd.f32 %v4544, %v4526
        %v4546 = vadd.f32 %v4545, %v4529
        %v4547 = vadd.f32 %v4546, %v4532
        %v4548 = vadd.f32 %v4547, %v4535
        %v4549 = vadd.f32 %v4548, %v4538
        %v4550 = vrot.slane %v4549, 4
        %v4551 = vadd.f32 %v4549, %v4550
        %v4552 = vrot.slane %v4551, 2
        %v4553 = vadd.f32 %v4551, %v4552
        %v4554 = vrot.slane %v4553, 1
        %v4555 = vadd.f32 %v4553, %v4554
        %s4556 = scalar_lea.vmem %s5, 384
        %v4557 = vld [vmem:[%s4556] sm:$0xff]
        %v4558 = vld [vmem:[%s4556 + $0x8] sm:$0xff]
        %v4559 = vld [vmem:[%s4556 + $0x10] sm:$0xff]
        %v4560 = vld [vmem:[%s4556 + $0x18] sm:$0xff]
        %v4561 = vld [vmem:[%s4556 + $0x20] sm:$0xff]
        %v4562 = vld [vmem:[%s4556 + $0x28] sm:$0xff]
        %v4563 = vld [vmem:[%s4556 + $0x30] sm:$0xff]
        %v4564 = vld [vmem:[%s4556 + $0x38] sm:$0xff]
        %v4565 = vld [vmem:[%s4556 + $0x40] sm:$0xff]
        %v4566 = vld [vmem:[%s4556 + $0x48] sm:$0xff]
        %v4567 = vld [vmem:[%s4556 + $0x50] sm:$0xff]
        %v4568 = vld [vmem:[%s4556 + $0x58] sm:$0xff]
        %v4569 = vmul.f32 %v4288, %v4557
        %v4570 = vmul.f32 %v4289, %v4558
        %v4571 = vmul.f32 %v4290, %v4559
        %v4572 = vmul.f32 %v4291, %v4560
        %v4573 = vmul.f32 %v4292, %v4561
        %v4574 = vmul.f32 %v4293, %v4562
        %v4575 = vmul.f32 %v4294, %v4563
        %v4576 = vmul.f32 %v4295, %v4564
        %v4577 = vmul.f32 %v4296, %v4565
        %v4578 = vmul.f32 %v4297, %v4566
        %v4579 = vmul.f32 %v4298, %v4567
        %v4580 = vmul.f32 %v4299, %v4568
        %s4581 = scalar_lea.vmem %s5, 480
        %v4582 = vld [vmem:[%s4581] sm:$0xff]
        %v4583 = vld [vmem:[%s4581 + $0x8] sm:$0xff]
        %v4584 = vld [vmem:[%s4581 + $0x10] sm:$0xff]
        %v4585 = vld [vmem:[%s4581 + $0x18] sm:$0xff]
        %v4586 = vld [vmem:[%s4581 + $0x20] sm:$0xff]
        %v4587 = vld [vmem:[%s4581 + $0x28] sm:$0xff]
        %v4588 = vld [vmem:[%s4581 + $0x30] sm:$0xff]
        %v4589 = vld [vmem:[%s4581 + $0x38] sm:$0xff]
        %v4590 = vld [vmem:[%s4581 + $0x40] sm:$0xff]
        %v4591 = vld [vmem:[%s4581 + $0x48] sm:$0xff]
        %v4592 = vld [vmem:[%s4581 + $0x50] sm:$0xff]
        %v4593 = vld [vmem:[%s4581 + $0x58] sm:$0xff]
        %v4594 = vmul.f32 %v4314, %v4582
        %v4595 = vmul.f32 %v4315, %v4583
        %v4596 = vmul.f32 %v4316, %v4584
        %v4597 = vmul.f32 %v4317, %v4585
        %v4598 = vmul.f32 %v4318, %v4586
        %v4599 = vmul.f32 %v4319, %v4587
        %v4600 = vmul.f32 %v4320, %v4588
        %v4601 = vmul.f32 %v4321, %v4589
        %v4602 = vmul.f32 %v4322, %v4590
        %v4603 = vmul.f32 %v4323, %v4591
        %v4604 = vmul.f32 %v4324, %v4592
        %v4605 = vmul.f32 %v4325, %v4593
        %v4606 = vadd.f32 %v4569, %v4594
        %v4607 = vadd.f32 %v4570, %v4595
        %v4608 = vadd.f32 %v4571, %v4596
        %v4609 = vadd.f32 %v4572, %v4597
        %v4610 = vadd.f32 %v4573, %v4598
        %v4611 = vadd.f32 %v4574, %v4599
        %v4612 = vadd.f32 %v4575, %v4600
        %v4613 = vadd.f32 %v4576, %v4601
        %v4614 = vadd.f32 %v4577, %v4602
        %v4615 = vadd.f32 %v4578, %v4603
        %v4616 = vadd.f32 %v4579, %v4604
        %v4617 = vadd.f32 %v4580, %v4605
        %v4618 = vsel %vm4387, %v4606, 0.0
        %4619 = vadd.xlane.f32.xlu0 %v4618
        %v4620 = vpop.xlane.xlu0 %4619
        %v4621 = vsel %vm4387, %v4607, 0.0
        %4622 = vadd.xlane.f32.xlu0 %v4621
        %v4623 = vpop.xlane.xlu0 %4622
        %v4624 = vsel %vm4387, %v4608, 0.0
        %4625 = vadd.xlane.f32.xlu0 %v4624
        %v4626 = vpop.xlane.xlu0 %4625
        %v4627 = vsel %vm4387, %v4609, 0.0
        %4628 = vadd.xlane.f32.xlu0 %v4627
        %v4629 = vpop.xlane.xlu0 %4628
        %v4630 = vsel %vm4387, %v4610, 0.0
        %4631 = vadd.xlane.f32.xlu0 %v4630
        %v4632 = vpop.xlane.xlu0 %4631
        %v4633 = vsel %vm4387, %v4611, 0.0
        %4634 = vadd.xlane.f32.xlu0 %v4633
        %v4635 = vpop.xlane.xlu0 %4634
        %v4636 = vsel %vm4387, %v4612, 0.0
        %4637 = vadd.xlane.f32.xlu0 %v4636
        %v4638 = vpop.xlane.xlu0 %4637
        %v4639 = vsel %vm4387, %v4613, 0.0
        %4640 = vadd.xlane.f32.xlu0 %v4639
        %v4641 = vpop.xlane.xlu0 %4640
        %v4642 = vsel %vm4387, %v4614, 0.0
        %4643 = vadd.xlane.f32.xlu0 %v4642
        %v4644 = vpop.xlane.xlu0 %4643
        %v4645 = vsel %vm4387, %v4615, 0.0
        %4646 = vadd.xlane.f32.xlu0 %v4645
        %v4647 = vpop.xlane.xlu0 %4646
        %v4648 = vsel %vm4387, %v4616, 0.0
        %4649 = vadd.xlane.f32.xlu0 %v4648
        %v4650 = vpop.xlane.xlu0 %4649
        %v4651 = vsel %vm4387, %v4617, 0.0
        %4652 = vadd.xlane.f32.xlu0 %v4651
        %v4653 = vpop.xlane.xlu0 %4652
        %v4654 = vadd.f32 %v4620, %v4623
        %v4655 = vadd.f32 %v4654, %v4626
        %v4656 = vadd.f32 %v4655, %v4629
        %v4657 = vadd.f32 %v4656, %v4632
        %v4658 = vadd.f32 %v4657, %v4635
        %v4659 = vadd.f32 %v4658, %v4638
        %v4660 = vadd.f32 %v4659, %v4641
        %v4661 = vadd.f32 %v4660, %v4644
        %v4662 = vadd.f32 %v4661, %v4647
        %v4663 = vadd.f32 %v4662, %v4650
        %v4664 = vadd.f32 %v4663, %v4653
        %v4665 = vrot.slane %v4664, 4
        %v4666 = vadd.f32 %v4664, %v4665
        %v4667 = vrot.slane %v4666, 2
        %v4668 = vadd.f32 %v4666, %v4667
        %v4669 = vrot.slane %v4668, 1
        %v4670 = vadd.f32 %v4668, %v4669
        %s4671 = scalar_lea.vmem %s5, 576
        %v4672 = vld [vmem:[%s4671] sm:$0xff]
        %v4673 = vld [vmem:[%s4671 + $0x8] sm:$0xff]
        %v4674 = vld [vmem:[%s4671 + $0x10] sm:$0xff]
        %v4675 = vld [vmem:[%s4671 + $0x18] sm:$0xff]
        %v4676 = vld [vmem:[%s4671 + $0x20] sm:$0xff]
        %v4677 = vld [vmem:[%s4671 + $0x28] sm:$0xff]
        %v4678 = vld [vmem:[%s4671 + $0x30] sm:$0xff]
        %v4679 = vld [vmem:[%s4671 + $0x38] sm:$0xff]
        %v4680 = vld [vmem:[%s4671 + $0x40] sm:$0xff]
        %v4681 = vld [vmem:[%s4671 + $0x48] sm:$0xff]
        %v4682 = vld [vmem:[%s4671 + $0x50] sm:$0xff]
        %v4683 = vld [vmem:[%s4671 + $0x58] sm:$0xff]
        %v4684 = vmul.f32 %v4288, %v4672
        %v4685 = vmul.f32 %v4289, %v4673
        %v4686 = vmul.f32 %v4290, %v4674
        %v4687 = vmul.f32 %v4291, %v4675
        %v4688 = vmul.f32 %v4292, %v4676
        %v4689 = vmul.f32 %v4293, %v4677
        %v4690 = vmul.f32 %v4294, %v4678
        %v4691 = vmul.f32 %v4295, %v4679
        %v4692 = vmul.f32 %v4296, %v4680
        %v4693 = vmul.f32 %v4297, %v4681
        %v4694 = vmul.f32 %v4298, %v4682
        %v4695 = vmul.f32 %v4299, %v4683
        %s4696 = scalar_lea.vmem %s5, 672
        %v4697 = vld [vmem:[%s4696] sm:$0xff]
        %v4698 = vld [vmem:[%s4696 + $0x8] sm:$0xff]
        %v4699 = vld [vmem:[%s4696 + $0x10] sm:$0xff]
        %v4700 = vld [vmem:[%s4696 + $0x18] sm:$0xff]
        %v4701 = vld [vmem:[%s4696 + $0x20] sm:$0xff]
        %v4702 = vld [vmem:[%s4696 + $0x28] sm:$0xff]
        %v4703 = vld [vmem:[%s4696 + $0x30] sm:$0xff]
        %v4704 = vld [vmem:[%s4696 + $0x38] sm:$0xff]
        %v4705 = vld [vmem:[%s4696 + $0x40] sm:$0xff]
        %v4706 = vld [vmem:[%s4696 + $0x48] sm:$0xff]
        %v4707 = vld [vmem:[%s4696 + $0x50] sm:$0xff]
        %v4708 = vld [vmem:[%s4696 + $0x58] sm:$0xff]
        %v4709 = vmul.f32 %v4314, %v4697
        %v4710 = vmul.f32 %v4315, %v4698
        %v4711 = vmul.f32 %v4316, %v4699
        %v4712 = vmul.f32 %v4317, %v4700
        %v4713 = vmul.f32 %v4318, %v4701
        %v4714 = vmul.f32 %v4319, %v4702
        %v4715 = vmul.f32 %v4320, %v4703
        %v4716 = vmul.f32 %v4321, %v4704
        %v4717 = vmul.f32 %v4322, %v4705
        %v4718 = vmul.f32 %v4323, %v4706
        %v4719 = vmul.f32 %v4324, %v4707
        %v4720 = vmul.f32 %v4325, %v4708
        %v4721 = vadd.f32 %v4684, %v4709
        %v4722 = vadd.f32 %v4685, %v4710
        %v4723 = vadd.f32 %v4686, %v4711
        %v4724 = vadd.f32 %v4687, %v4712
        %v4725 = vadd.f32 %v4688, %v4713
        %v4726 = vadd.f32 %v4689, %v4714
        %v4727 = vadd.f32 %v4690, %v4715
        %v4728 = vadd.f32 %v4691, %v4716
        %v4729 = vadd.f32 %v4692, %v4717
        %v4730 = vadd.f32 %v4693, %v4718
        %v4731 = vadd.f32 %v4694, %v4719
        %v4732 = vadd.f32 %v4695, %v4720
        %v4733 = vsel %vm4387, %v4721, 0.0
        %4734 = vadd.xlane.f32.xlu0 %v4733
        %v4735 = vpop.xlane.xlu0 %4734
        %v4736 = vsel %vm4387, %v4722, 0.0
        %4737 = vadd.xlane.f32.xlu0 %v4736
        %v4738 = vpop.xlane.xlu0 %4737
        %v4739 = vsel %vm4387, %v4723, 0.0
        %4740 = vadd.xlane.f32.xlu0 %v4739
        %v4741 = vpop.xlane.xlu0 %4740
        %v4742 = vsel %vm4387, %v4724, 0.0
        %4743 = vadd.xlane.f32.xlu0 %v4742
        %v4744 = vpop.xlane.xlu0 %4743
        %v4745 = vsel %vm4387, %v4725, 0.0
        %4746 = vadd.xlane.f32.xlu0 %v4745
        %v4747 = vpop.xlane.xlu0 %4746
        %v4748 = vsel %vm4387, %v4726, 0.0
        %4749 = vadd.xlane.f32.xlu0 %v4748
        %v4750 = vpop.xlane.xlu0 %4749
        %v4751 = vsel %vm4387, %v4727, 0.0
        %4752 = vadd.xlane.f32.xlu0 %v4751
        %v4753 = vpop.xlane.xlu0 %4752
        %v4754 = vsel %vm4387, %v4728, 0.0
        %4755 = vadd.xlane.f32.xlu0 %v4754
        %v4756 = vpop.xlane.xlu0 %4755
        %v4757 = vsel %vm4387, %v4729, 0.0
        %4758 = vadd.xlane.f32.xlu0 %v4757
        %v4759 = vpop.xlane.xlu0 %4758
        %v4760 = vsel %vm4387, %v4730, 0.0
        %4761 = vadd.xlane.f32.xlu0 %v4760
        %v4762 = vpop.xlane.xlu0 %4761
        %v4763 = vsel %vm4387, %v4731, 0.0
        %4764 = vadd.xlane.f32.xlu0 %v4763
        %v4765 = vpop.xlane.xlu0 %4764
        %v4766 = vsel %vm4387, %v4732, 0.0
        %4767 = vadd.xlane.f32.xlu0 %v4766
        %v4768 = vpop.xlane.xlu0 %4767
        %v4769 = vadd.f32 %v4735, %v4738
        %v4770 = vadd.f32 %v4769, %v4741
        %v4771 = vadd.f32 %v4770, %v4744
        %v4772 = vadd.f32 %v4771, %v4747
        %v4773 = vadd.f32 %v4772, %v4750
        %v4774 = vadd.f32 %v4773, %v4753
        %v4775 = vadd.f32 %v4774, %v4756
        %v4776 = vadd.f32 %v4775, %v4759
        %v4777 = vadd.f32 %v4776, %v4762
        %v4778 = vadd.f32 %v4777, %v4765
        %v4779 = vadd.f32 %v4778, %v4768
        %v4780 = vrot.slane %v4779, 4
        %v4781 = vadd.f32 %v4779, %v4780
        %v4782 = vrot.slane %v4781, 2
        %v4783 = vadd.f32 %v4781, %v4782
        %v4784 = vrot.slane %v4783, 1
        %v4785 = vadd.f32 %v4783, %v4784
        %vm4786 = vcmask 7168
        %v4787 = vsel %vm4786, %v4440, %v4555
        %vm4788 = vcmask 15360
        %v4789 = vsel %vm4788, %v4787, %v4670
        %vm4790 = vcmask 23552
        %v4791 = vsel %vm4790, %v4789, %v4785
        %v4792 = vld [vmem:[%s6] sm:$0x1]
        %v4793 = vadd.f32 %v4791, %v4792
        %vm4794 = vcmask 24576
        %4795 = vst.msk [vmem:[%s322] sm:$0x1] %vm4794, %v4793
        %s4796 = sand.u32 %s184, 1
        %s4797 = scalar_lea.sflag [#allocation4], %s4796
        %s4798 = sand.u32 %s184, 1
        %s4799 = scalar_lea.vmem [#allocation11], %s4798
        // Predicated region
        $region79: #{cnn_model_forward.1} parent=47 // pred_check
          %p4800 = pneg %p194
        $region80: #{cnn_model_forward.1} parent=47 // pred_check_branch
          %4802 = sbr.rel (%p4800) target = $region82
        $region81: #{cnn_model_forward.1} parent=47 // pred_region
          %s4804 = ssub.s32 16, 16
          %4805 = vsyncadd %s4797, %s4804
          %s4806 = smul.addr %s24, 16
          %s4807 = scalar_lea.hbm %s7, %s4806
          %s4809 = sshll.u32 %s4799, 4
          %s4810 = int_to_ptr.vmem [resolvable:$true] %s4809
          %4812 = dma.vmem_to_hbm [thread:$0]  %s4810, 16, %s4807, %s4797
        $region82: #{cnn_model_forward.1} parent=47 // pred_fallthru
          _
      $region48: #{cnn_model_forward.1} parent=5 // pred_fallthru
        _
      %p4813 = scmp.le.s32.totalorder 2, %s19
      // Predicated region
      $region83: #{cnn_model_forward.1} parent=5 // pred_check
        %p4814 = pneg %p4813
      $region84: #{cnn_model_forward.1} parent=5 // pred_check_branch
        %4816 = sbr.rel (%p4814) target = $region86
      $region85: #{cnn_model_forward.1} parent=5 // pred_region
        %s4817 = ssub.s32 %s19, 2
        // Predicated region
        $region87: #{cnn_model_forward.1} parent=85 // pred_check
          %p4818 = pneg %p200
        $region88: #{cnn_model_forward.1} parent=85 // pred_check_branch
          %4820 = sbr.rel (%p4818) target = $region90
        $region89: #{cnn_model_forward.1} parent=85 // pred_region
          %s4821 = sand.u32 %s185, 1
          %s4822 = scalar_lea.sflag [#allocation4], %s4821
          %s4823 = sand.u32 %s185, 1
          %s4824 = scalar_lea.vmem [#allocation11], %s4823
          %4825 = dma.done %s4822, 16
        $region90: #{cnn_model_forward.1} parent=85 // pred_fallthru
          _
      $region86: #{cnn_model_forward.1} parent=5 // pred_fallthru
        _
    $region6: #{cnn_model_forward.1} parent=1 // loop_footer
      %s23 = sadd.s32 1, %s19
    $region7: #{cnn_model_forward.1} parent=1 // loop_footer_branch
      %18 = sbr.rel target = $region3
    $region8: #{cnn_model_forward.1} parent=1 // loop_exit
      _
    %4826 = vsyncpa [#allocation4], 1
    %s4827 = scalar_lea.sflag [#allocation4], 1
    %4828 = vsyncpa %s4827, 1
    %4829 = vsyncpa [#allocation5], 1
    %s4830 = scalar_lea.sflag [#allocation5], 1
    %4831 = vsyncpa %s4830, 1
    %4832 = vsyncpa [#allocation7], 1
    %4833 = vsyncpa [#allocation10], 1

</llo_original>
